<compile_context>
chip_gen: v7x
topology: tpu7x:2x2x1
jax: 0.10.0
libtpu: 0.0.40
codegen_flags: <defaults>
</compile_context>

<pallas_src>
import math
from functools import partial

import jax
import jax.numpy as jnp
import numpy as np
from jax.experimental import pallas as pl
from jax.experimental.pallas import tpu as pltpu

# ----------------------------- model config (small, synthetic) ---------------
VOCAB = 64
BLOCK_SIZE = 16     # max sequence length (positional table size)
N_EMBD = 32
N_HEAD = 4
N_LAYER = 2
DROPOUT = 0.0       # nn.Dropout(p=0.0) -> identity
LN_EPS = 1e-5

SLAB_LANES = 128    # all params are zero-padded to 128 lanes in the weight slab


# ----------------------------- weight-slab layout ------------------------------
def _build_slab_layout():
    """Static row layout of the single packed weight slab.

    Every matrix block starts at a row offset that is a multiple of 8
    (sublane-aligned) and at lane offset 0; bias/LN vectors are one row each.
    """
    C = N_EMBD
    entries = [("wte", VOCAB, C), ("wpe", BLOCK_SIZE, C)]
    for l in range(N_LAYER):
        entries += [
            (f"wqkv{l}", C, 3 * C),        # fused QKV weight (in, out) -- kept fused
            (f"wo{l}",   C, C),
            (f"wfc{l}",  C, 4 * C),
            (f"wmp{l}",  4 * C, C),
            (f"g1{l}", 1, C), (f"b1{l}", 1, C),
            (f"bqkv{l}", 1, 3 * C), (f"bo{l}", 1, C),
            (f"g2{l}", 1, C), (f"b2{l}", 1, C),
            (f"bfc{l}", 1, 4 * C), (f"bmp{l}", 1, C),
        ]
    entries += [("gf", 1, C), ("bf", 1, C)]

    layout, off = {}, 0
    for name, r, c in entries:
        assert c <= SLAB_LANES
        layout[name] = (off, r, c)
        off += r
    rows = ((off + 7) // 8) * 8
    return layout, rows


_LAYOUT, _SLAB_ROWS = _build_slab_layout()


# ----------------------------- in-kernel math helpers -------------------------
def _layernorm(x, g, b):
    # Two INDEPENDENT reductions (sum x, sum x*x) -> E[x^2] - mu^2 variance,
    # so the two cross-lane XLU reduces can overlap (perf review item).
    inv_n = 1.0 / x.shape[-1]
    mu = jnp.sum(x, axis=-1, keepdims=True) * inv_n
    ms = jnp.sum(x * x, axis=-1, keepdims=True) * inv_n
    var = ms - mu * mu
    return (x - mu) * jax.lax.rsqrt(var + LN_EPS) * g + b


def _gelu_tanh(x):
    # TODO(synk): nn.GELU() default is exact erf-GELU; we use the tanh
    # approximation (single EUP tanh instead of a ~10-op VALU erf polynomial).
    # Pre-GELU activations here are ~0.1 scale, where the approximation error
    # is << the 2e-3 test tolerance.
    c = math.sqrt(2.0 / math.pi)
    return 0.5 * x * (1.0 + jnp.tanh(c * (x + 0.044715 * (x * x * x))))


# ----------------------------- fused Pallas kernel ----------------------------
def transformer_kernel(idx_ref, w_ref, o_ref, *, n_layer, n_head, batch, seq):
    """Full forward (embedding + all Blocks + final LN) in a single invocation."""
    BT = batch * seq
    C = N_EMBD
    hd = C // n_head
    scale = 1.0 / math.sqrt(hd)

    def w(name):
        off, r, c = _LAYOUT[name]
        return w_ref[off:off + r, :c]          # static slice of the packed slab

    # ---- embedding: gather as one-hot MXU matmul (exact), + positional ------
    ids = idx_ref[...]                                                 # (BT, 1) int32
    onehot = (ids == jax.lax.broadcasted_iota(jnp.int32, (BT, VOCAB), 1)
              ).astype(jnp.float32)                                    # (BT, VOCAB)
    tok = jnp.dot(onehot, w("wte"), preferred_element_type=jnp.float32)  # (BT, C)
    pe_off = _LAYOUT["wpe"][0]
    pos = w_ref[pe_off:pe_off + seq, :C]                               # (T, C)
    x = (tok.reshape(batch, seq, C) + pos[None]).reshape(BT, C)

    # ---- statically-unrolled layer loop --------------------------------------
    for l in range(n_layer):
        # -- attention branch: x + attn(ln1(x)) --
        h = _layernorm(x, w(f"g1{l}"), w(f"b1{l}"))
        # fused QKV: ONE (BT,C)@(C,3C) matmul, then lane-slice q/k/v
        qkv = jnp.dot(h, w(f"wqkv{l}"),
                      preferred_element_type=jnp.float32) + w(f"bqkv{l}")   # (BT, 3C)

        wo_off = _LAYOUT[f"wo{l}"][0]
        y_parts = []
        for hi in range(n_head):
            q_lo = hi * hd
            qh = qkv[:, q_lo:q_lo + hd].reshape(batch, seq, hd)
            kh = qkv[:, C + q_lo:C + q_lo + hd].reshape(batch, seq, hd)
            vh = qkv[:, 2 * C + q_lo:2 * C + q_lo + hd].reshape(batch, seq, hd)
            # non-causal softmax attention, batched over B
            s = jnp.einsum('btd,bsd->bts', qh, kh,
                           preferred_element_type=jnp.float32) * scale
            s = s - jnp.max(s, axis=-1, keepdims=True)
            p = jnp.exp(s)
            p = p * pl.reciprocal(jnp.sum(p, axis=-1, keepdims=True), approx=True)
            oh = jnp.einsum('bts,bsd->btd', p, vh,
                            preferred_element_type=jnp.float32)        # (B, T, hd)
            # per-head output projection (row slice of W_o); summing over heads
            # == concat(heads) @ W_o, no concatenate needed.
            y_parts.append(jnp.dot(
                oh.reshape(BT, hd),
                w_ref[wo_off + q_lo:wo_off + q_lo + hd, :C],
                preferred_element_type=jnp.float32))
        # 2-way tree accumulation (no serial 4-deep add chain)
        while len(y_parts) > 1:
            y_parts = [y_parts[i] + y_parts[i + 1] for i in range(0, len(y_parts), 2)]
        x = x + y_parts[0] + w(f"bo{l}")                               # dropout p=0 -> identity

        # -- MLP branch: x + mlp(ln2(x)) --
        h2 = _layernorm(x, w(f"g2{l}"), w(f"b2{l}"))
        ff = jnp.dot(h2, w(f"wfc{l}"), preferred_element_type=jnp.float32) + w(f"bfc{l}")
        ff = _gelu_tanh(ff)
        ff = jnp.dot(ff, w(f"wmp{l}"), preferred_element_type=jnp.float32) + w(f"bmp{l}")
        x = x + ff                                                     # dropout p=0 -> identity

    # ---- final LayerNorm + store ----------------------------------------------
    x = _layernorm(x, w("gf"), w("bf"))
    o_ref[...] = x.astype(o_ref.dtype)


# ----------------------------- wrapper -----------------------------------------
def pack_params(params):
    """Pack ALL weights/biases into one f32 (rows, 128) slab (done once)."""
    slab = np.zeros((_SLAB_ROWS, SLAB_LANES), np.float32)

    def put(name, arr):
        off, r, c = _LAYOUT[name]
        a = np.asarray(arr, np.float32).reshape(r, c)
        slab[off:off + r, :c] = a

    put("wte", params["wte"])
    put("wpe", params["wpe"])
    for l, lp in enumerate(params["blocks"]):
        (g1, b1, wqkv, bqkv, wo, bo, g2, b2, wfc, bfc, wmp, bmp) = lp
        put(f"wqkv{l}", wqkv)   # kept fused (L-less; one entry per layer)
        put(f"wo{l}", wo)
        put(f"wfc{l}", wfc)
        put(f"wmp{l}", wmp)
        put(f"g1{l}", g1); put(f"b1{l}", b1)
        put(f"bqkv{l}", bqkv); put(f"bo{l}", bo)
        put(f"g2{l}", g2); put(f"b2{l}", b2)
        put(f"bfc{l}", bfc); put(f"bmp{l}", bmp)
    put("gf", params["lnf_g"])
    put("bf", params["lnf_b"])
    return jnp.asarray(slab)


@jax.jit
def transformer_forward(idx, w_slab):
    """idx: int32 [B, T] token ids -> f32 [B, T, C] (post ln_f), matching Transformer.forward."""
    B, T = idx.shape
    assert T <= BLOCK_SIZE
    C = N_EMBD
    BT = B * T

    idx_col = idx.reshape(BT, 1).astype(jnp.int32)
    vspec = pl.BlockSpec(memory_space=pltpu.MemorySpace.VMEM)

    # No grid: 2 entry DMAs total (ids + packed weight slab), everything VMEM-resident.
    # (Scaling path: add a grid over BT tiles with dimension_semantics=("parallel",)
    #  to use both v7x TensorCores once B*T grows.)
    out = pl.pallas_call(
        partial(transformer_kernel, n_layer=N_LAYER, n_head=N_HEAD, batch=B, seq=T),
        out_shape=jax.ShapeDtypeStruct((BT, C), jnp.float32),
        in_specs=[vspec, vspec],
        out_specs=vspec,
    )(idx_col, w_slab)
    return out.reshape(B, T, C)


# ----------------------------- deterministic parameter init -------------------
def init_params(key):
    C = N_EMBD
    keys = jax.random.split(key, 2 + N_LAYER)
    params = {
        "wte": 0.02 * jax.random.normal(keys[0], (VOCAB, C), jnp.float32),
        "wpe": 0.02 * jax.random.normal(keys[1], (BLOCK_SIZE, C), jnp.float32),
        "lnf_g": jnp.ones((1, C), jnp.float32),
        "lnf_b": jnp.zeros((1, C), jnp.float32),
        "blocks": [],
    }
    for l in range(N_LAYER):
        ks = jax.random.split(keys[2 + l], 8)
        lp = [
            jnp.ones((1, C), jnp.float32),                                    # ln1 gamma
            jnp.zeros((1, C), jnp.float32),                                   # ln1 beta
            0.02 * jax.random.normal(ks[0], (C, 3 * C), jnp.float32),         # c_attn W (in,out)
            0.02 * jax.random.normal(ks[1], (1, 3 * C), jnp.float32),         # c_attn b
            0.02 * jax.random.normal(ks[2], (C, C), jnp.float32),             # attn c_proj W
            0.02 * jax.random.normal(ks[3], (1, C), jnp.float32),             # attn c_proj b
            jnp.ones((1, C), jnp.float32),                                    # ln2 gamma
            jnp.zeros((1, C), jnp.float32),                                   # ln2 beta
            0.02 * jax.random.normal(ks[4], (C, 4 * C), jnp.float32),         # mlp c_fc W
            0.02 * jax.random.normal(ks[5], (1, 4 * C), jnp.float32),         # mlp c_fc b
            0.02 * jax.random.normal(ks[6], (4 * C, C), jnp.float32),         # mlp c_proj W
            0.02 * jax.random.normal(ks[7], (1, C), jnp.float32),             # mlp c_proj b
        ]
        params["blocks"].append(lp)
    return params


# ----------------------------- pure-JAX reference (for sanity) ---------------
def ref_forward(idx, params):
    def ln(x, g, b):
        mu = x.mean(-1, keepdims=True)
        var = ((x - mu) ** 2).mean(-1, keepdims=True)
        return (x - mu) / jnp.sqrt(var + LN_EPS) * g + b

    B, T = idx.shape
    C, H = N_EMBD, N_HEAD
    hd = C // H
    x = jnp.take(params["wte"], idx, axis=0) + params["wpe"][:T][None]
    for lp in params["blocks"]:
        (g1, b1, wqkv, bqkv, wo, bo, g2, b2, wfc, bfc, wmp, bmp) = lp
        h = ln(x, g1, b1)
        qkv = h @ wqkv + bqkv
        q, k, v = jnp.split(qkv, 3, axis=-1)
        q = q.reshape(B, T, H, hd).transpose(0, 2, 1, 3)
        k = k.reshape(B, T, H, hd).transpose(0, 2, 1, 3)
        v = v.reshape(B, T, H, hd).transpose(0, 2, 1, 3)
        s = jnp.einsum("bhtd,bhsd->bhts", q, k) / math.sqrt(hd)
        p = jax.nn.softmax(s, axis=-1)                 # non-causal, matches SDPA default
        y = jnp.einsum("bhts,bhsd->bhtd", p, v).transpose(0, 2, 1, 3).reshape(B, T, C)
        x = x + (y @ wo + bo)
        h2 = ln(x, g2, b2)
        ff = jax.nn.gelu(h2 @ wfc + bfc, approximate=False)
        x = x + (ff @ wmp + bmp)
    return ln(x, params["lnf_g"], params["lnf_b"])


# ----------------------------- main -------------------------------------------
if __name__ == "__main__":
    key = jax.random.PRNGKey(0)
    k_param, k_idx = jax.random.split(key)
    params = init_params(k_param)
    w_slab = pack_params(params)

    B, T = 2, 8
    idx = jax.random.randint(k_idx, (B, T), 0, VOCAB, dtype=jnp.int32)

    out = jax.block_until_ready(transformer_forward(idx, w_slab))
    ref = jax.block_until_ready(ref_forward(idx, params))
    np.testing.assert_allclose(np.asarray(out), np.asarray(ref), atol=2e-3, rtol=2e-3)

    print("KERNEL_OK")
</pallas_src>

<mosaic_0001>
module attributes {stable_mosaic.version = 11 : i64} {
  func.func @transformer_kernel(%arg0: memref<16x1xi32, #tpu.memory_space<vmem>>, %arg1: memref<552x128xf32, #tpu.memory_space<vmem>>, %arg2: memref<16x32xf32, #tpu.memory_space<vmem>>) attributes {dimension_semantics = [], scalar_prefetch = 0 : i64, scratch_operands = 0 : i64, tpu.core_type = #tpu.core_type<tc>} {
    %c0 = arith.constant 0 : index
    %c0_0 = arith.constant 0 : index
    %0 = vector.load %arg0[%c0, %c0_0] : memref<16x1xi32, #tpu.memory_space<vmem>>, vector<16x1xi32>
    %1 = tpu.iota {dimensions = array<i32: 1>} : vector<16x64xi32>
    %2 = vector.broadcast %0 : vector<16x1xi32> to vector<16x64xi32>
    %3 = arith.cmpi eq, %2, %1 : vector<16x64xi32>
    %4 = arith.extui %3 : vector<16x64xi1> to vector<16x64xi32>
    %5 = arith.sitofp %4 : vector<16x64xi32> to vector<16x64xf32>
    %c0_1 = arith.constant 0 : index
    %c0_2 = arith.constant 0 : index
    %6 = vector.load %arg1[%c0_1, %c0_2] : memref<552x128xf32, #tpu.memory_space<vmem>>, vector<64x32xf32>
    %cst = arith.constant dense<0.000000e+00> : vector<16x32xf32>
    %7 = tpu.matmul %5, %6, %cst {dimension_numbers = #tpu.dot_dimension_numbers<[1], [0], [0], [1], [0, 0, 1, 1], [], []>} : vector<16x64xf32>, vector<64x32xf32>, vector<16x32xf32> -> vector<16x32xf32>
    %c64 = arith.constant 64 : index
    %c0_3 = arith.constant 0 : index
    %8 = vector.load %arg1[%c64, %c0_3] : memref<552x128xf32, #tpu.memory_space<vmem>>, vector<8x32xf32>
    %9 = vector.shape_cast %7 : vector<16x32xf32> to vector<2x8x32xf32>
    %10 = vector.shape_cast %8 : vector<8x32xf32> to vector<1x8x32xf32>
    %11 = vector.broadcast %10 : vector<1x8x32xf32> to vector<2x8x32xf32>
    %12 = arith.addf %9, %11 : vector<2x8x32xf32>
    %13 = vector.shape_cast %12 : vector<2x8x32xf32> to vector<16x32xf32>
    %c304 = arith.constant 304 : index
    %c0_4 = arith.constant 0 : index
    %14 = vector.load %arg1[%c304, %c0_4] : memref<552x128xf32, #tpu.memory_space<vmem>>, vector<1x32xf32>
    %c305 = arith.constant 305 : index
    %c0_5 = arith.constant 0 : index
    %15 = vector.load %arg1[%c305, %c0_5] : memref<552x128xf32, #tpu.memory_space<vmem>>, vector<1x32xf32>
    %cst_6 = arith.constant dense<0.000000e+00> : vector<16xf32>
    %16 = vector.multi_reduction <add>, %13, %cst_6 [1] : vector<16x32xf32> to vector<16xf32>
    %17 = vector.shape_cast %16 : vector<16xf32> to vector<16x1xf32>
    %cst_7 = arith.constant 3.125000e-02 : f32
    %18 = vector.broadcast %cst_7 : f32 to vector<16x1xf32>
    %19 = arith.mulf %17, %18 : vector<16x1xf32>
    %20 = arith.mulf %13, %13 : vector<16x32xf32>
    %cst_8 = arith.constant dense<0.000000e+00> : vector<16xf32>
    %21 = vector.multi_reduction <add>, %20, %cst_8 [1] : vector<16x32xf32> to vector<16xf32>
    %22 = vector.shape_cast %21 : vector<16xf32> to vector<16x1xf32>
    %cst_9 = arith.constant 3.125000e-02 : f32
    %23 = vector.broadcast %cst_9 : f32 to vector<16x1xf32>
    %24 = arith.mulf %22, %23 : vector<16x1xf32>
    %25 = arith.mulf %19, %19 : vector<16x1xf32>
    %26 = arith.subf %24, %25 : vector<16x1xf32>
    %27 = vector.broadcast %19 : vector<16x1xf32> to vector<16x32xf32>
    %28 = arith.subf %13, %27 : vector<16x32xf32>
    %cst_10 = arith.constant 9.99999974E-6 : f32
    %29 = vector.broadcast %cst_10 : f32 to vector<16x1xf32>
    %30 = arith.addf %26, %29 : vector<16x1xf32>
    %31 = math.rsqrt %30 : vector<16x1xf32>
    %32 = vector.broadcast %31 : vector<16x1xf32> to vector<16x32xf32>
    %33 = arith.mulf %28, %32 : vector<16x32xf32>
    %34 = vector.broadcast %14 : vector<1x32xf32> to vector<16x32xf32>
    %35 = arith.mulf %33, %34 : vector<16x32xf32>
    %36 = vector.broadcast %15 : vector<1x32xf32> to vector<16x32xf32>
    %37 = arith.addf %35, %36 : vector<16x32xf32>
    %c80 = arith.constant 80 : index
    %c0_11 = arith.constant 0 : index
    %38 = vector.load %arg1[%c80, %c0_11] : memref<552x128xf32, #tpu.memory_space<vmem>>, vector<32x96xf32>
    %cst_12 = arith.constant dense<0.000000e+00> : vector<16x96xf32>
    %39 = tpu.matmul %37, %38, %cst_12 {dimension_numbers = #tpu.dot_dimension_numbers<[1], [0], [0], [1], [0, 0, 1, 1], [], []>} : vector<16x32xf32>, vector<32x96xf32>, vector<16x96xf32> -> vector<16x96xf32>
    %c306 = arith.constant 306 : index
    %c0_13 = arith.constant 0 : index
    %40 = vector.load %arg1[%c306, %c0_13] : memref<552x128xf32, #tpu.memory_space<vmem>>, vector<1x96xf32>
    %41 = vector.broadcast %40 : vector<1x96xf32> to vector<16x96xf32>
    %42 = arith.addf %39, %41 : vector<16x96xf32>
    %43 = vector.extract_strided_slice %42 {offsets = [0, 0], sizes = [16, 8], strides = [1, 1]} : vector<16x96xf32> to vector<16x8xf32>
    %44 = vector.shape_cast %43 : vector<16x8xf32> to vector<2x8x8xf32>
    %45 = vector.extract_strided_slice %42 {offsets = [0, 32], sizes = [16, 8], strides = [1, 1]} : vector<16x96xf32> to vector<16x8xf32>
    %46 = vector.shape_cast %45 : vector<16x8xf32> to vector<2x8x8xf32>
    %47 = vector.extract_strided_slice %42 {offsets = [0, 64], sizes = [16, 8], strides = [1, 1]} : vector<16x96xf32> to vector<16x8xf32>
    %48 = vector.shape_cast %47 : vector<16x8xf32> to vector<2x8x8xf32>
    "tpu.trace_start"() <{level = 10 : i32, message = "btd,bsd->bts"}> : () -> ()
    %cst_14 = arith.constant dense<0.000000e+00> : vector<2x8x8xf32>
    %49 = tpu.matmul %44, %46, %cst_14 {dimension_numbers = #tpu.dot_dimension_numbers<[2], [2], [1], [1], [0, 0, 0, 1, 1, 1], [0], [0]>} : vector<2x8x8xf32>, vector<2x8x8xf32>, vector<2x8x8xf32> -> vector<2x8x8xf32>
    "tpu.trace_stop"() : () -> ()
    %cst_15 = arith.constant 0.353553385 : f32
    %50 = vector.broadcast %cst_15 : f32 to vector<2x8x8xf32>
    %51 = arith.mulf %49, %50 : vector<2x8x8xf32>
    %cst_16 = arith.constant dense<0xFF800000> : vector<2x8xf32>
    %52 = vector.multi_reduction <maximumf>, %51, %cst_16 [2] : vector<2x8x8xf32> to vector<2x8xf32>
    %53 = vector.shape_cast %52 : vector<2x8xf32> to vector<2x8x1xf32>
    %54 = vector.broadcast %53 : vector<2x8x1xf32> to vector<2x8x8xf32>
    %55 = arith.subf %51, %54 : vector<2x8x8xf32>
    %56 = math.exp %55 : vector<2x8x8xf32>
    %cst_17 = arith.constant dense<0.000000e+00> : vector<2x8xf32>
    %57 = vector.multi_reduction <add>, %56, %cst_17 [2] : vector<2x8x8xf32> to vector<2x8xf32>
    %58 = vector.shape_cast %57 : vector<2x8xf32> to vector<2x8x1xf32>
    %59 = tpu.reciprocal %58 {approx = true} : vector<2x8x1xf32> -> vector<2x8x1xf32>
    %60 = vector.broadcast %59 : vector<2x8x1xf32> to vector<2x8x8xf32>
    %61 = arith.mulf %56, %60 : vector<2x8x8xf32>
    "tpu.trace_start"() <{level = 10 : i32, message = "bts,bsd->btd"}> : () -> ()
    %cst_18 = arith.constant dense<0.000000e+00> : vector<2x8x8xf32>
    %62 = tpu.matmul %61, %48, %cst_18 {dimension_numbers = #tpu.dot_dimension_numbers<[2], [1], [1], [2], [0, 0, 0, 1, 1, 2], [0], [0]>} : vector<2x8x8xf32>, vector<2x8x8xf32>, vector<2x8x8xf32> -> vector<2x8x8xf32>
    "tpu.trace_stop"() : () -> ()
    %63 = vector.shape_cast %62 : vector<2x8x8xf32> to vector<16x8xf32>
    %c112 = arith.constant 112 : index
    %c0_19 = arith.constant 0 : index
    %64 = vector.load %arg1[%c112, %c0_19] : memref<552x128xf32, #tpu.memory_space<vmem>>, vector<8x32xf32>
    %cst_20 = arith.constant dense<0.000000e+00> : vector<16x32xf32>
    %65 = tpu.matmul %63, %64, %cst_20 {dimension_numbers = #tpu.dot_dimension_numbers<[1], [0], [0], [1], [0, 0, 1, 1], [], []>} : vector<16x8xf32>, vector<8x32xf32>, vector<16x32xf32> -> vector<16x32xf32>
    %66 = vector.extract_strided_slice %42 {offsets = [0, 8], sizes = [16, 8], strides = [1, 1]} : vector<16x96xf32> to vector<16x8xf32>
    %67 = vector.shape_cast %66 : vector<16x8xf32> to vector<2x8x8xf32>
    %68 = vector.extract_strided_slice %42 {offsets = [0, 40], sizes = [16, 8], strides = [1, 1]} : vector<16x96xf32> to vector<16x8xf32>
    %69 = vector.shape_cast %68 : vector<16x8xf32> to vector<2x8x8xf32>
    %70 = vector.extract_strided_slice %42 {offsets = [0, 72], sizes = [16, 8], strides = [1, 1]} : vector<16x96xf32> to vector<16x8xf32>
    %71 = vector.shape_cast %70 : vector<16x8xf32> to vector<2x8x8xf32>
    "tpu.trace_start"() <{level = 10 : i32, message = "btd,bsd->bts"}> : () -> ()
    %cst_21 = arith.constant dense<0.000000e+00> : vector<2x8x8xf32>
    %72 = tpu.matmul %67, %69, %cst_21 {dimension_numbers = #tpu.dot_dimension_numbers<[2], [2], [1], [1], [0, 0, 0, 1, 1, 1], [0], [0]>} : vector<2x8x8xf32>, vector<2x8x8xf32>, vector<2x8x8xf32> -> vector<2x8x8xf32>
    "tpu.trace_stop"() : () -> ()
    %cst_22 = arith.constant 0.353553385 : f32
    %73 = vector.broadcast %cst_22 : f32 to vector<2x8x8xf32>
    %74 = arith.mulf %72, %73 : vector<2x8x8xf32>
    %cst_23 = arith.constant dense<0xFF800000> : vector<2x8xf32>
    %75 = vector.multi_reduction <maximumf>, %74, %cst_23 [2] : vector<2x8x8xf32> to vector<2x8xf32>
    %76 = vector.shape_cast %75 : vector<2x8xf32> to vector<2x8x1xf32>
    %77 = vector.broadcast %76 : vector<2x8x1xf32> to vector<2x8x8xf32>
    %78 = arith.subf %74, %77 : vector<2x8x8xf32>
    %79 = math.exp %78 : vector<2x8x8xf32>
    %cst_24 = arith.constant dense<0.000000e+00> : vector<2x8xf32>
    %80 = vector.multi_reduction <add>, %79, %cst_24 [2] : vector<2x8x8xf32> to vector<2x8xf32>
    %81 = vector.shape_cast %80 : vector<2x8xf32> to vector<2x8x1xf32>
    %82 = tpu.reciprocal %81 {approx = true} : vector<2x8x1xf32> -> vector<2x8x1xf32>
    %83 = vector.broadcast %82 : vector<2x8x1xf32> to vector<2x8x8xf32>
    %84 = arith.mulf %79, %83 : vector<2x8x8xf32>
    "tpu.trace_start"() <{level = 10 : i32, message = "bts,bsd->btd"}> : () -> ()
    %cst_25 = arith.constant dense<0.000000e+00> : vector<2x8x8xf32>
    %85 = tpu.matmul %84, %71, %cst_25 {dimension_numbers = #tpu.dot_dimension_numbers<[2], [1], [1], [2], [0, 0, 0, 1, 1, 2], [0], [0]>} : vector<2x8x8xf32>, vector<2x8x8xf32>, vector<2x8x8xf32> -> vector<2x8x8xf32>
    "tpu.trace_stop"() : () -> ()
    %86 = vector.shape_cast %85 : vector<2x8x8xf32> to vector<16x8xf32>
    %c120 = arith.constant 120 : index
    %c0_26 = arith.constant 0 : index
    %87 = vector.load %arg1[%c120, %c0_26] : memref<552x128xf32, #tpu.memory_space<vmem>>, vector<8x32xf32>
    %cst_27 = arith.constant dense<0.000000e+00> : vector<16x32xf32>
    %88 = tpu.matmul %86, %87, %cst_27 {dimension_numbers = #tpu.dot_dimension_numbers<[1], [0], [0], [1], [0, 0, 1, 1], [], []>} : vector<16x8xf32>, vector<8x32xf32>, vector<16x32xf32> -> vector<16x32xf32>
    %89 = vector.extract_strided_slice %42 {offsets = [0, 16], sizes = [16, 8], strides = [1, 1]} : vector<16x96xf32> to vector<16x8xf32>
    %90 = vector.shape_cast %89 : vector<16x8xf32> to vector<2x8x8xf32>
    %91 = vector.extract_strided_slice %42 {offsets = [0, 48], sizes = [16, 8], strides = [1, 1]} : vector<16x96xf32> to vector<16x8xf32>
    %92 = vector.shape_cast %91 : vector<16x8xf32> to vector<2x8x8xf32>
    %93 = vector.extract_strided_slice %42 {offsets = [0, 80], sizes = [16, 8], strides = [1, 1]} : vector<16x96xf32> to vector<16x8xf32>
    %94 = vector.shape_cast %93 : vector<16x8xf32> to vector<2x8x8xf32>
    "tpu.trace_start"() <{level = 10 : i32, message = "btd,bsd->bts"}> : () -> ()
    %cst_28 = arith.constant dense<0.000000e+00> : vector<2x8x8xf32>
    %95 = tpu.matmul %90, %92, %cst_28 {dimension_numbers = #tpu.dot_dimension_numbers<[2], [2], [1], [1], [0, 0, 0, 1, 1, 1], [0], [0]>} : vector<2x8x8xf32>, vector<2x8x8xf32>, vector<2x8x8xf32> -> vector<2x8x8xf32>
    "tpu.trace_stop"() : () -> ()
    %cst_29 = arith.constant 0.353553385 : f32
    %96 = vector.broadcast %cst_29 : f32 to vector<2x8x8xf32>
    %97 = arith.mulf %95, %96 : vector<2x8x8xf32>
    %cst_30 = arith.constant dense<0xFF800000> : vector<2x8xf32>
    %98 = vector.multi_reduction <maximumf>, %97, %cst_30 [2] : vector<2x8x8xf32> to vector<2x8xf32>
    %99 = vector.shape_cast %98 : vector<2x8xf32> to vector<2x8x1xf32>
    %100 = vector.broadcast %99 : vector<2x8x1xf32> to vector<2x8x8xf32>
    %101 = arith.subf %97, %100 : vector<2x8x8xf32>
    %102 = math.exp %101 : vector<2x8x8xf32>
    %cst_31 = arith.constant dense<0.000000e+00> : vector<2x8xf32>
    %103 = vector.multi_reduction <add>, %102, %cst_31 [2] : vector<2x8x8xf32> to vector<2x8xf32>
    %104 = vector.shape_cast %103 : vector<2x8xf32> to vector<2x8x1xf32>
    %105 = tpu.reciprocal %104 {approx = true} : vector<2x8x1xf32> -> vector<2x8x1xf32>
    %106 = vector.broadcast %105 : vector<2x8x1xf32> to vector<2x8x8xf32>
    %107 = arith.mulf %102, %106 : vector<2x8x8xf32>
    "tpu.trace_start"() <{level = 10 : i32, message = "bts,bsd->btd"}> : () -> ()
    %cst_32 = arith.constant dense<0.000000e+00> : vector<2x8x8xf32>
    %108 = tpu.matmul %107, %94, %cst_32 {dimension_numbers = #tpu.dot_dimension_numbers<[2], [1], [1], [2], [0, 0, 0, 1, 1, 2], [0], [0]>} : vector<2x8x8xf32>, vector<2x8x8xf32>, vector<2x8x8xf32> -> vector<2x8x8xf32>
    "tpu.trace_stop"() : () -> ()
    %109 = vector.shape_cast %108 : vector<2x8x8xf32> to vector<16x8xf32>
    %c128 = arith.constant 128 : index
    %c0_33 = arith.constant 0 : index
    %110 = vector.load %arg1[%c128, %c0_33] : memref<552x128xf32, #tpu.memory_space<vmem>>, vector<8x32xf32>
    %cst_34 = arith.constant dense<0.000000e+00> : vector<16x32xf32>
    %111 = tpu.matmul %109, %110, %cst_34 {dimension_numbers = #tpu.dot_dimension_numbers<[1], [0], [0], [1], [0, 0, 1, 1], [], []>} : vector<16x8xf32>, vector<8x32xf32>, vector<16x32xf32> -> vector<16x32xf32>
    %112 = vector.extract_strided_slice %42 {offsets = [0, 24], sizes = [16, 8], strides = [1, 1]} : vector<16x96xf32> to vector<16x8xf32>
    %113 = vector.shape_cast %112 : vector<16x8xf32> to vector<2x8x8xf32>
    %114 = vector.extract_strided_slice %42 {offsets = [0, 56], sizes = [16, 8], strides = [1, 1]} : vector<16x96xf32> to vector<16x8xf32>
    %115 = vector.shape_cast %114 : vector<16x8xf32> to vector<2x8x8xf32>
    %116 = vector.extract_strided_slice %42 {offsets = [0, 88], sizes = [16, 8], strides = [1, 1]} : vector<16x96xf32> to vector<16x8xf32>
    %117 = vector.shape_cast %116 : vector<16x8xf32> to vector<2x8x8xf32>
    "tpu.trace_start"() <{level = 10 : i32, message = "btd,bsd->bts"}> : () -> ()
    %cst_35 = arith.constant dense<0.000000e+00> : vector<2x8x8xf32>
    %118 = tpu.matmul %113, %115, %cst_35 {dimension_numbers = #tpu.dot_dimension_numbers<[2], [2], [1], [1], [0, 0, 0, 1, 1, 1], [0], [0]>} : vector<2x8x8xf32>, vector<2x8x8xf32>, vector<2x8x8xf32> -> vector<2x8x8xf32>
    "tpu.trace_stop"() : () -> ()
    %cst_36 = arith.constant 0.353553385 : f32
    %119 = vector.broadcast %cst_36 : f32 to vector<2x8x8xf32>
    %120 = arith.mulf %118, %119 : vector<2x8x8xf32>
    %cst_37 = arith.constant dense<0xFF800000> : vector<2x8xf32>
    %121 = vector.multi_reduction <maximumf>, %120, %cst_37 [2] : vector<2x8x8xf32> to vector<2x8xf32>
    %122 = vector.shape_cast %121 : vector<2x8xf32> to vector<2x8x1xf32>
    %123 = vector.broadcast %122 : vector<2x8x1xf32> to vector<2x8x8xf32>
    %124 = arith.subf %120, %123 : vector<2x8x8xf32>
    %125 = math.exp %124 : vector<2x8x8xf32>
    %cst_38 = arith.constant dense<0.000000e+00> : vector<2x8xf32>
    %126 = vector.multi_reduction <add>, %125, %cst_38 [2] : vector<2x8x8xf32> to vector<2x8xf32>
    %127 = vector.shape_cast %126 : vector<2x8xf32> to vector<2x8x1xf32>
    %128 = tpu.reciprocal %127 {approx = true} : vector<2x8x1xf32> -> vector<2x8x1xf32>
    %129 = vector.broadcast %128 : vector<2x8x1xf32> to vector<2x8x8xf32>
    %130 = arith.mulf %125, %129 : vector<2x8x8xf32>
    "tpu.trace_start"() <{level = 10 : i32, message = "bts,bsd->btd"}> : () -> ()
    %cst_39 = arith.constant dense<0.000000e+00> : vector<2x8x8xf32>
    %131 = tpu.matmul %130, %117, %cst_39 {dimension_numbers = #tpu.dot_dimension_numbers<[2], [1], [1], [2], [0, 0, 0, 1, 1, 2], [0], [0]>} : vector<2x8x8xf32>, vector<2x8x8xf32>, vector<2x8x8xf32> -> vector<2x8x8xf32>
    "tpu.trace_stop"() : () -> ()
    %132 = vector.shape_cast %131 : vector<2x8x8xf32> to vector<16x8xf32>
    %c136 = arith.constant 136 : index
    %c0_40 = arith.constant 0 : index
    %133 = vector.load %arg1[%c136, %c0_40] : memref<552x128xf32, #tpu.memory_space<vmem>>, vector<8x32xf32>
    %cst_41 = arith.constant dense<0.000000e+00> : vector<16x32xf32>
    %134 = tpu.matmul %132, %133, %cst_41 {dimension_numbers = #tpu.dot_dimension_numbers<[1], [0], [0], [1], [0, 0, 1, 1], [], []>} : vector<16x8xf32>, vector<8x32xf32>, vector<16x32xf32> -> vector<16x32xf32>
    %135 = arith.addf %65, %88 : vector<16x32xf32>
    %136 = arith.addf %111, %134 : vector<16x32xf32>
    %137 = arith.addf %135, %136 : vector<16x32xf32>
    %138 = arith.addf %13, %137 : vector<16x32xf32>
    %c307 = arith.constant 307 : index
    %c0_42 = arith.constant 0 : index
    %139 = vector.load %arg1[%c307, %c0_42] : memref<552x128xf32, #tpu.memory_space<vmem>>, vector<1x32xf32>
    %140 = vector.broadcast %139 : vector<1x32xf32> to vector<16x32xf32>
    %141 = arith.addf %138, %140 : vector<16x32xf32>
    %c308 = arith.constant 308 : index
    %c0_43 = arith.constant 0 : index
    %142 = vector.load %arg1[%c308, %c0_43] : memref<552x128xf32, #tpu.memory_space<vmem>>, vector<1x32xf32>
    %c309 = arith.constant 309 : index
    %c0_44 = arith.constant 0 : index
    %143 = vector.load %arg1[%c309, %c0_44] : memref<552x128xf32, #tpu.memory_space<vmem>>, vector<1x32xf32>
    %cst_45 = arith.constant dense<0.000000e+00> : vector<16xf32>
    %144 = vector.multi_reduction <add>, %141, %cst_45 [1] : vector<16x32xf32> to vector<16xf32>
    %145 = vector.shape_cast %144 : vector<16xf32> to vector<16x1xf32>
    %cst_46 = arith.constant 3.125000e-02 : f32
    %146 = vector.broadcast %cst_46 : f32 to vector<16x1xf32>
    %147 = arith.mulf %145, %146 : vector<16x1xf32>
    %148 = arith.mulf %141, %141 : vector<16x32xf32>
    %cst_47 = arith.constant dense<0.000000e+00> : vector<16xf32>
    %149 = vector.multi_reduction <add>, %148, %cst_47 [1] : vector<16x32xf32> to vector<16xf32>
    %150 = vector.shape_cast %149 : vector<16xf32> to vector<16x1xf32>
    %cst_48 = arith.constant 3.125000e-02 : f32
    %151 = vector.broadcast %cst_48 : f32 to vector<16x1xf32>
    %152 = arith.mulf %150, %151 : vector<16x1xf32>
    %153 = arith.mulf %147, %147 : vector<16x1xf32>
    %154 = arith.subf %152, %153 : vector<16x1xf32>
    %155 = vector.broadcast %147 : vector<16x1xf32> to vector<16x32xf32>
    %156 = arith.subf %141, %155 : vector<16x32xf32>
    %cst_49 = arith.constant 9.99999974E-6 : f32
    %157 = vector.broadcast %cst_49 : f32 to vector<16x1xf32>
    %158 = arith.addf %154, %157 : vector<16x1xf32>
    %159 = math.rsqrt %158 : vector<16x1xf32>
    %160 = vector.broadcast %159 : vector<16x1xf32> to vector<16x32xf32>
    %161 = arith.mulf %156, %160 : vector<16x32xf32>
    %162 = vector.broadcast %142 : vector<1x32xf32> to vector<16x32xf32>
    %163 = arith.mulf %161, %162 : vector<16x32xf32>
    %164 = vector.broadcast %143 : vector<1x32xf32> to vector<16x32xf32>
    %165 = arith.addf %163, %164 : vector<16x32xf32>
    %c144 = arith.constant 144 : index
    %c0_50 = arith.constant 0 : index
    %166 = vector.load %arg1[%c144, %c0_50] : memref<552x128xf32, #tpu.memory_space<vmem>>, vector<32x128xf32>
    %cst_51 = arith.constant dense<0.000000e+00> : vector<16x128xf32>
    %167 = tpu.matmul %165, %166, %cst_51 {dimension_numbers = #tpu.dot_dimension_numbers<[1], [0], [0], [1], [0, 0, 1, 1], [], []>} : vector<16x32xf32>, vector<32x128xf32>, vector<16x128xf32> -> vector<16x128xf32>
    %c310 = arith.constant 310 : index
    %c0_52 = arith.constant 0 : index
    %168 = vector.load %arg1[%c310, %c0_52] : memref<552x128xf32, #tpu.memory_space<vmem>>, vector<1x128xf32>
    %169 = vector.broadcast %168 : vector<1x128xf32> to vector<16x128xf32>
    %170 = arith.addf %167, %169 : vector<16x128xf32>
    %cst_53 = arith.constant 5.000000e-01 : f32
    %171 = vector.broadcast %cst_53 : f32 to vector<16x128xf32>
    %172 = arith.mulf %171, %170 : vector<16x128xf32>
    %173 = arith.mulf %170, %170 : vector<16x128xf32>
    %174 = arith.mulf %173, %170 : vector<16x128xf32>
    %cst_54 = arith.constant 4.471500e-02 : f32
    %175 = vector.broadcast %cst_54 : f32 to vector<16x128xf32>
    %176 = arith.mulf %175, %174 : vector<16x128xf32>
    %177 = arith.addf %170, %176 : vector<16x128xf32>
    %cst_55 = arith.constant 0.797884583 : f32
    %178 = vector.broadcast %cst_55 : f32 to vector<16x128xf32>
    %179 = arith.mulf %178, %177 : vector<16x128xf32>
    %180 = math.tanh %179 : vector<16x128xf32>
    %cst_56 = arith.constant 1.000000e+00 : f32
    %181 = vector.broadcast %cst_56 : f32 to vector<16x128xf32>
    %182 = arith.addf %181, %180 : vector<16x128xf32>
    %183 = arith.mulf %172, %182 : vector<16x128xf32>
    %c176 = arith.constant 176 : index
    %c0_57 = arith.constant 0 : index
    %184 = vector.load %arg1[%c176, %c0_57] : memref<552x128xf32, #tpu.memory_space<vmem>>, vector<128x32xf32>
    %cst_58 = arith.constant dense<0.000000e+00> : vector<16x32xf32>
    %185 = tpu.matmul %183, %184, %cst_58 {dimension_numbers = #tpu.dot_dimension_numbers<[1], [0], [0], [1], [0, 0, 1, 1], [], []>} : vector<16x128xf32>, vector<128x32xf32>, vector<16x32xf32> -> vector<16x32xf32>
    %c311 = arith.constant 311 : index
    %c0_59 = arith.constant 0 : index
    %186 = vector.load %arg1[%c311, %c0_59] : memref<552x128xf32, #tpu.memory_space<vmem>>, vector<1x32xf32>
    %187 = vector.broadcast %186 : vector<1x32xf32> to vector<16x32xf32>
    %188 = arith.addf %185, %187 : vector<16x32xf32>
    %189 = arith.addf %141, %188 : vector<16x32xf32>
    %c536 = arith.constant 536 : index
    %c0_60 = arith.constant 0 : index
    %190 = vector.load %arg1[%c536, %c0_60] : memref<552x128xf32, #tpu.memory_space<vmem>>, vector<1x32xf32>
    %c537 = arith.constant 537 : index
    %c0_61 = arith.constant 0 : index
    %191 = vector.load %arg1[%c537, %c0_61] : memref<552x128xf32, #tpu.memory_space<vmem>>, vector<1x32xf32>
    %cst_62 = arith.constant dense<0.000000e+00> : vector<16xf32>
    %192 = vector.multi_reduction <add>, %189, %cst_62 [1] : vector<16x32xf32> to vector<16xf32>
    %193 = vector.shape_cast %192 : vector<16xf32> to vector<16x1xf32>
    %cst_63 = arith.constant 3.125000e-02 : f32
    %194 = vector.broadcast %cst_63 : f32 to vector<16x1xf32>
    %195 = arith.mulf %193, %194 : vector<16x1xf32>
    %196 = arith.mulf %189, %189 : vector<16x32xf32>
    %cst_64 = arith.constant dense<0.000000e+00> : vector<16xf32>
    %197 = vector.multi_reduction <add>, %196, %cst_64 [1] : vector<16x32xf32> to vector<16xf32>
    %198 = vector.shape_cast %197 : vector<16xf32> to vector<16x1xf32>
    %cst_65 = arith.constant 3.125000e-02 : f32
    %199 = vector.broadcast %cst_65 : f32 to vector<16x1xf32>
    %200 = arith.mulf %198, %199 : vector<16x1xf32>
    %201 = arith.mulf %195, %195 : vector<16x1xf32>
    %202 = arith.subf %200, %201 : vector<16x1xf32>
    %203 = vector.broadcast %195 : vector<16x1xf32> to vector<16x32xf32>
    %204 = arith.subf %189, %203 : vector<16x32xf32>
    %cst_66 = arith.constant 9.99999974E-6 : f32
    %205 = vector.broadcast %cst_66 : f32 to vector<16x1xf32>
    %206 = arith.addf %202, %205 : vector<16x1xf32>
    %207 = math.rsqrt %206 : vector<16x1xf32>
    %208 = vector.broadcast %207 : vector<16x1xf32> to vector<16x32xf32>
    %209 = arith.mulf %204, %208 : vector<16x32xf32>
    %210 = vector.broadcast %190 : vector<1x32xf32> to vector<16x32xf32>
    %211 = arith.mulf %209, %210 : vector<16x32xf32>
    %212 = vector.broadcast %191 : vector<1x32xf32> to vector<16x32xf32>
    %213 = arith.addf %211, %212 : vector<16x32xf32>
    %c312 = arith.constant 312 : index
    %c0_67 = arith.constant 0 : index
    %214 = vector.load %arg1[%c312, %c0_67] : memref<552x128xf32, #tpu.memory_space<vmem>>, vector<32x96xf32>
    %cst_68 = arith.constant dense<0.000000e+00> : vector<16x96xf32>
    %215 = tpu.matmul %213, %214, %cst_68 {dimension_numbers = #tpu.dot_dimension_numbers<[1], [0], [0], [1], [0, 0, 1, 1], [], []>} : vector<16x32xf32>, vector<32x96xf32>, vector<16x96xf32> -> vector<16x96xf32>
    %c538 = arith.constant 538 : index
    %c0_69 = arith.constant 0 : index
    %216 = vector.load %arg1[%c538, %c0_69] : memref<552x128xf32, #tpu.memory_space<vmem>>, vector<1x96xf32>
    %217 = vector.broadcast %216 : vector<1x96xf32> to vector<16x96xf32>
    %218 = arith.addf %215, %217 : vector<16x96xf32>
    %219 = vector.extract_strided_slice %218 {offsets = [0, 0], sizes = [16, 8], strides = [1, 1]} : vector<16x96xf32> to vector<16x8xf32>
    %220 = vector.shape_cast %219 : vector<16x8xf32> to vector<2x8x8xf32>
    %221 = vector.extract_strided_slice %218 {offsets = [0, 32], sizes = [16, 8], strides = [1, 1]} : vector<16x96xf32> to vector<16x8xf32>
    %222 = vector.shape_cast %221 : vector<16x8xf32> to vector<2x8x8xf32>
    %223 = vector.extract_strided_slice %218 {offsets = [0, 64], sizes = [16, 8], strides = [1, 1]} : vector<16x96xf32> to vector<16x8xf32>
    %224 = vector.shape_cast %223 : vector<16x8xf32> to vector<2x8x8xf32>
    "tpu.trace_start"() <{level = 10 : i32, message = "btd,bsd->bts"}> : () -> ()
    %cst_70 = arith.constant dense<0.000000e+00> : vector<2x8x8xf32>
    %225 = tpu.matmul %220, %222, %cst_70 {dimension_numbers = #tpu.dot_dimension_numbers<[2], [2], [1], [1], [0, 0, 0, 1, 1, 1], [0], [0]>} : vector<2x8x8xf32>, vector<2x8x8xf32>, vector<2x8x8xf32> -> vector<2x8x8xf32>
    "tpu.trace_stop"() : () -> ()
    %cst_71 = arith.constant 0.353553385 : f32
    %226 = vector.broadcast %cst_71 : f32 to vector<2x8x8xf32>
    %227 = arith.mulf %225, %226 : vector<2x8x8xf32>
    %cst_72 = arith.constant dense<0xFF800000> : vector<2x8xf32>
    %228 = vector.multi_reduction <maximumf>, %227, %cst_72 [2] : vector<2x8x8xf32> to vector<2x8xf32>
    %229 = vector.shape_cast %228 : vector<2x8xf32> to vector<2x8x1xf32>
    %230 = vector.broadcast %229 : vector<2x8x1xf32> to vector<2x8x8xf32>
    %231 = arith.subf %227, %230 : vector<2x8x8xf32>
    %232 = math.exp %231 : vector<2x8x8xf32>
    %cst_73 = arith.constant dense<0.000000e+00> : vector<2x8xf32>
    %233 = vector.multi_reduction <add>, %232, %cst_73 [2] : vector<2x8x8xf32> to vector<2x8xf32>
    %234 = vector.shape_cast %233 : vector<2x8xf32> to vector<2x8x1xf32>
    %235 = tpu.reciprocal %234 {approx = true} : vector<2x8x1xf32> -> vector<2x8x1xf32>
    %236 = vector.broadcast %235 : vector<2x8x1xf32> to vector<2x8x8xf32>
    %237 = arith.mulf %232, %236 : vector<2x8x8xf32>
    "tpu.trace_start"() <{level = 10 : i32, message = "bts,bsd->btd"}> : () -> ()
    %cst_74 = arith.constant dense<0.000000e+00> : vector<2x8x8xf32>
    %238 = tpu.matmul %237, %224, %cst_74 {dimension_numbers = #tpu.dot_dimension_numbers<[2], [1], [1], [2], [0, 0, 0, 1, 1, 2], [0], [0]>} : vector<2x8x8xf32>, vector<2x8x8xf32>, vector<2x8x8xf32> -> vector<2x8x8xf32>
    "tpu.trace_stop"() : () -> ()
    %239 = vector.shape_cast %238 : vector<2x8x8xf32> to vector<16x8xf32>
    %c344 = arith.constant 344 : index
    %c0_75 = arith.constant 0 : index
    %240 = vector.load %arg1[%c344, %c0_75] : memref<552x128xf32, #tpu.memory_space<vmem>>, vector<8x32xf32>
    %cst_76 = arith.constant dense<0.000000e+00> : vector<16x32xf32>
    %241 = tpu.matmul %239, %240, %cst_76 {dimension_numbers = #tpu.dot_dimension_numbers<[1], [0], [0], [1], [0, 0, 1, 1], [], []>} : vector<16x8xf32>, vector<8x32xf32>, vector<16x32xf32> -> vector<16x32xf32>
    %242 = vector.extract_strided_slice %218 {offsets = [0, 8], sizes = [16, 8], strides = [1, 1]} : vector<16x96xf32> to vector<16x8xf32>
    %243 = vector.shape_cast %242 : vector<16x8xf32> to vector<2x8x8xf32>
    %244 = vector.extract_strided_slice %218 {offsets = [0, 40], sizes = [16, 8], strides = [1, 1]} : vector<16x96xf32> to vector<16x8xf32>
    %245 = vector.shape_cast %244 : vector<16x8xf32> to vector<2x8x8xf32>
    %246 = vector.extract_strided_slice %218 {offsets = [0, 72], sizes = [16, 8], strides = [1, 1]} : vector<16x96xf32> to vector<16x8xf32>
    %247 = vector.shape_cast %246 : vector<16x8xf32> to vector<2x8x8xf32>
    "tpu.trace_start"() <{level = 10 : i32, message = "btd,bsd->bts"}> : () -> ()
    %cst_77 = arith.constant dense<0.000000e+00> : vector<2x8x8xf32>
    %248 = tpu.matmul %243, %245, %cst_77 {dimension_numbers = #tpu.dot_dimension_numbers<[2], [2], [1], [1], [0, 0, 0, 1, 1, 1], [0], [0]>} : vector<2x8x8xf32>, vector<2x8x8xf32>, vector<2x8x8xf32> -> vector<2x8x8xf32>
    "tpu.trace_stop"() : () -> ()
    %cst_78 = arith.constant 0.353553385 : f32
    %249 = vector.broadcast %cst_78 : f32 to vector<2x8x8xf32>
    %250 = arith.mulf %248, %249 : vector<2x8x8xf32>
    %cst_79 = arith.constant dense<0xFF800000> : vector<2x8xf32>
    %251 = vector.multi_reduction <maximumf>, %250, %cst_79 [2] : vector<2x8x8xf32> to vector<2x8xf32>
    %252 = vector.shape_cast %251 : vector<2x8xf32> to vector<2x8x1xf32>
    %253 = vector.broadcast %252 : vector<2x8x1xf32> to vector<2x8x8xf32>
    %254 = arith.subf %250, %253 : vector<2x8x8xf32>
    %255 = math.exp %254 : vector<2x8x8xf32>
    %cst_80 = arith.constant dense<0.000000e+00> : vector<2x8xf32>
    %256 = vector.multi_reduction <add>, %255, %cst_80 [2] : vector<2x8x8xf32> to vector<2x8xf32>
    %257 = vector.shape_cast %256 : vector<2x8xf32> to vector<2x8x1xf32>
    %258 = tpu.reciprocal %257 {approx = true} : vector<2x8x1xf32> -> vector<2x8x1xf32>
    %259 = vector.broadcast %258 : vector<2x8x1xf32> to vector<2x8x8xf32>
    %260 = arith.mulf %255, %259 : vector<2x8x8xf32>
    "tpu.trace_start"() <{level = 10 : i32, message = "bts,bsd->btd"}> : () -> ()
    %cst_81 = arith.constant dense<0.000000e+00> : vector<2x8x8xf32>
    %261 = tpu.matmul %260, %247, %cst_81 {dimension_numbers = #tpu.dot_dimension_numbers<[2], [1], [1], [2], [0, 0, 0, 1, 1, 2], [0], [0]>} : vector<2x8x8xf32>, vector<2x8x8xf32>, vector<2x8x8xf32> -> vector<2x8x8xf32>
    "tpu.trace_stop"() : () -> ()
    %262 = vector.shape_cast %261 : vector<2x8x8xf32> to vector<16x8xf32>
    %c352 = arith.constant 352 : index
    %c0_82 = arith.constant 0 : index
    %263 = vector.load %arg1[%c352, %c0_82] : memref<552x128xf32, #tpu.memory_space<vmem>>, vector<8x32xf32>
    %cst_83 = arith.constant dense<0.000000e+00> : vector<16x32xf32>
    %264 = tpu.matmul %262, %263, %cst_83 {dimension_numbers = #tpu.dot_dimension_numbers<[1], [0], [0], [1], [0, 0, 1, 1], [], []>} : vector<16x8xf32>, vector<8x32xf32>, vector<16x32xf32> -> vector<16x32xf32>
    %265 = vector.extract_strided_slice %218 {offsets = [0, 16], sizes = [16, 8], strides = [1, 1]} : vector<16x96xf32> to vector<16x8xf32>
    %266 = vector.shape_cast %265 : vector<16x8xf32> to vector<2x8x8xf32>
    %267 = vector.extract_strided_slice %218 {offsets = [0, 48], sizes = [16, 8], strides = [1, 1]} : vector<16x96xf32> to vector<16x8xf32>
    %268 = vector.shape_cast %267 : vector<16x8xf32> to vector<2x8x8xf32>
    %269 = vector.extract_strided_slice %218 {offsets = [0, 80], sizes = [16, 8], strides = [1, 1]} : vector<16x96xf32> to vector<16x8xf32>
    %270 = vector.shape_cast %269 : vector<16x8xf32> to vector<2x8x8xf32>
    "tpu.trace_start"() <{level = 10 : i32, message = "btd,bsd->bts"}> : () -> ()
    %cst_84 = arith.constant dense<0.000000e+00> : vector<2x8x8xf32>
    %271 = tpu.matmul %266, %268, %cst_84 {dimension_numbers = #tpu.dot_dimension_numbers<[2], [2], [1], [1], [0, 0, 0, 1, 1, 1], [0], [0]>} : vector<2x8x8xf32>, vector<2x8x8xf32>, vector<2x8x8xf32> -> vector<2x8x8xf32>
    "tpu.trace_stop"() : () -> ()
    %cst_85 = arith.constant 0.353553385 : f32
    %272 = vector.broadcast %cst_85 : f32 to vector<2x8x8xf32>
    %273 = arith.mulf %271, %272 : vector<2x8x8xf32>
    %cst_86 = arith.constant dense<0xFF800000> : vector<2x8xf32>
    %274 = vector.multi_reduction <maximumf>, %273, %cst_86 [2] : vector<2x8x8xf32> to vector<2x8xf32>
    %275 = vector.shape_cast %274 : vector<2x8xf32> to vector<2x8x1xf32>
    %276 = vector.broadcast %275 : vector<2x8x1xf32> to vector<2x8x8xf32>
    %277 = arith.subf %273, %276 : vector<2x8x8xf32>
    %278 = math.exp %277 : vector<2x8x8xf32>
    %cst_87 = arith.constant dense<0.000000e+00> : vector<2x8xf32>
    %279 = vector.multi_reduction <add>, %278, %cst_87 [2] : vector<2x8x8xf32> to vector<2x8xf32>
    %280 = vector.shape_cast %279 : vector<2x8xf32> to vector<2x8x1xf32>
    %281 = tpu.reciprocal %280 {approx = true} : vector<2x8x1xf32> -> vector<2x8x1xf32>
    %282 = vector.broadcast %281 : vector<2x8x1xf32> to vector<2x8x8xf32>
    %283 = arith.mulf %278, %282 : vector<2x8x8xf32>
    "tpu.trace_start"() <{level = 10 : i32, message = "bts,bsd->btd"}> : () -> ()
    %cst_88 = arith.constant dense<0.000000e+00> : vector<2x8x8xf32>
    %284 = tpu.matmul %283, %270, %cst_88 {dimension_numbers = #tpu.dot_dimension_numbers<[2], [1], [1], [2], [0, 0, 0, 1, 1, 2], [0], [0]>} : vector<2x8x8xf32>, vector<2x8x8xf32>, vector<2x8x8xf32> -> vector<2x8x8xf32>
    "tpu.trace_stop"() : () -> ()
    %285 = vector.shape_cast %284 : vector<2x8x8xf32> to vector<16x8xf32>
    %c360 = arith.constant 360 : index
    %c0_89 = arith.constant 0 : index
    %286 = vector.load %arg1[%c360, %c0_89] : memref<552x128xf32, #tpu.memory_space<vmem>>, vector<8x32xf32>
    %cst_90 = arith.constant dense<0.000000e+00> : vector<16x32xf32>
    %287 = tpu.matmul %285, %286, %cst_90 {dimension_numbers = #tpu.dot_dimension_numbers<[1], [0], [0], [1], [0, 0, 1, 1], [], []>} : vector<16x8xf32>, vector<8x32xf32>, vector<16x32xf32> -> vector<16x32xf32>
    %288 = vector.extract_strided_slice %218 {offsets = [0, 24], sizes = [16, 8], strides = [1, 1]} : vector<16x96xf32> to vector<16x8xf32>
    %289 = vector.shape_cast %288 : vector<16x8xf32> to vector<2x8x8xf32>
    %290 = vector.extract_strided_slice %218 {offsets = [0, 56], sizes = [16, 8], strides = [1, 1]} : vector<16x96xf32> to vector<16x8xf32>
    %291 = vector.shape_cast %290 : vector<16x8xf32> to vector<2x8x8xf32>
    %292 = vector.extract_strided_slice %218 {offsets = [0, 88], sizes = [16, 8], strides = [1, 1]} : vector<16x96xf32> to vector<16x8xf32>
    %293 = vector.shape_cast %292 : vector<16x8xf32> to vector<2x8x8xf32>
    "tpu.trace_start"() <{level = 10 : i32, message = "btd,bsd->bts"}> : () -> ()
    %cst_91 = arith.constant dense<0.000000e+00> : vector<2x8x8xf32>
    %294 = tpu.matmul %289, %291, %cst_91 {dimension_numbers = #tpu.dot_dimension_numbers<[2], [2], [1], [1], [0, 0, 0, 1, 1, 1], [0], [0]>} : vector<2x8x8xf32>, vector<2x8x8xf32>, vector<2x8x8xf32> -> vector<2x8x8xf32>
    "tpu.trace_stop"() : () -> ()
    %cst_92 = arith.constant 0.353553385 : f32
    %295 = vector.broadcast %cst_92 : f32 to vector<2x8x8xf32>
    %296 = arith.mulf %294, %295 : vector<2x8x8xf32>
    %cst_93 = arith.constant dense<0xFF800000> : vector<2x8xf32>
    %297 = vector.multi_reduction <maximumf>, %296, %cst_93 [2] : vector<2x8x8xf32> to vector<2x8xf32>
    %298 = vector.shape_cast %297 : vector<2x8xf32> to vector<2x8x1xf32>
    %299 = vector.broadcast %298 : vector<2x8x1xf32> to vector<2x8x8xf32>
    %300 = arith.subf %296, %299 : vector<2x8x8xf32>
    %301 = math.exp %300 : vector<2x8x8xf32>
    %cst_94 = arith.constant dense<0.000000e+00> : vector<2x8xf32>
    %302 = vector.multi_reduction <add>, %301, %cst_94 [2] : vector<2x8x8xf32> to vector<2x8xf32>
    %303 = vector.shape_cast %302 : vector<2x8xf32> to vector<2x8x1xf32>
    %304 = tpu.reciprocal %303 {approx = true} : vector<2x8x1xf32> -> vector<2x8x1xf32>
    %305 = vector.broadcast %304 : vector<2x8x1xf32> to vector<2x8x8xf32>
    %306 = arith.mulf %301, %305 : vector<2x8x8xf32>
    "tpu.trace_start"() <{level = 10 : i32, message = "bts,bsd->btd"}> : () -> ()
    %cst_95 = arith.constant dense<0.000000e+00> : vector<2x8x8xf32>
    %307 = tpu.matmul %306, %293, %cst_95 {dimension_numbers = #tpu.dot_dimension_numbers<[2], [1], [1], [2], [0, 0, 0, 1, 1, 2], [0], [0]>} : vector<2x8x8xf32>, vector<2x8x8xf32>, vector<2x8x8xf32> -> vector<2x8x8xf32>
    "tpu.trace_stop"() : () -> ()
    %308 = vector.shape_cast %307 : vector<2x8x8xf32> to vector<16x8xf32>
    %c368 = arith.constant 368 : index
    %c0_96 = arith.constant 0 : index
    %309 = vector.load %arg1[%c368, %c0_96] : memref<552x128xf32, #tpu.memory_space<vmem>>, vector<8x32xf32>
    %cst_97 = arith.constant dense<0.000000e+00> : vector<16x32xf32>
    %310 = tpu.matmul %308, %309, %cst_97 {dimension_numbers = #tpu.dot_dimension_numbers<[1], [0], [0], [1], [0, 0, 1, 1], [], []>} : vector<16x8xf32>, vector<8x32xf32>, vector<16x32xf32> -> vector<16x32xf32>
    %311 = arith.addf %241, %264 : vector<16x32xf32>
    %312 = arith.addf %287, %310 : vector<16x32xf32>
    %313 = arith.addf %311, %312 : vector<16x32xf32>
    %314 = arith.addf %189, %313 : vector<16x32xf32>
    %c539 = arith.constant 539 : index
    %c0_98 = arith.constant 0 : index
    %315 = vector.load %arg1[%c539, %c0_98] : memref<552x128xf32, #tpu.memory_space<vmem>>, vector<1x32xf32>
    %316 = vector.broadcast %315 : vector<1x32xf32> to vector<16x32xf32>
    %317 = arith.addf %314, %316 : vector<16x32xf32>
    %c540 = arith.constant 540 : index
    %c0_99 = arith.constant 0 : index
    %318 = vector.load %arg1[%c540, %c0_99] : memref<552x128xf32, #tpu.memory_space<vmem>>, vector<1x32xf32>
    %c541 = arith.constant 541 : index
    %c0_100 = arith.constant 0 : index
    %319 = vector.load %arg1[%c541, %c0_100] : memref<552x128xf32, #tpu.memory_space<vmem>>, vector<1x32xf32>
    %cst_101 = arith.constant dense<0.000000e+00> : vector<16xf32>
    %320 = vector.multi_reduction <add>, %317, %cst_101 [1] : vector<16x32xf32> to vector<16xf32>
    %321 = vector.shape_cast %320 : vector<16xf32> to vector<16x1xf32>
    %cst_102 = arith.constant 3.125000e-02 : f32
    %322 = vector.broadcast %cst_102 : f32 to vector<16x1xf32>
    %323 = arith.mulf %321, %322 : vector<16x1xf32>
    %324 = arith.mulf %317, %317 : vector<16x32xf32>
    %cst_103 = arith.constant dense<0.000000e+00> : vector<16xf32>
    %325 = vector.multi_reduction <add>, %324, %cst_103 [1] : vector<16x32xf32> to vector<16xf32>
    %326 = vector.shape_cast %325 : vector<16xf32> to vector<16x1xf32>
    %cst_104 = arith.constant 3.125000e-02 : f32
    %327 = vector.broadcast %cst_104 : f32 to vector<16x1xf32>
    %328 = arith.mulf %326, %327 : vector<16x1xf32>
    %329 = arith.mulf %323, %323 : vector<16x1xf32>
    %330 = arith.subf %328, %329 : vector<16x1xf32>
    %331 = vector.broadcast %323 : vector<16x1xf32> to vector<16x32xf32>
    %332 = arith.subf %317, %331 : vector<16x32xf32>
    %cst_105 = arith.constant 9.99999974E-6 : f32
    %333 = vector.broadcast %cst_105 : f32 to vector<16x1xf32>
    %334 = arith.addf %330, %333 : vector<16x1xf32>
    %335 = math.rsqrt %334 : vector<16x1xf32>
    %336 = vector.broadcast %335 : vector<16x1xf32> to vector<16x32xf32>
    %337 = arith.mulf %332, %336 : vector<16x32xf32>
    %338 = vector.broadcast %318 : vector<1x32xf32> to vector<16x32xf32>
    %339 = arith.mulf %337, %338 : vector<16x32xf32>
    %340 = vector.broadcast %319 : vector<1x32xf32> to vector<16x32xf32>
    %341 = arith.addf %339, %340 : vector<16x32xf32>
    %c376 = arith.constant 376 : index
    %c0_106 = arith.constant 0 : index
    %342 = vector.load %arg1[%c376, %c0_106] : memref<552x128xf32, #tpu.memory_space<vmem>>, vector<32x128xf32>
    %cst_107 = arith.constant dense<0.000000e+00> : vector<16x128xf32>
    %343 = tpu.matmul %341, %342, %cst_107 {dimension_numbers = #tpu.dot_dimension_numbers<[1], [0], [0], [1], [0, 0, 1, 1], [], []>} : vector<16x32xf32>, vector<32x128xf32>, vector<16x128xf32> -> vector<16x128xf32>
    %c542 = arith.constant 542 : index
    %c0_108 = arith.constant 0 : index
    %344 = vector.load %arg1[%c542, %c0_108] : memref<552x128xf32, #tpu.memory_space<vmem>>, vector<1x128xf32>
    %345 = vector.broadcast %344 : vector<1x128xf32> to vector<16x128xf32>
    %346 = arith.addf %343, %345 : vector<16x128xf32>
    %cst_109 = arith.constant 5.000000e-01 : f32
    %347 = vector.broadcast %cst_109 : f32 to vector<16x128xf32>
    %348 = arith.mulf %347, %346 : vector<16x128xf32>
    %349 = arith.mulf %346, %346 : vector<16x128xf32>
    %350 = arith.mulf %349, %346 : vector<16x128xf32>
    %cst_110 = arith.constant 4.471500e-02 : f32
    %351 = vector.broadcast %cst_110 : f32 to vector<16x128xf32>
    %352 = arith.mulf %351, %350 : vector<16x128xf32>
    %353 = arith.addf %346, %352 : vector<16x128xf32>
    %cst_111 = arith.constant 0.797884583 : f32
    %354 = vector.broadcast %cst_111 : f32 to vector<16x128xf32>
    %355 = arith.mulf %354, %353 : vector<16x128xf32>
    %356 = math.tanh %355 : vector<16x128xf32>
    %cst_112 = arith.constant 1.000000e+00 : f32
    %357 = vector.broadcast %cst_112 : f32 to vector<16x128xf32>
    %358 = arith.addf %357, %356 : vector<16x128xf32>
    %359 = arith.mulf %348, %358 : vector<16x128xf32>
    %c408 = arith.constant 408 : index
    %c0_113 = arith.constant 0 : index
    %360 = vector.load %arg1[%c408, %c0_113] : memref<552x128xf32, #tpu.memory_space<vmem>>, vector<128x32xf32>
    %cst_114 = arith.constant dense<0.000000e+00> : vector<16x32xf32>
    %361 = tpu.matmul %359, %360, %cst_114 {dimension_numbers = #tpu.dot_dimension_numbers<[1], [0], [0], [1], [0, 0, 1, 1], [], []>} : vector<16x128xf32>, vector<128x32xf32>, vector<16x32xf32> -> vector<16x32xf32>
    %c543 = arith.constant 543 : index
    %c0_115 = arith.constant 0 : index
    %362 = vector.load %arg1[%c543, %c0_115] : memref<552x128xf32, #tpu.memory_space<vmem>>, vector<1x32xf32>
    %363 = vector.broadcast %362 : vector<1x32xf32> to vector<16x32xf32>
    %364 = arith.addf %361, %363 : vector<16x32xf32>
    %365 = arith.addf %317, %364 : vector<16x32xf32>
    %c544 = arith.constant 544 : index
    %c0_116 = arith.constant 0 : index
    %366 = vector.load %arg1[%c544, %c0_116] : memref<552x128xf32, #tpu.memory_space<vmem>>, vector<1x32xf32>
    %c545 = arith.constant 545 : index
    %c0_117 = arith.constant 0 : index
    %367 = vector.load %arg1[%c545, %c0_117] : memref<552x128xf32, #tpu.memory_space<vmem>>, vector<1x32xf32>
    %cst_118 = arith.constant dense<0.000000e+00> : vector<16xf32>
    %368 = vector.multi_reduction <add>, %365, %cst_118 [1] : vector<16x32xf32> to vector<16xf32>
    %369 = vector.shape_cast %368 : vector<16xf32> to vector<16x1xf32>
    %cst_119 = arith.constant 3.125000e-02 : f32
    %370 = vector.broadcast %cst_119 : f32 to vector<16x1xf32>
    %371 = arith.mulf %369, %370 : vector<16x1xf32>
    %372 = arith.mulf %365, %365 : vector<16x32xf32>
    %cst_120 = arith.constant dense<0.000000e+00> : vector<16xf32>
    %373 = vector.multi_reduction <add>, %372, %cst_120 [1] : vector<16x32xf32> to vector<16xf32>
    %374 = vector.shape_cast %373 : vector<16xf32> to vector<16x1xf32>
    %cst_121 = arith.constant 3.125000e-02 : f32
    %375 = vector.broadcast %cst_121 : f32 to vector<16x1xf32>
    %376 = arith.mulf %374, %375 : vector<16x1xf32>
    %377 = arith.mulf %371, %371 : vector<16x1xf32>
    %378 = arith.subf %376, %377 : vector<16x1xf32>
    %379 = vector.broadcast %371 : vector<16x1xf32> to vector<16x32xf32>
    %380 = arith.subf %365, %379 : vector<16x32xf32>
    %cst_122 = arith.constant 9.99999974E-6 : f32
    %381 = vector.broadcast %cst_122 : f32 to vector<16x1xf32>
    %382 = arith.addf %378, %381 : vector<16x1xf32>
    %383 = math.rsqrt %382 : vector<16x1xf32>
    %384 = vector.broadcast %383 : vector<16x1xf32> to vector<16x32xf32>
    %385 = arith.mulf %380, %384 : vector<16x32xf32>
    %386 = vector.broadcast %366 : vector<1x32xf32> to vector<16x32xf32>
    %387 = arith.mulf %385, %386 : vector<16x32xf32>
    %388 = vector.broadcast %367 : vector<1x32xf32> to vector<16x32xf32>
    %389 = arith.addf %387, %388 : vector<16x32xf32>
    %c0_123 = arith.constant 0 : index
    %c0_124 = arith.constant 0 : index
    %390 = vector.load %arg2[%c0_123, %c0_124] : memref<16x32xf32, #tpu.memory_space<vmem>>, vector<16x32xf32>
    tpu.vector_store %arg2[%c0_123, %c0_124], %389 {strides = array<i32>} : memref<16x32xf32, #tpu.memory_space<vmem>>, vector<16x32xf32>,
    return
  }
}

</mosaic_0001>

<llo_original>
// kernel: transformer_forward.1
$region0: #{transformer_forward.1}
  #allocation0 [shape = 'u32[]', space=smem, size = 0x4, offset = 0x4, fixed_abs, tag = 'smem constant byte address 0x4 - core index']
  #allocation1 [shape = 'u32[144,128]{1,0:T(1,128)}', space=vmem, size = 0x12000, scoped, tag = 'internal scratch']
  %s0 = inlined_call_operand.vmem [shape: s32[16,1], index: 0, kind: input, shape index: {}]
  %s1 = inlined_call_operand.hbm [shape: f32[552,128], index: 1, kind: input, shape index: {}]
  %s2 = inlined_call_operand.hbm [shape: f32[16,32], index: 2, kind: output, shape index: {}]
  %s3 = sld [smem:[#allocation0]]
  $region22: #{transformer_forward.1} parent=0
    _
  %s5 = ssub.s32 1, %s3
  %s6 = scalar_select 0, %s5, %s3
  $region1: #{transformer_forward.1} parent=0
    #allocation2 [shape = 'u8[282624]{0}', space=vmem, size = 0x45000, scoped, tag = 'input window, operand 1, single buffered']
    #allocation3 [shape = 's32[1]{0}', space=sflag, size = 0x4, scoped, tag = 'scoped memory for transformer_forward.1']
    #allocation4 [shape = 's32[1]{0}', space=sflag, size = 0x4, scoped, tag = 'scoped memory for transformer_forward.1']
    #allocation5 [shape = 'u8[8192]{0}', space=vmem, size = 0x2000, scoped, tag = 'output window, operand 0, single buffered']
    %7 = vsyncpa [#allocation3], 0
    %8 = vsyncpa [#allocation4], 0
    // Predicated region
    $region2: #{transformer_forward.1} parent=1 // pred_check
      _
    $region3: #{transformer_forward.1} parent=1 // pred_check_branch
      %10 = sbr.rel (0) target = $region5
    $region4: #{transformer_forward.1} parent=1 // pred_region
      _
    $region5: #{transformer_forward.1} parent=1 // pred_fallthru
      _
    // Predicated region
    $region6: #{transformer_forward.1} parent=1 // pred_check
      _
    $region7: #{transformer_forward.1} parent=1 // pred_check_branch
      %12 = sbr.rel (0) target = $region9
    $region8: #{transformer_forward.1} parent=1 // pred_region
      %s14 = ssub.s32 8832, 8832
      %15 = vsyncadd [#allocation3], %s14
      %s16 = sshll.u32 [#allocation2], 4
      %s17 = int_to_ptr.vmem [resolvable:$true] %s16
      %22 = dma.hbm_to_vmem [thread:$0]  %s1, 8832, %s17, [#allocation3], 128, 128, 8
    $region9: #{transformer_forward.1} parent=1 // pred_fallthru
      _
    // Predicated region
    $region10: #{transformer_forward.1} parent=1 // pred_check
      _
    $region11: #{transformer_forward.1} parent=1 // pred_check_branch
      %24 = sbr.rel (0) target = $region13
    $region12: #{transformer_forward.1} parent=1 // pred_region
      %25 = dma.done [#allocation3], 8832
    $region13: #{transformer_forward.1} parent=1 // pred_fallthru
      _
    %v26 = vld [vmem:[%s0] sm:$0xff]
    %v27 = vld [vmem:[%s0 + $0x8] sm:$0xff]
    %v28 = vlaneseq
    %v29 = vand.u32 %v28, 127
    %30 = vset.pattern.permute.xlu0 0
    %31 = vperm.xlu0 %30, %v26
    %v32 = vpop.permute.xlu0 %31
    %33 = vset.pattern.permute.xlu0 0
    %34 = vperm.xlu0 %33, %v27
    %v35 = vpop.permute.xlu0 %34
    %vm36 = vcmp.eq.s32.totalorder %v32, %v29
    %vm37 = vcmp.eq.s32.totalorder %v35, %v29
    %v38 = vsel %vm36, 1, 0
    %v39 = vsel %vm37, 1, 0
    %v40 = vcvt.s32.f32 %v38
    %v41 = vcvt.s32.f32 %v39
    %v42 = vld [vmem:[#allocation2] sm:$0xff]
    %v43 = vld [vmem:[#allocation2 + $0x8] sm:$0xff]
    %v44 = vld [vmem:[#allocation2 + $0x10] sm:$0xff]
    %v45 = vld [vmem:[#allocation2 + $0x18] sm:$0xff]
    %v46 = vld [vmem:[#allocation2 + $0x20] sm:$0xff]
    %v47 = vld [vmem:[#allocation2 + $0x28] sm:$0xff]
    %v48 = vld [vmem:[#allocation2 + $0x30] sm:$0xff]
    %v49 = vld [vmem:[#allocation2 + $0x38] sm:$0xff]
    %vm50 = vcmask 523264
    %v52 = vsel %vm50, %v40, 0
    %v55 = vsel %vm50, %v41, 0
    %57 = vmatprep.subr.mxu0 0.0
    %58 = vmatpush1.msra.mxu0 %v42
    %59 = vmatprep.subr.mxu0 0.0
    %60 = vmatpush1.msra.mxu0 %v43
    %61 = vmatprep.subr.mxu0 0.0
    %62 = vmatpush1.msra.mxu0 %v44
    %63 = vmatprep.subr.mxu0 0.0
    %64 = vmatpush1.msra.mxu0 %v45
    %65 = vmatprep.subr.mxu0 0.0
    %66 = vmatpush1.msra.mxu0 %v46
    %67 = vmatprep.subr.mxu0 0.0
    %68 = vmatpush1.msra.mxu0 %v47
    %69 = vmatprep.subr.mxu0 0.0
    %70 = vmatpush1.msra.mxu0 %v48
    %71 = vmatprep.subr.mxu0 0.0
    %72 = vmatpush1.msra.mxu0 %v49
    %73 = vmatprep.subr.mxu0 0.0
    %74 = vmatpush1.msra.mxu0 0.0
    %75 = vmatprep.subr.mxu0 0.0
    %76 = vmatpush1.msra.mxu0 0.0
    %77 = vmatprep.subr.mxu0 0.0
    %78 = vmatpush1.msra.mxu0 0.0
    %79 = vmatprep.subr.mxu0 0.0
    %80 = vmatpush1.msra.mxu0 0.0
    %81 = vmatprep.subr.mxu0 0.0
    %82 = vmatpush1.msra.mxu0 0.0
    %83 = vmatprep.subr.mxu0 0.0
    %84 = vmatpush1.msra.mxu0 0.0
    %85 = vmatprep.subr.mxu0 0.0
    %86 = vmatpush1.msra.mxu0 0.0
    %87 = vmatprep.subr.mxu0 0.0
    %88 = vmatpush1.msra.mxu0 0.0
    %89 = vmatprep.subr.mxu0 0.0
    %90 = vmatpush1.msra.mxu0 0.0
    %91 = vmatprep.subr.mxu0 0.0
    %92 = vmatpush1.msra.mxu0 0.0
    %93 = vmatprep.subr.mxu0 0.0
    %94 = vmatpush1.msra.mxu0 0.0
    %95 = vmatprep.subr.mxu0 0.0
    %96 = vmatpush1.msra.mxu0 0.0
    %97 = vmatprep.subr.mxu0 0.0
    %98 = vmatpush1.msra.mxu0 0.0
    %99 = vmatprep.subr.mxu0 0.0
    %100 = vmatpush1.msra.mxu0 0.0
    %101 = vmatprep.subr.mxu0 0.0
    %102 = vmatpush1.msra.mxu0 0.0
    %103 = vmatprep.subr.mxu0 0.0
    %104 = vmatpush1.msra.mxu0 0.0
    %105 = vmatprep.subr.mxu0 0.0
    %106 = vmatpush1.msra.mxu0 0.0
    %107 = vmatprep.subr.mxu0 0.0
    %108 = vmatpush1.msra.mxu0 0.0
    %109 = vmatprep.subr.mxu0 0.0
    %110 = vmatpush1.msra.mxu0 0.0
    %111 = vmatprep.subr.mxu0 0.0
    %112 = vmatpush1.msra.mxu0 0.0
    %113 = vmatprep.subr.mxu0 0.0
    %114 = vmatpush1.msra.mxu0 0.0
    %115 = vmatprep.subr.mxu0 0.0
    %116 = vmatpush1.msra.mxu0 0.0
    %117 = vmatprep.subr.mxu0 0.0
    %118 = vmatpush1.msra.mxu0 0.0
    %119 = vmatprep.subr.mxu0 0.0
    %120 = vmatpush1.msra.mxu0 0.0
    %121 = vmatprep.mubr.f32.mxu0 0.0
    %122 = vmatmul.mubr.f32.gmra.mrb[0].mxu0 %v52
    %v123 = vpop.f32.mrb[0].mxu0
    %v124 = vadd.f32 0.0, %v123
    %v125 = vpop.f32.mrb[0].mxu0
    %126 = vmatprep.mubr.f32.mxu0 0.0
    %127 = vmatmul.mubr.f32.gmra.mrb[0].mxu0 %v55
    %v128 = vpop.f32.mrb[0].mxu0
    %v129 = vadd.f32 0.0, %v128
    %v130 = vpop.f32.mrb[0].mxu0
    %131 = vdwg.mxu0
    %v132 = vld [vmem:[#allocation2 + $0x40] sm:$0xff]
    %v133 = vadd.f32 %v124, %v132
    %v134 = vadd.f32 %v129, %v132
    %v135 = vld [vmem:[#allocation2 + $0x130] sm:$0x1]
    %v136 = vld [vmem:[#allocation2 + $0x131] sm:$0x1]
    %vm137 = vcmask 261120
    %v138 = vsel %vm137, %v133, 0.0
    %139 = vadd.xlane.f32.xlu0 %v138
    %v140 = vpop.xlane.xlu0 %139
    %v141 = vsel %vm137, %v134, 0.0
    %142 = vadd.xlane.f32.xlu0 %v141
    %v143 = vpop.xlane.xlu0 %142
    %v144 = vmul.f32 %v140, 0.03125
    %v145 = vmul.f32 %v143, 0.03125
    %v146 = vmul.f32 %v133, %v133
    %v147 = vmul.f32 %v134, %v134
    %v148 = vsel %vm137, %v146, 0.0
    %149 = vadd.xlane.f32.xlu0 %v148
    %v150 = vpop.xlane.xlu0 %149
    %v151 = vsel %vm137, %v147, 0.0
    %152 = vadd.xlane.f32.xlu0 %v151
    %v153 = vpop.xlane.xlu0 %152
    %v154 = vmul.f32 %v150, 0.03125
    %v155 = vmul.f32 %v153, 0.03125
    %v156 = vmul.f32 %v144, %v144
    %v157 = vmul.f32 %v145, %v145
    %v158 = vsub.f32 %v154, %v156
    %v159 = vsub.f32 %v155, %v157
    %v160 = vsub.f32 %v133, %v144
    %v161 = vsub.f32 %v134, %v145
    %v162 = vadd.f32 %v158, 1e-05
    %v163 = vadd.f32 %v159, 1e-05
    %v164 = vrsqrt.pop %v162
    %v165 = vrsqrt.pop %v163
    %v166 = vmul.f32 %v160, %v164
    %v167 = vmul.f32 %v161, %v165
    %v168 = vlaneseq
    %v169 = vshrl.u32 %v168, 7
    %v170 = vsub.s32 0, %v169
    %v171 = vrot.slane %v135, %v170
    %v172 = vmul.f32 %v166, %v171
    %v173 = vmul.f32 %v167, %v171
    %v174 = vlaneseq
    %v175 = vshrl.u32 %v174, 7
    %v176 = vsub.s32 0, %v175
    %v177 = vrot.slane %v136, %v176
    %v178 = vadd.f32 %v172, %v177
    %v179 = vadd.f32 %v173, %v177
    %v180 = vld [vmem:[#allocation2 + $0x50] sm:$0xff]
    %v181 = vld [vmem:[#allocation2 + $0x58] sm:$0xff]
    %v182 = vld [vmem:[#allocation2 + $0x60] sm:$0xff]
    %v183 = vld [vmem:[#allocation2 + $0x68] sm:$0xff]
    %v184 = vld [vmem:[#allocation2 + $0x132] sm:$0x1]
    %v185 = vlaneseq
    %v186 = vshrl.u32 %v185, 7
    %v187 = vsub.s32 0, %v186
    %v188 = vrot.slane %v184, %v187
    %v190 = vsel %vm137, %v178, 0
    %v193 = vsel %vm137, %v179, 0
    %195 = vmatprep.subr.mxu0 0.0
    %196 = vmatpush1.msra.mxu0 %v180
    %197 = vmatprep.subr.mxu0 0.0
    %198 = vmatpush1.msra.mxu0 %v181
    %199 = vmatprep.subr.mxu0 0.0
    %200 = vmatpush1.msra.mxu0 %v182
    %201 = vmatprep.subr.mxu0 0.0
    %202 = vmatpush1.msra.mxu0 %v183
    %203 = vmatprep.subr.mxu0 0.0
    %204 = vmatpush1.msra.mxu0 0.0
    %205 = vmatprep.subr.mxu0 0.0
    %206 = vmatpush1.msra.mxu0 0.0
    %207 = vmatprep.subr.mxu0 0.0
    %208 = vmatpush1.msra.mxu0 0.0
    %209 = vmatprep.subr.mxu0 0.0
    %210 = vmatpush1.msra.mxu0 0.0
    %211 = vmatprep.subr.mxu0 0.0
    %212 = vmatpush1.msra.mxu0 0.0
    %213 = vmatprep.subr.mxu0 0.0
    %214 = vmatpush1.msra.mxu0 0.0
    %215 = vmatprep.subr.mxu0 0.0
    %216 = vmatpush1.msra.mxu0 0.0
    %217 = vmatprep.subr.mxu0 0.0
    %218 = vmatpush1.msra.mxu0 0.0
    %219 = vmatprep.subr.mxu0 0.0
    %220 = vmatpush1.msra.mxu0 0.0
    %221 = vmatprep.subr.mxu0 0.0
    %222 = vmatpush1.msra.mxu0 0.0
    %223 = vmatprep.subr.mxu0 0.0
    %224 = vmatpush1.msra.mxu0 0.0
    %225 = vmatprep.subr.mxu0 0.0
    %226 = vmatpush1.msra.mxu0 0.0
    %227 = vmatprep.subr.mxu0 0.0
    %228 = vmatpush1.msra.mxu0 0.0
    %229 = vmatprep.subr.mxu0 0.0
    %230 = vmatpush1.msra.mxu0 0.0
    %231 = vmatprep.subr.mxu0 0.0
    %232 = vmatpush1.msra.mxu0 0.0
    %233 = vmatprep.subr.mxu0 0.0
    %234 = vmatpush1.msra.mxu0 0.0
    %235 = vmatprep.subr.mxu0 0.0
    %236 = vmatpush1.msra.mxu0 0.0
    %237 = vmatprep.subr.mxu0 0.0
    %238 = vmatpush1.msra.mxu0 0.0
    %239 = vmatprep.subr.mxu0 0.0
    %240 = vmatpush1.msra.mxu0 0.0
    %241 = vmatprep.subr.mxu0 0.0
    %242 = vmatpush1.msra.mxu0 0.0
    %243 = vmatprep.subr.mxu0 0.0
    %244 = vmatpush1.msra.mxu0 0.0
    %245 = vmatprep.subr.mxu0 0.0
    %246 = vmatpush1.msra.mxu0 0.0
    %247 = vmatprep.subr.mxu0 0.0
    %248 = vmatpush1.msra.mxu0 0.0
    %249 = vmatprep.subr.mxu0 0.0
    %250 = vmatpush1.msra.mxu0 0.0
    %251 = vmatprep.subr.mxu0 0.0
    %252 = vmatpush1.msra.mxu0 0.0
    %253 = vmatprep.subr.mxu0 0.0
    %254 = vmatpush1.msra.mxu0 0.0
    %255 = vmatprep.subr.mxu0 0.0
    %256 = vmatpush1.msra.mxu0 0.0
    %257 = vmatprep.subr.mxu0 0.0
    %258 = vmatpush1.msra.mxu0 0.0
    %259 = vmatprep.mubr.f32.mxu0 0.0
    %260 = vmatmul.mubr.f32.gmra.mrb[0].mxu0 %v190
    %v261 = vpop.f32.mrb[0].mxu0
    %v262 = vadd.f32 %v188, %v261
    %v263 = vpop.f32.mrb[0].mxu0
    %264 = vmatprep.mubr.f32.mxu0 0.0
    %265 = vmatmul.mubr.f32.gmra.mrb[0].mxu0 %v193
    %v266 = vpop.f32.mrb[0].mxu0
    %v267 = vadd.f32 %v188, %v266
    %v268 = vpop.f32.mrb[0].mxu0
    %269 = vdwg.mxu0
    %271 = vrot.lane.b32.xlu0 %v262, 96
    %v272 = vpop.permute.xlu0 %271
    %vm273 = vcmask 64512
    %v274 = vsel %vm273, %v262, 0
    %v276 = vsel %vm273, %v272, 0
    %278 = vmatprep.subr.mxu0 0.0
    %279 = vmatpush1.xpose.msra.mxu0 %v276
    %280 = vmatprep.subr.mxu0 0.0
    %281 = vmatpush1.xpose.msra.mxu0 0.0
    %282 = vmatprep.subr.mxu0 0.0
    %283 = vmatpush1.xpose.msra.mxu0 0.0
    %284 = vmatprep.subr.mxu0 0.0
    %285 = vmatpush1.xpose.msra.mxu0 0.0
    %286 = vmatprep.subr.mxu0 0.0
    %287 = vmatpush1.xpose.msra.mxu0 0.0
    %288 = vmatprep.subr.mxu0 0.0
    %289 = vmatpush1.xpose.msra.mxu0 0.0
    %290 = vmatprep.subr.mxu0 0.0
    %291 = vmatpush1.xpose.msra.mxu0 0.0
    %292 = vmatprep.subr.mxu0 0.0
    %293 = vmatpush1.xpose.msra.mxu0 0.0
    %294 = vmatprep.subr.mxu0 0.0
    %295 = vmatpush1.xpose.msra.mxu0 0.0
    %296 = vmatprep.subr.mxu0 0.0
    %297 = vmatpush1.xpose.msra.mxu0 0.0
    %298 = vmatprep.subr.mxu0 0.0
    %299 = vmatpush1.xpose.msra.mxu0 0.0
    %300 = vmatprep.subr.mxu0 0.0
    %301 = vmatpush1.xpose.msra.mxu0 0.0
    %302 = vmatprep.subr.mxu0 0.0
    %303 = vmatpush1.xpose.msra.mxu0 0.0
    %304 = vmatprep.subr.mxu0 0.0
    %305 = vmatpush1.xpose.msra.mxu0 0.0
    %306 = vmatprep.subr.mxu0 0.0
    %307 = vmatpush1.xpose.msra.mxu0 0.0
    %308 = vmatprep.subr.mxu0 0.0
    %309 = vmatpush1.xpose.msra.mxu0 0.0
    %310 = vmatprep.subr.mxu0 0.0
    %311 = vmatpush1.xpose.msra.mxu0 0.0
    %312 = vmatprep.subr.mxu0 0.0
    %313 = vmatpush1.xpose.msra.mxu0 0.0
    %314 = vmatprep.subr.mxu0 0.0
    %315 = vmatpush1.xpose.msra.mxu0 0.0
    %316 = vmatprep.subr.mxu0 0.0
    %317 = vmatpush1.xpose.msra.mxu0 0.0
    %318 = vmatprep.subr.mxu0 0.0
    %319 = vmatpush1.xpose.msra.mxu0 0.0
    %320 = vmatprep.subr.mxu0 0.0
    %321 = vmatpush1.xpose.msra.mxu0 0.0
    %322 = vmatprep.subr.mxu0 0.0
    %323 = vmatpush1.xpose.msra.mxu0 0.0
    %324 = vmatprep.subr.mxu0 0.0
    %325 = vmatpush1.xpose.msra.mxu0 0.0
    %326 = vmatprep.subr.mxu0 0.0
    %327 = vmatpush1.xpose.msra.mxu0 0.0
    %328 = vmatprep.subr.mxu0 0.0
    %329 = vmatpush1.xpose.msra.mxu0 0.0
    %330 = vmatprep.subr.mxu0 0.0
    %331 = vmatpush1.xpose.msra.mxu0 0.0
    %332 = vmatprep.subr.mxu0 0.0
    %333 = vmatpush1.xpose.msra.mxu0 0.0
    %334 = vmatprep.subr.mxu0 0.0
    %335 = vmatpush1.xpose.msra.mxu0 0.0
    %336 = vmatprep.subr.mxu0 0.0
    %337 = vmatpush1.xpose.msra.mxu0 0.0
    %338 = vmatprep.subr.mxu0 0.0
    %339 = vmatpush1.xpose.msra.mxu0 0.0
    %340 = vmatprep.subr.mxu0 0.0
    %341 = vmatpush1.xpose.msra.mxu0 0.0
    %342 = vmatprep.mubr.f32.mxu0 0.0
    %343 = vmatmul.mubr.f32.gmra.mrb[0].mxu0 %v274
    %v344 = vpop.f32.mrb[0].mxu0
    %v345 = vadd.f32 0.0, %v344
    %v346 = vpop.f32.mrb[0].mxu0
    %347 = vdwg.mxu0
    %349 = vrot.lane.b32.xlu0 %v267, 96
    %v350 = vpop.permute.xlu0 %349
    %v351 = vsel %vm273, %v267, 0
    %v353 = vsel %vm273, %v350, 0
    %355 = vmatprep.subr.mxu0 0.0
    %356 = vmatpush1.xpose.msra.mxu0 %v353
    %357 = vmatprep.subr.mxu0 0.0
    %358 = vmatpush1.xpose.msra.mxu0 0.0
    %359 = vmatprep.subr.mxu0 0.0
    %360 = vmatpush1.xpose.msra.mxu0 0.0
    %361 = vmatprep.subr.mxu0 0.0
    %362 = vmatpush1.xpose.msra.mxu0 0.0
    %363 = vmatprep.subr.mxu0 0.0
    %364 = vmatpush1.xpose.msra.mxu0 0.0
    %365 = vmatprep.subr.mxu0 0.0
    %366 = vmatpush1.xpose.msra.mxu0 0.0
    %367 = vmatprep.subr.mxu0 0.0
    %368 = vmatpush1.xpose.msra.mxu0 0.0
    %369 = vmatprep.subr.mxu0 0.0
    %370 = vmatpush1.xpose.msra.mxu0 0.0
    %371 = vmatprep.subr.mxu0 0.0
    %372 = vmatpush1.xpose.msra.mxu0 0.0
    %373 = vmatprep.subr.mxu0 0.0
    %374 = vmatpush1.xpose.msra.mxu0 0.0
    %375 = vmatprep.subr.mxu0 0.0
    %376 = vmatpush1.xpose.msra.mxu0 0.0
    %377 = vmatprep.subr.mxu0 0.0
    %378 = vmatpush1.xpose.msra.mxu0 0.0
    %379 = vmatprep.subr.mxu0 0.0
    %380 = vmatpush1.xpose.msra.mxu0 0.0
    %381 = vmatprep.subr.mxu0 0.0
    %382 = vmatpush1.xpose.msra.mxu0 0.0
    %383 = vmatprep.subr.mxu0 0.0
    %384 = vmatpush1.xpose.msra.mxu0 0.0
    %385 = vmatprep.subr.mxu0 0.0
    %386 = vmatpush1.xpose.msra.mxu0 0.0
    %387 = vmatprep.subr.mxu0 0.0
    %388 = vmatpush1.xpose.msra.mxu0 0.0
    %389 = vmatprep.subr.mxu0 0.0
    %390 = vmatpush1.xpose.msra.mxu0 0.0
    %391 = vmatprep.subr.mxu0 0.0
    %392 = vmatpush1.xpose.msra.mxu0 0.0
    %393 = vmatprep.subr.mxu0 0.0
    %394 = vmatpush1.xpose.msra.mxu0 0.0
    %395 = vmatprep.subr.mxu0 0.0
    %396 = vmatpush1.xpose.msra.mxu0 0.0
    %397 = vmatprep.subr.mxu0 0.0
    %398 = vmatpush1.xpose.msra.mxu0 0.0
    %399 = vmatprep.subr.mxu0 0.0
    %400 = vmatpush1.xpose.msra.mxu0 0.0
    %401 = vmatprep.subr.mxu0 0.0
    %402 = vmatpush1.xpose.msra.mxu0 0.0
    %403 = vmatprep.subr.mxu0 0.0
    %404 = vmatpush1.xpose.msra.mxu0 0.0
    %405 = vmatprep.subr.mxu0 0.0
    %406 = vmatpush1.xpose.msra.mxu0 0.0
    %407 = vmatprep.subr.mxu0 0.0
    %408 = vmatpush1.xpose.msra.mxu0 0.0
    %409 = vmatprep.subr.mxu0 0.0
    %410 = vmatpush1.xpose.msra.mxu0 0.0
    %411 = vmatprep.subr.mxu0 0.0
    %412 = vmatpush1.xpose.msra.mxu0 0.0
    %413 = vmatprep.subr.mxu0 0.0
    %414 = vmatpush1.xpose.msra.mxu0 0.0
    %415 = vmatprep.subr.mxu0 0.0
    %416 = vmatpush1.xpose.msra.mxu0 0.0
    %417 = vmatprep.subr.mxu0 0.0
    %418 = vmatpush1.xpose.msra.mxu0 0.0
    %419 = vmatprep.mubr.f32.mxu0 0.0
    %420 = vmatmul.mubr.f32.gmra.mrb[0].mxu0 %v351
    %v421 = vpop.f32.mrb[0].mxu0
    %v422 = vadd.f32 0.0, %v421
    %v423 = vpop.f32.mrb[0].mxu0
    %424 = vdwg.mxu0
    %v425 = vmul.f32 %v345, 0.35355338
    %v426 = vmul.f32 %v422, 0.35355338
    %v427 = vsel %vm273, %v425, -inf
    %428 = vmax.xlane.f32.xlu0 %v427
    %v429 = vpop.xlane.xlu0 %428
    %v430 = vsel %vm273, %v426, -inf
    %431 = vmax.xlane.f32.xlu0 %v430
    %v432 = vpop.xlane.xlu0 %431
    %v433 = vsub.f32 %v425, %v429
    %v434 = vsub.f32 %v426, %v432
    %v435 = vmul.f32 %v433, 1.442695
    %v436 = vpow.pop %v435
    %v437 = vmul.f32 %v434, 1.442695
    %v438 = vpow.pop %v437
    %v439 = vsel %vm273, %v436, 0.0
    %440 = vadd.xlane.f32.xlu0 %v439
    %v441 = vpop.xlane.xlu0 %440
    %v442 = vsel %vm273, %v438, 0.0
    %443 = vadd.xlane.f32.xlu0 %v442
    %v444 = vpop.xlane.xlu0 %443
    %v445 = vrcp.pop %v441
    %v446 = vrcp.pop %v444
    %v447 = vmul.f32 %v436, %v445
    %v448 = vmul.f32 %v438, %v446
    %449 = vrot.lane.b32.xlu0 %v262, 64
    %v450 = vpop.permute.xlu0 %449
    %v453 = vsel %vm273, %v447, 0
    %455 = vmatprep.subr.mxu0 0.0
    %456 = vmatpush1.msra.mxu0 %v450
    %457 = vmatprep.subr.mxu0 0.0
    %458 = vmatpush1.msra.mxu0 0.0
    %459 = vmatprep.subr.mxu0 0.0
    %460 = vmatpush1.msra.mxu0 0.0
    %461 = vmatprep.subr.mxu0 0.0
    %462 = vmatpush1.msra.mxu0 0.0
    %463 = vmatprep.subr.mxu0 0.0
    %464 = vmatpush1.msra.mxu0 0.0
    %465 = vmatprep.subr.mxu0 0.0
    %466 = vmatpush1.msra.mxu0 0.0
    %467 = vmatprep.subr.mxu0 0.0
    %468 = vmatpush1.msra.mxu0 0.0
    %469 = vmatprep.subr.mxu0 0.0
    %470 = vmatpush1.msra.mxu0 0.0
    %471 = vmatprep.subr.mxu0 0.0
    %472 = vmatpush1.msra.mxu0 0.0
    %473 = vmatprep.subr.mxu0 0.0
    %474 = vmatpush1.msra.mxu0 0.0
    %475 = vmatprep.subr.mxu0 0.0
    %476 = vmatpush1.msra.mxu0 0.0
    %477 = vmatprep.subr.mxu0 0.0
    %478 = vmatpush1.msra.mxu0 0.0
    %479 = vmatprep.subr.mxu0 0.0
    %480 = vmatpush1.msra.mxu0 0.0
    %481 = vmatprep.subr.mxu0 0.0
    %482 = vmatpush1.msra.mxu0 0.0
    %483 = vmatprep.subr.mxu0 0.0
    %484 = vmatpush1.msra.mxu0 0.0
    %485 = vmatprep.subr.mxu0 0.0
    %486 = vmatpush1.msra.mxu0 0.0
    %487 = vmatprep.subr.mxu0 0.0
    %488 = vmatpush1.msra.mxu0 0.0
    %489 = vmatprep.subr.mxu0 0.0
    %490 = vmatpush1.msra.mxu0 0.0
    %491 = vmatprep.subr.mxu0 0.0
    %492 = vmatpush1.msra.mxu0 0.0
    %493 = vmatprep.subr.mxu0 0.0
    %494 = vmatpush1.msra.mxu0 0.0
    %495 = vmatprep.subr.mxu0 0.0
    %496 = vmatpush1.msra.mxu0 0.0
    %497 = vmatprep.subr.mxu0 0.0
    %498 = vmatpush1.msra.mxu0 0.0
    %499 = vmatprep.subr.mxu0 0.0
    %500 = vmatpush1.msra.mxu0 0.0
    %501 = vmatprep.subr.mxu0 0.0
    %502 = vmatpush1.msra.mxu0 0.0
    %503 = vmatprep.subr.mxu0 0.0
    %504 = vmatpush1.msra.mxu0 0.0
    %505 = vmatprep.subr.mxu0 0.0
    %506 = vmatpush1.msra.mxu0 0.0
    %507 = vmatprep.subr.mxu0 0.0
    %508 = vmatpush1.msra.mxu0 0.0
    %509 = vmatprep.subr.mxu0 0.0
    %510 = vmatpush1.msra.mxu0 0.0
    %511 = vmatprep.subr.mxu0 0.0
    %512 = vmatpush1.msra.mxu0 0.0
    %513 = vmatprep.subr.mxu0 0.0
    %514 = vmatpush1.msra.mxu0 0.0
    %515 = vmatprep.subr.mxu0 0.0
    %516 = vmatpush1.msra.mxu0 0.0
    %517 = vmatprep.subr.mxu0 0.0
    %518 = vmatpush1.msra.mxu0 0.0
    %519 = vmatprep.mubr.f32.mxu0 0.0
    %520 = vmatmul.mubr.f32.gmra.mrb[0].mxu0 %v453
    %v521 = vpop.f32.mrb[0].mxu0
    %v522 = vadd.f32 0.0, %v521
    %v523 = vpop.f32.mrb[0].mxu0
    %524 = vdwg.mxu0
    %525 = vrot.lane.b32.xlu0 %v267, 64
    %v526 = vpop.permute.xlu0 %525
    %v529 = vsel %vm273, %v448, 0
    %531 = vmatprep.subr.mxu0 0.0
    %532 = vmatpush1.msra.mxu0 %v526
    %533 = vmatprep.subr.mxu0 0.0
    %534 = vmatpush1.msra.mxu0 0.0
    %535 = vmatprep.subr.mxu0 0.0
    %536 = vmatpush1.msra.mxu0 0.0
    %537 = vmatprep.subr.mxu0 0.0
    %538 = vmatpush1.msra.mxu0 0.0
    %539 = vmatprep.subr.mxu0 0.0
    %540 = vmatpush1.msra.mxu0 0.0
    %541 = vmatprep.subr.mxu0 0.0
    %542 = vmatpush1.msra.mxu0 0.0
    %543 = vmatprep.subr.mxu0 0.0
    %544 = vmatpush1.msra.mxu0 0.0
    %545 = vmatprep.subr.mxu0 0.0
    %546 = vmatpush1.msra.mxu0 0.0
    %547 = vmatprep.subr.mxu0 0.0
    %548 = vmatpush1.msra.mxu0 0.0
    %549 = vmatprep.subr.mxu0 0.0
    %550 = vmatpush1.msra.mxu0 0.0
    %551 = vmatprep.subr.mxu0 0.0
    %552 = vmatpush1.msra.mxu0 0.0
    %553 = vmatprep.subr.mxu0 0.0
    %554 = vmatpush1.msra.mxu0 0.0
    %555 = vmatprep.subr.mxu0 0.0
    %556 = vmatpush1.msra.mxu0 0.0
    %557 = vmatprep.subr.mxu0 0.0
    %558 = vmatpush1.msra.mxu0 0.0
    %559 = vmatprep.subr.mxu0 0.0
    %560 = vmatpush1.msra.mxu0 0.0
    %561 = vmatprep.subr.mxu0 0.0
    %562 = vmatpush1.msra.mxu0 0.0
    %563 = vmatprep.subr.mxu0 0.0
    %564 = vmatpush1.msra.mxu0 0.0
    %565 = vmatprep.subr.mxu0 0.0
    %566 = vmatpush1.msra.mxu0 0.0
    %567 = vmatprep.subr.mxu0 0.0
    %568 = vmatpush1.msra.mxu0 0.0
    %569 = vmatprep.subr.mxu0 0.0
    %570 = vmatpush1.msra.mxu0 0.0
    %571 = vmatprep.subr.mxu0 0.0
    %572 = vmatpush1.msra.mxu0 0.0
    %573 = vmatprep.subr.mxu0 0.0
    %574 = vmatpush1.msra.mxu0 0.0
    %575 = vmatprep.subr.mxu0 0.0
    %576 = vmatpush1.msra.mxu0 0.0
    %577 = vmatprep.subr.mxu0 0.0
    %578 = vmatpush1.msra.mxu0 0.0
    %579 = vmatprep.subr.mxu0 0.0
    %580 = vmatpush1.msra.mxu0 0.0
    %581 = vmatprep.subr.mxu0 0.0
    %582 = vmatpush1.msra.mxu0 0.0
    %583 = vmatprep.subr.mxu0 0.0
    %584 = vmatpush1.msra.mxu0 0.0
    %585 = vmatprep.subr.mxu0 0.0
    %586 = vmatpush1.msra.mxu0 0.0
    %587 = vmatprep.subr.mxu0 0.0
    %588 = vmatpush1.msra.mxu0 0.0
    %589 = vmatprep.subr.mxu0 0.0
    %590 = vmatpush1.msra.mxu0 0.0
    %591 = vmatprep.subr.mxu0 0.0
    %592 = vmatpush1.msra.mxu0 0.0
    %593 = vmatprep.subr.mxu0 0.0
    %594 = vmatpush1.msra.mxu0 0.0
    %595 = vmatprep.mubr.f32.mxu0 0.0
    %596 = vmatmul.mubr.f32.gmra.mrb[0].mxu0 %v529
    %v597 = vpop.f32.mrb[0].mxu0
    %v598 = vadd.f32 0.0, %v597
    %v599 = vpop.f32.mrb[0].mxu0
    %600 = vdwg.mxu0
    %v601 = vld [vmem:[#allocation2 + $0x70] sm:$0xff]
    %602 = vrot.lane.b32.xlu0 %v262, 120
    %v603 = vpop.permute.xlu0 %602
    %604 = vrot.lane.b32.xlu0 %v262, 88
    %v605 = vpop.permute.xlu0 %604
    %v606 = vsel %vm273, %v603, 0
    %v608 = vsel %vm273, %v605, 0
    %610 = vmatprep.subr.mxu0 0.0
    %611 = vmatpush1.xpose.msra.mxu0 %v608
    %612 = vmatprep.subr.mxu0 0.0
    %613 = vmatpush1.xpose.msra.mxu0 0.0
    %614 = vmatprep.subr.mxu0 0.0
    %615 = vmatpush1.xpose.msra.mxu0 0.0
    %616 = vmatprep.subr.mxu0 0.0
    %617 = vmatpush1.xpose.msra.mxu0 0.0
    %618 = vmatprep.subr.mxu0 0.0
    %619 = vmatpush1.xpose.msra.mxu0 0.0
    %620 = vmatprep.subr.mxu0 0.0
    %621 = vmatpush1.xpose.msra.mxu0 0.0
    %622 = vmatprep.subr.mxu0 0.0
    %623 = vmatpush1.xpose.msra.mxu0 0.0
    %624 = vmatprep.subr.mxu0 0.0
    %625 = vmatpush1.xpose.msra.mxu0 0.0
    %626 = vmatprep.subr.mxu0 0.0
    %627 = vmatpush1.xpose.msra.mxu0 0.0
    %628 = vmatprep.subr.mxu0 0.0
    %629 = vmatpush1.xpose.msra.mxu0 0.0
    %630 = vmatprep.subr.mxu0 0.0
    %631 = vmatpush1.xpose.msra.mxu0 0.0
    %632 = vmatprep.subr.mxu0 0.0
    %633 = vmatpush1.xpose.msra.mxu0 0.0
    %634 = vmatprep.subr.mxu0 0.0
    %635 = vmatpush1.xpose.msra.mxu0 0.0
    %636 = vmatprep.subr.mxu0 0.0
    %637 = vmatpush1.xpose.msra.mxu0 0.0
    %638 = vmatprep.subr.mxu0 0.0
    %639 = vmatpush1.xpose.msra.mxu0 0.0
    %640 = vmatprep.subr.mxu0 0.0
    %641 = vmatpush1.xpose.msra.mxu0 0.0
    %642 = vmatprep.subr.mxu0 0.0
    %643 = vmatpush1.xpose.msra.mxu0 0.0
    %644 = vmatprep.subr.mxu0 0.0
    %645 = vmatpush1.xpose.msra.mxu0 0.0
    %646 = vmatprep.subr.mxu0 0.0
    %647 = vmatpush1.xpose.msra.mxu0 0.0
    %648 = vmatprep.subr.mxu0 0.0
    %649 = vmatpush1.xpose.msra.mxu0 0.0
    %650 = vmatprep.subr.mxu0 0.0
    %651 = vmatpush1.xpose.msra.mxu0 0.0
    %652 = vmatprep.subr.mxu0 0.0
    %653 = vmatpush1.xpose.msra.mxu0 0.0
    %654 = vmatprep.subr.mxu0 0.0
    %655 = vmatpush1.xpose.msra.mxu0 0.0
    %656 = vmatprep.subr.mxu0 0.0
    %657 = vmatpush1.xpose.msra.mxu0 0.0
    %658 = vmatprep.subr.mxu0 0.0
    %659 = vmatpush1.xpose.msra.mxu0 0.0
    %660 = vmatprep.subr.mxu0 0.0
    %661 = vmatpush1.xpose.msra.mxu0 0.0
    %662 = vmatprep.subr.mxu0 0.0
    %663 = vmatpush1.xpose.msra.mxu0 0.0
    %664 = vmatprep.subr.mxu0 0.0
    %665 = vmatpush1.xpose.msra.mxu0 0.0
    %666 = vmatprep.subr.mxu0 0.0
    %667 = vmatpush1.xpose.msra.mxu0 0.0
    %668 = vmatprep.subr.mxu0 0.0
    %669 = vmatpush1.xpose.msra.mxu0 0.0
    %670 = vmatprep.subr.mxu0 0.0
    %671 = vmatpush1.xpose.msra.mxu0 0.0
    %672 = vmatprep.subr.mxu0 0.0
    %673 = vmatpush1.xpose.msra.mxu0 0.0
    %674 = vmatprep.mubr.f32.mxu0 0.0
    %675 = vmatmul.mubr.f32.gmra.mrb[0].mxu0 %v606
    %v676 = vpop.f32.mrb[0].mxu0
    %v677 = vadd.f32 0.0, %v676
    %v678 = vpop.f32.mrb[0].mxu0
    %679 = vdwg.mxu0
    %680 = vrot.lane.b32.xlu0 %v267, 120
    %v681 = vpop.permute.xlu0 %680
    %682 = vrot.lane.b32.xlu0 %v267, 88
    %v683 = vpop.permute.xlu0 %682
    %v684 = vsel %vm273, %v681, 0
    %v686 = vsel %vm273, %v683, 0
    %688 = vmatprep.subr.mxu0 0.0
    %689 = vmatpush1.xpose.msra.mxu0 %v686
    %690 = vmatprep.subr.mxu0 0.0
    %691 = vmatpush1.xpose.msra.mxu0 0.0
    %692 = vmatprep.subr.mxu0 0.0
    %693 = vmatpush1.xpose.msra.mxu0 0.0
    %694 = vmatprep.subr.mxu0 0.0
    %695 = vmatpush1.xpose.msra.mxu0 0.0
    %696 = vmatprep.subr.mxu0 0.0
    %697 = vmatpush1.xpose.msra.mxu0 0.0
    %698 = vmatprep.subr.mxu0 0.0
    %699 = vmatpush1.xpose.msra.mxu0 0.0
    %700 = vmatprep.subr.mxu0 0.0
    %701 = vmatpush1.xpose.msra.mxu0 0.0
    %702 = vmatprep.subr.mxu0 0.0
    %703 = vmatpush1.xpose.msra.mxu0 0.0
    %704 = vmatprep.subr.mxu0 0.0
    %705 = vmatpush1.xpose.msra.mxu0 0.0
    %706 = vmatprep.subr.mxu0 0.0
    %707 = vmatpush1.xpose.msra.mxu0 0.0
    %708 = vmatprep.subr.mxu0 0.0
    %709 = vmatpush1.xpose.msra.mxu0 0.0
    %710 = vmatprep.subr.mxu0 0.0
    %711 = vmatpush1.xpose.msra.mxu0 0.0
    %712 = vmatprep.subr.mxu0 0.0
    %713 = vmatpush1.xpose.msra.mxu0 0.0
    %714 = vmatprep.subr.mxu0 0.0
    %715 = vmatpush1.xpose.msra.mxu0 0.0
    %716 = vmatprep.subr.mxu0 0.0
    %717 = vmatpush1.xpose.msra.mxu0 0.0
    %718 = vmatprep.subr.mxu0 0.0
    %719 = vmatpush1.xpose.msra.mxu0 0.0
    %720 = vmatprep.subr.mxu0 0.0
    %721 = vmatpush1.xpose.msra.mxu0 0.0
    %722 = vmatprep.subr.mxu0 0.0
    %723 = vmatpush1.xpose.msra.mxu0 0.0
    %724 = vmatprep.subr.mxu0 0.0
    %725 = vmatpush1.xpose.msra.mxu0 0.0
    %726 = vmatprep.subr.mxu0 0.0
    %727 = vmatpush1.xpose.msra.mxu0 0.0
    %728 = vmatprep.subr.mxu0 0.0
    %729 = vmatpush1.xpose.msra.mxu0 0.0
    %730 = vmatprep.subr.mxu0 0.0
    %731 = vmatpush1.xpose.msra.mxu0 0.0
    %732 = vmatprep.subr.mxu0 0.0
    %733 = vmatpush1.xpose.msra.mxu0 0.0
    %734 = vmatprep.subr.mxu0 0.0
    %735 = vmatpush1.xpose.msra.mxu0 0.0
    %736 = vmatprep.subr.mxu0 0.0
    %737 = vmatpush1.xpose.msra.mxu0 0.0
    %738 = vmatprep.subr.mxu0 0.0
    %739 = vmatpush1.xpose.msra.mxu0 0.0
    %740 = vmatprep.subr.mxu0 0.0
    %741 = vmatpush1.xpose.msra.mxu0 0.0
    %742 = vmatprep.subr.mxu0 0.0
    %743 = vmatpush1.xpose.msra.mxu0 0.0
    %744 = vmatprep.subr.mxu0 0.0
    %745 = vmatpush1.xpose.msra.mxu0 0.0
    %746 = vmatprep.subr.mxu0 0.0
    %747 = vmatpush1.xpose.msra.mxu0 0.0
    %748 = vmatprep.subr.mxu0 0.0
    %749 = vmatpush1.xpose.msra.mxu0 0.0
    %750 = vmatprep.subr.mxu0 0.0
    %751 = vmatpush1.xpose.msra.mxu0 0.0
    %752 = vmatprep.mubr.f32.mxu0 0.0
    %753 = vmatmul.mubr.f32.gmra.mrb[0].mxu0 %v684
    %v754 = vpop.f32.mrb[0].mxu0
    %v755 = vadd.f32 0.0, %v754
    %v756 = vpop.f32.mrb[0].mxu0
    %757 = vdwg.mxu0
    %v758 = vmul.f32 %v677, 0.35355338
    %v759 = vmul.f32 %v755, 0.35355338
    %v760 = vsel %vm273, %v758, -inf
    %761 = vmax.xlane.f32.xlu0 %v760
    %v762 = vpop.xlane.xlu0 %761
    %v763 = vsel %vm273, %v759, -inf
    %764 = vmax.xlane.f32.xlu0 %v763
    %v765 = vpop.xlane.xlu0 %764
    %v766 = vsub.f32 %v758, %v762
    %v767 = vsub.f32 %v759, %v765
    %v768 = vmul.f32 %v766, 1.442695
    %v769 = vpow.pop %v768
    %v770 = vmul.f32 %v767, 1.442695
    %v771 = vpow.pop %v770
    %v772 = vsel %vm273, %v769, 0.0
    %773 = vadd.xlane.f32.xlu0 %v772
    %v774 = vpop.xlane.xlu0 %773
    %v775 = vsel %vm273, %v771, 0.0
    %776 = vadd.xlane.f32.xlu0 %v775
    %v777 = vpop.xlane.xlu0 %776
    %v778 = vrcp.pop %v774
    %v779 = vrcp.pop %v777
    %v780 = vmul.f32 %v769, %v778
    %v781 = vmul.f32 %v771, %v779
    %782 = vrot.lane.b32.xlu0 %v262, 56
    %v783 = vpop.permute.xlu0 %782
    %v786 = vsel %vm273, %v780, 0
    %788 = vmatprep.subr.mxu0 0.0
    %789 = vmatpush1.msra.mxu0 %v783
    %790 = vmatprep.subr.mxu0 0.0
    %791 = vmatpush1.msra.mxu0 0.0
    %792 = vmatprep.subr.mxu0 0.0
    %793 = vmatpush1.msra.mxu0 0.0
    %794 = vmatprep.subr.mxu0 0.0
    %795 = vmatpush1.msra.mxu0 0.0
    %796 = vmatprep.subr.mxu0 0.0
    %797 = vmatpush1.msra.mxu0 0.0
    %798 = vmatprep.subr.mxu0 0.0
    %799 = vmatpush1.msra.mxu0 0.0
    %800 = vmatprep.subr.mxu0 0.0
    %801 = vmatpush1.msra.mxu0 0.0
    %802 = vmatprep.subr.mxu0 0.0
    %803 = vmatpush1.msra.mxu0 0.0
    %804 = vmatprep.subr.mxu0 0.0
    %805 = vmatpush1.msra.mxu0 0.0
    %806 = vmatprep.subr.mxu0 0.0
    %807 = vmatpush1.msra.mxu0 0.0
    %808 = vmatprep.subr.mxu0 0.0
    %809 = vmatpush1.msra.mxu0 0.0
    %810 = vmatprep.subr.mxu0 0.0
    %811 = vmatpush1.msra.mxu0 0.0
    %812 = vmatprep.subr.mxu0 0.0
    %813 = vmatpush1.msra.mxu0 0.0
    %814 = vmatprep.subr.mxu0 0.0
    %815 = vmatpush1.msra.mxu0 0.0
    %816 = vmatprep.subr.mxu0 0.0
    %817 = vmatpush1.msra.mxu0 0.0
    %818 = vmatprep.subr.mxu0 0.0
    %819 = vmatpush1.msra.mxu0 0.0
    %820 = vmatprep.subr.mxu0 0.0
    %821 = vmatpush1.msra.mxu0 0.0
    %822 = vmatprep.subr.mxu0 0.0
    %823 = vmatpush1.msra.mxu0 0.0
    %824 = vmatprep.subr.mxu0 0.0
    %825 = vmatpush1.msra.mxu0 0.0
    %826 = vmatprep.subr.mxu0 0.0
    %827 = vmatpush1.msra.mxu0 0.0
    %828 = vmatprep.subr.mxu0 0.0
    %829 = vmatpush1.msra.mxu0 0.0
    %830 = vmatprep.subr.mxu0 0.0
    %831 = vmatpush1.msra.mxu0 0.0
    %832 = vmatprep.subr.mxu0 0.0
    %833 = vmatpush1.msra.mxu0 0.0
    %834 = vmatprep.subr.mxu0 0.0
    %835 = vmatpush1.msra.mxu0 0.0
    %836 = vmatprep.subr.mxu0 0.0
    %837 = vmatpush1.msra.mxu0 0.0
    %838 = vmatprep.subr.mxu0 0.0
    %839 = vmatpush1.msra.mxu0 0.0
    %840 = vmatprep.subr.mxu0 0.0
    %841 = vmatpush1.msra.mxu0 0.0
    %842 = vmatprep.subr.mxu0 0.0
    %843 = vmatpush1.msra.mxu0 0.0
    %844 = vmatprep.subr.mxu0 0.0
    %845 = vmatpush1.msra.mxu0 0.0
    %846 = vmatprep.subr.mxu0 0.0
    %847 = vmatpush1.msra.mxu0 0.0
    %848 = vmatprep.subr.mxu0 0.0
    %849 = vmatpush1.msra.mxu0 0.0
    %850 = vmatprep.subr.mxu0 0.0
    %851 = vmatpush1.msra.mxu0 0.0
    %852 = vmatprep.mubr.f32.mxu0 0.0
    %853 = vmatmul.mubr.f32.gmra.mrb[0].mxu0 %v786
    %v854 = vpop.f32.mrb[0].mxu0
    %v855 = vadd.f32 0.0, %v854
    %v856 = vpop.f32.mrb[0].mxu0
    %857 = vdwg.mxu0
    %858 = vrot.lane.b32.xlu0 %v267, 56
    %v859 = vpop.permute.xlu0 %858
    %v862 = vsel %vm273, %v781, 0
    %864 = vmatprep.subr.mxu0 0.0
    %865 = vmatpush1.msra.mxu0 %v859
    %866 = vmatprep.subr.mxu0 0.0
    %867 = vmatpush1.msra.mxu0 0.0
    %868 = vmatprep.subr.mxu0 0.0
    %869 = vmatpush1.msra.mxu0 0.0
    %870 = vmatprep.subr.mxu0 0.0
    %871 = vmatpush1.msra.mxu0 0.0
    %872 = vmatprep.subr.mxu0 0.0
    %873 = vmatpush1.msra.mxu0 0.0
    %874 = vmatprep.subr.mxu0 0.0
    %875 = vmatpush1.msra.mxu0 0.0
    %876 = vmatprep.subr.mxu0 0.0
    %877 = vmatpush1.msra.mxu0 0.0
    %878 = vmatprep.subr.mxu0 0.0
    %879 = vmatpush1.msra.mxu0 0.0
    %880 = vmatprep.subr.mxu0 0.0
    %881 = vmatpush1.msra.mxu0 0.0
    %882 = vmatprep.subr.mxu0 0.0
    %883 = vmatpush1.msra.mxu0 0.0
    %884 = vmatprep.subr.mxu0 0.0
    %885 = vmatpush1.msra.mxu0 0.0
    %886 = vmatprep.subr.mxu0 0.0
    %887 = vmatpush1.msra.mxu0 0.0
    %888 = vmatprep.subr.mxu0 0.0
    %889 = vmatpush1.msra.mxu0 0.0
    %890 = vmatprep.subr.mxu0 0.0
    %891 = vmatpush1.msra.mxu0 0.0
    %892 = vmatprep.subr.mxu0 0.0
    %893 = vmatpush1.msra.mxu0 0.0
    %894 = vmatprep.subr.mxu0 0.0
    %895 = vmatpush1.msra.mxu0 0.0
    %896 = vmatprep.subr.mxu0 0.0
    %897 = vmatpush1.msra.mxu0 0.0
    %898 = vmatprep.subr.mxu0 0.0
    %899 = vmatpush1.msra.mxu0 0.0
    %900 = vmatprep.subr.mxu0 0.0
    %901 = vmatpush1.msra.mxu0 0.0
    %902 = vmatprep.subr.mxu0 0.0
    %903 = vmatpush1.msra.mxu0 0.0
    %904 = vmatprep.subr.mxu0 0.0
    %905 = vmatpush1.msra.mxu0 0.0
    %906 = vmatprep.subr.mxu0 0.0
    %907 = vmatpush1.msra.mxu0 0.0
    %908 = vmatprep.subr.mxu0 0.0
    %909 = vmatpush1.msra.mxu0 0.0
    %910 = vmatprep.subr.mxu0 0.0
    %911 = vmatpush1.msra.mxu0 0.0
    %912 = vmatprep.subr.mxu0 0.0
    %913 = vmatpush1.msra.mxu0 0.0
    %914 = vmatprep.subr.mxu0 0.0
    %915 = vmatpush1.msra.mxu0 0.0
    %916 = vmatprep.subr.mxu0 0.0
    %917 = vmatpush1.msra.mxu0 0.0
    %918 = vmatprep.subr.mxu0 0.0
    %919 = vmatpush1.msra.mxu0 0.0
    %920 = vmatprep.subr.mxu0 0.0
    %921 = vmatpush1.msra.mxu0 0.0
    %922 = vmatprep.subr.mxu0 0.0
    %923 = vmatpush1.msra.mxu0 0.0
    %924 = vmatprep.subr.mxu0 0.0
    %925 = vmatpush1.msra.mxu0 0.0
    %926 = vmatprep.subr.mxu0 0.0
    %927 = vmatpush1.msra.mxu0 0.0
    %928 = vmatprep.mubr.f32.mxu0 0.0
    %929 = vmatmul.mubr.f32.gmra.mrb[0].mxu0 %v862
    %v930 = vpop.f32.mrb[0].mxu0
    %v931 = vadd.f32 0.0, %v930
    %v932 = vpop.f32.mrb[0].mxu0
    %933 = vdwg.mxu0
    %v934 = vld [vmem:[#allocation2 + $0x78] sm:$0xff]
    %v936 = vsel %vm273, %v855, 0
    %v939 = vsel %vm273, %v931, 0
    %941 = vmatprep.subr.mxu0 0.0
    %942 = vmatpush1.msra.mxu0 %v934
    %943 = vmatprep.subr.mxu0 0.0
    %944 = vmatpush1.msra.mxu0 0.0
    %945 = vmatprep.subr.mxu0 0.0
    %946 = vmatpush1.msra.mxu0 0.0
    %947 = vmatprep.subr.mxu0 0.0
    %948 = vmatpush1.msra.mxu0 0.0
    %949 = vmatprep.subr.mxu0 0.0
    %950 = vmatpush1.msra.mxu0 0.0
    %951 = vmatprep.subr.mxu0 0.0
    %952 = vmatpush1.msra.mxu0 0.0
    %953 = vmatprep.subr.mxu0 0.0
    %954 = vmatpush1.msra.mxu0 0.0
    %955 = vmatprep.subr.mxu0 0.0
    %956 = vmatpush1.msra.mxu0 0.0
    %957 = vmatprep.subr.mxu0 0.0
    %958 = vmatpush1.msra.mxu0 0.0
    %959 = vmatprep.subr.mxu0 0.0
    %960 = vmatpush1.msra.mxu0 0.0
    %961 = vmatprep.subr.mxu0 0.0
    %962 = vmatpush1.msra.mxu0 0.0
    %963 = vmatprep.subr.mxu0 0.0
    %964 = vmatpush1.msra.mxu0 0.0
    %965 = vmatprep.subr.mxu0 0.0
    %966 = vmatpush1.msra.mxu0 0.0
    %967 = vmatprep.subr.mxu0 0.0
    %968 = vmatpush1.msra.mxu0 0.0
    %969 = vmatprep.subr.mxu0 0.0
    %970 = vmatpush1.msra.mxu0 0.0
    %971 = vmatprep.subr.mxu0 0.0
    %972 = vmatpush1.msra.mxu0 0.0
    %973 = vmatprep.subr.mxu0 0.0
    %974 = vmatpush1.msra.mxu0 0.0
    %975 = vmatprep.subr.mxu0 0.0
    %976 = vmatpush1.msra.mxu0 0.0
    %977 = vmatprep.subr.mxu0 0.0
    %978 = vmatpush1.msra.mxu0 0.0
    %979 = vmatprep.subr.mxu0 0.0
    %980 = vmatpush1.msra.mxu0 0.0
    %981 = vmatprep.subr.mxu0 0.0
    %982 = vmatpush1.msra.mxu0 0.0
    %983 = vmatprep.subr.mxu0 0.0
    %984 = vmatpush1.msra.mxu0 0.0
    %985 = vmatprep.subr.mxu0 0.0
    %986 = vmatpush1.msra.mxu0 0.0
    %987 = vmatprep.subr.mxu0 0.0
    %988 = vmatpush1.msra.mxu0 0.0
    %989 = vmatprep.subr.mxu0 0.0
    %990 = vmatpush1.msra.mxu0 0.0
    %991 = vmatprep.subr.mxu0 0.0
    %992 = vmatpush1.msra.mxu0 0.0
    %993 = vmatprep.subr.mxu0 0.0
    %994 = vmatpush1.msra.mxu0 0.0
    %995 = vmatprep.subr.mxu0 0.0
    %996 = vmatpush1.msra.mxu0 0.0
    %997 = vmatprep.subr.mxu0 0.0
    %998 = vmatpush1.msra.mxu0 0.0
    %999 = vmatprep.subr.mxu0 0.0
    %1000 = vmatpush1.msra.mxu0 0.0
    %1001 = vmatprep.subr.mxu0 0.0
    %1002 = vmatpush1.msra.mxu0 0.0
    %1003 = vmatprep.subr.mxu0 0.0
    %1004 = vmatpush1.msra.mxu0 0.0
    %1005 = vmatprep.mubr.f32.mxu0 0.0
    %1006 = vmatmul.mubr.f32.gmra.mrb[0].mxu0 %v936
    %v1007 = vpop.f32.mrb[0].mxu0
    %v1008 = vadd.f32 0.0, %v1007
    %v1009 = vpop.f32.mrb[0].mxu0
    %1010 = vmatprep.mubr.f32.mxu0 0.0
    %1011 = vmatmul.mubr.f32.gmra.mrb[0].mxu0 %v939
    %v1012 = vpop.f32.mrb[0].mxu0
    %v1013 = vadd.f32 0.0, %v1012
    %v1014 = vpop.f32.mrb[0].mxu0
    %1015 = vdwg.mxu0
    %1016 = vrot.lane.b32.xlu0 %v262, 112
    %v1017 = vpop.permute.xlu0 %1016
    %1018 = vrot.lane.b32.xlu0 %v262, 80
    %v1019 = vpop.permute.xlu0 %1018
    %v1020 = vsel %vm273, %v1017, 0
    %v1022 = vsel %vm273, %v1019, 0
    %1024 = vmatprep.subr.mxu0 0.0
    %1025 = vmatpush1.xpose.msra.mxu0 %v1022
    %1026 = vmatprep.subr.mxu0 0.0
    %1027 = vmatpush1.xpose.msra.mxu0 0.0
    %1028 = vmatprep.subr.mxu0 0.0
    %1029 = vmatpush1.xpose.msra.mxu0 0.0
    %1030 = vmatprep.subr.mxu0 0.0
    %1031 = vmatpush1.xpose.msra.mxu0 0.0
    %1032 = vmatprep.subr.mxu0 0.0
    %1033 = vmatpush1.xpose.msra.mxu0 0.0
    %1034 = vmatprep.subr.mxu0 0.0
    %1035 = vmatpush1.xpose.msra.mxu0 0.0
    %1036 = vmatprep.subr.mxu0 0.0
    %1037 = vmatpush1.xpose.msra.mxu0 0.0
    %1038 = vmatprep.subr.mxu0 0.0
    %1039 = vmatpush1.xpose.msra.mxu0 0.0
    %1040 = vmatprep.subr.mxu0 0.0
    %1041 = vmatpush1.xpose.msra.mxu0 0.0
    %1042 = vmatprep.subr.mxu0 0.0
    %1043 = vmatpush1.xpose.msra.mxu0 0.0
    %1044 = vmatprep.subr.mxu0 0.0
    %1045 = vmatpush1.xpose.msra.mxu0 0.0
    %1046 = vmatprep.subr.mxu0 0.0
    %1047 = vmatpush1.xpose.msra.mxu0 0.0
    %1048 = vmatprep.subr.mxu0 0.0
    %1049 = vmatpush1.xpose.msra.mxu0 0.0
    %1050 = vmatprep.subr.mxu0 0.0
    %1051 = vmatpush1.xpose.msra.mxu0 0.0
    %1052 = vmatprep.subr.mxu0 0.0
    %1053 = vmatpush1.xpose.msra.mxu0 0.0
    %1054 = vmatprep.subr.mxu0 0.0
    %1055 = vmatpush1.xpose.msra.mxu0 0.0
    %1056 = vmatprep.subr.mxu0 0.0
    %1057 = vmatpush1.xpose.msra.mxu0 0.0
    %1058 = vmatprep.subr.mxu0 0.0
    %1059 = vmatpush1.xpose.msra.mxu0 0.0
    %1060 = vmatprep.subr.mxu0 0.0
    %1061 = vmatpush1.xpose.msra.mxu0 0.0
    %1062 = vmatprep.subr.mxu0 0.0
    %1063 = vmatpush1.xpose.msra.mxu0 0.0
    %1064 = vmatprep.subr.mxu0 0.0
    %1065 = vmatpush1.xpose.msra.mxu0 0.0
    %1066 = vmatprep.subr.mxu0 0.0
    %1067 = vmatpush1.xpose.msra.mxu0 0.0
    %1068 = vmatprep.subr.mxu0 0.0
    %1069 = vmatpush1.xpose.msra.mxu0 0.0
    %1070 = vmatprep.subr.mxu0 0.0
    %1071 = vmatpush1.xpose.msra.mxu0 0.0
    %1072 = vmatprep.subr.mxu0 0.0
    %1073 = vmatpush1.xpose.msra.mxu0 0.0
    %1074 = vmatprep.subr.mxu0 0.0
    %1075 = vmatpush1.xpose.msra.mxu0 0.0
    %1076 = vmatprep.subr.mxu0 0.0
    %1077 = vmatpush1.xpose.msra.mxu0 0.0
    %1078 = vmatprep.subr.mxu0 0.0
    %1079 = vmatpush1.xpose.msra.mxu0 0.0
    %1080 = vmatprep.subr.mxu0 0.0
    %1081 = vmatpush1.xpose.msra.mxu0 0.0
    %1082 = vmatprep.subr.mxu0 0.0
    %1083 = vmatpush1.xpose.msra.mxu0 0.0
    %1084 = vmatprep.subr.mxu0 0.0
    %1085 = vmatpush1.xpose.msra.mxu0 0.0
    %1086 = vmatprep.subr.mxu0 0.0
    %1087 = vmatpush1.xpose.msra.mxu0 0.0
    %1088 = vmatprep.mubr.f32.mxu0 0.0
    %1089 = vmatmul.mubr.f32.gmra.mrb[0].mxu0 %v1020
    %v1090 = vpop.f32.mrb[0].mxu0
    %v1091 = vadd.f32 0.0, %v1090
    %v1092 = vpop.f32.mrb[0].mxu0
    %1093 = vdwg.mxu0
    %1094 = vrot.lane.b32.xlu0 %v267, 112
    %v1095 = vpop.permute.xlu0 %1094
    %1096 = vrot.lane.b32.xlu0 %v267, 80
    %v1097 = vpop.permute.xlu0 %1096
    %v1098 = vsel %vm273, %v1095, 0
    %v1100 = vsel %vm273, %v1097, 0
    %1102 = vmatprep.subr.mxu0 0.0
    %1103 = vmatpush1.xpose.msra.mxu0 %v1100
    %1104 = vmatprep.subr.mxu0 0.0
    %1105 = vmatpush1.xpose.msra.mxu0 0.0
    %1106 = vmatprep.subr.mxu0 0.0
    %1107 = vmatpush1.xpose.msra.mxu0 0.0
    %1108 = vmatprep.subr.mxu0 0.0
    %1109 = vmatpush1.xpose.msra.mxu0 0.0
    %1110 = vmatprep.subr.mxu0 0.0
    %1111 = vmatpush1.xpose.msra.mxu0 0.0
    %1112 = vmatprep.subr.mxu0 0.0
    %1113 = vmatpush1.xpose.msra.mxu0 0.0
    %1114 = vmatprep.subr.mxu0 0.0
    %1115 = vmatpush1.xpose.msra.mxu0 0.0
    %1116 = vmatprep.subr.mxu0 0.0
    %1117 = vmatpush1.xpose.msra.mxu0 0.0
    %1118 = vmatprep.subr.mxu0 0.0
    %1119 = vmatpush1.xpose.msra.mxu0 0.0
    %1120 = vmatprep.subr.mxu0 0.0
    %1121 = vmatpush1.xpose.msra.mxu0 0.0
    %1122 = vmatprep.subr.mxu0 0.0
    %1123 = vmatpush1.xpose.msra.mxu0 0.0
    %1124 = vmatprep.subr.mxu0 0.0
    %1125 = vmatpush1.xpose.msra.mxu0 0.0
    %1126 = vmatprep.subr.mxu0 0.0
    %1127 = vmatpush1.xpose.msra.mxu0 0.0
    %1128 = vmatprep.subr.mxu0 0.0
    %1129 = vmatpush1.xpose.msra.mxu0 0.0
    %1130 = vmatprep.subr.mxu0 0.0
    %1131 = vmatpush1.xpose.msra.mxu0 0.0
    %1132 = vmatprep.subr.mxu0 0.0
    %1133 = vmatpush1.xpose.msra.mxu0 0.0
    %1134 = vmatprep.subr.mxu0 0.0
    %1135 = vmatpush1.xpose.msra.mxu0 0.0
    %1136 = vmatprep.subr.mxu0 0.0
    %1137 = vmatpush1.xpose.msra.mxu0 0.0
    %1138 = vmatprep.subr.mxu0 0.0
    %1139 = vmatpush1.xpose.msra.mxu0 0.0
    %1140 = vmatprep.subr.mxu0 0.0
    %1141 = vmatpush1.xpose.msra.mxu0 0.0
    %1142 = vmatprep.subr.mxu0 0.0
    %1143 = vmatpush1.xpose.msra.mxu0 0.0
    %1144 = vmatprep.subr.mxu0 0.0
    %1145 = vmatpush1.xpose.msra.mxu0 0.0
    %1146 = vmatprep.subr.mxu0 0.0
    %1147 = vmatpush1.xpose.msra.mxu0 0.0
    %1148 = vmatprep.subr.mxu0 0.0
    %1149 = vmatpush1.xpose.msra.mxu0 0.0
    %1150 = vmatprep.subr.mxu0 0.0
    %1151 = vmatpush1.xpose.msra.mxu0 0.0
    %1152 = vmatprep.subr.mxu0 0.0
    %1153 = vmatpush1.xpose.msra.mxu0 0.0
    %1154 = vmatprep.subr.mxu0 0.0
    %1155 = vmatpush1.xpose.msra.mxu0 0.0
    %1156 = vmatprep.subr.mxu0 0.0
    %1157 = vmatpush1.xpose.msra.mxu0 0.0
    %1158 = vmatprep.subr.mxu0 0.0
    %1159 = vmatpush1.xpose.msra.mxu0 0.0
    %1160 = vmatprep.subr.mxu0 0.0
    %1161 = vmatpush1.xpose.msra.mxu0 0.0
    %1162 = vmatprep.subr.mxu0 0.0
    %1163 = vmatpush1.xpose.msra.mxu0 0.0
    %1164 = vmatprep.subr.mxu0 0.0
    %1165 = vmatpush1.xpose.msra.mxu0 0.0
    %1166 = vmatprep.mubr.f32.mxu0 0.0
    %1167 = vmatmul.mubr.f32.gmra.mrb[0].mxu0 %v1098
    %v1168 = vpop.f32.mrb[0].mxu0
    %v1169 = vadd.f32 0.0, %v1168
    %v1170 = vpop.f32.mrb[0].mxu0
    %1171 = vdwg.mxu0
    %v1172 = vmul.f32 %v1091, 0.35355338
    %v1173 = vmul.f32 %v1169, 0.35355338
    %v1174 = vsel %vm273, %v1172, -inf
    %1175 = vmax.xlane.f32.xlu0 %v1174
    %v1176 = vpop.xlane.xlu0 %1175
    %v1177 = vsel %vm273, %v1173, -inf
    %1178 = vmax.xlane.f32.xlu0 %v1177
    %v1179 = vpop.xlane.xlu0 %1178
    %v1180 = vsub.f32 %v1172, %v1176
    %v1181 = vsub.f32 %v1173, %v1179
    %v1182 = vmul.f32 %v1180, 1.442695
    %v1183 = vpow.pop %v1182
    %v1184 = vmul.f32 %v1181, 1.442695
    %v1185 = vpow.pop %v1184
    %v1186 = vsel %vm273, %v1183, 0.0
    %1187 = vadd.xlane.f32.xlu0 %v1186
    %v1188 = vpop.xlane.xlu0 %1187
    %v1189 = vsel %vm273, %v1185, 0.0
    %1190 = vadd.xlane.f32.xlu0 %v1189
    %v1191 = vpop.xlane.xlu0 %1190
    %v1192 = vrcp.pop %v1188
    %v1193 = vrcp.pop %v1191
    %v1194 = vmul.f32 %v1183, %v1192
    %v1195 = vmul.f32 %v1185, %v1193
    %1196 = vrot.lane.b32.xlu0 %v262, 48
    %v1197 = vpop.permute.xlu0 %1196
    %v1200 = vsel %vm273, %v1194, 0
    %1202 = vmatprep.subr.mxu0 0.0
    %1203 = vmatpush1.msra.mxu0 %v1197
    %1204 = vmatprep.subr.mxu0 0.0
    %1205 = vmatpush1.msra.mxu0 0.0
    %1206 = vmatprep.subr.mxu0 0.0
    %1207 = vmatpush1.msra.mxu0 0.0
    %1208 = vmatprep.subr.mxu0 0.0
    %1209 = vmatpush1.msra.mxu0 0.0
    %1210 = vmatprep.subr.mxu0 0.0
    %1211 = vmatpush1.msra.mxu0 0.0
    %1212 = vmatprep.subr.mxu0 0.0
    %1213 = vmatpush1.msra.mxu0 0.0
    %1214 = vmatprep.subr.mxu0 0.0
    %1215 = vmatpush1.msra.mxu0 0.0
    %1216 = vmatprep.subr.mxu0 0.0
    %1217 = vmatpush1.msra.mxu0 0.0
    %1218 = vmatprep.subr.mxu0 0.0
    %1219 = vmatpush1.msra.mxu0 0.0
    %1220 = vmatprep.subr.mxu0 0.0
    %1221 = vmatpush1.msra.mxu0 0.0
    %1222 = vmatprep.subr.mxu0 0.0
    %1223 = vmatpush1.msra.mxu0 0.0
    %1224 = vmatprep.subr.mxu0 0.0
    %1225 = vmatpush1.msra.mxu0 0.0
    %1226 = vmatprep.subr.mxu0 0.0
    %1227 = vmatpush1.msra.mxu0 0.0
    %1228 = vmatprep.subr.mxu0 0.0
    %1229 = vmatpush1.msra.mxu0 0.0
    %1230 = vmatprep.subr.mxu0 0.0
    %1231 = vmatpush1.msra.mxu0 0.0
    %1232 = vmatprep.subr.mxu0 0.0
    %1233 = vmatpush1.msra.mxu0 0.0
    %1234 = vmatprep.subr.mxu0 0.0
    %1235 = vmatpush1.msra.mxu0 0.0
    %1236 = vmatprep.subr.mxu0 0.0
    %1237 = vmatpush1.msra.mxu0 0.0
    %1238 = vmatprep.subr.mxu0 0.0
    %1239 = vmatpush1.msra.mxu0 0.0
    %1240 = vmatprep.subr.mxu0 0.0
    %1241 = vmatpush1.msra.mxu0 0.0
    %1242 = vmatprep.subr.mxu0 0.0
    %1243 = vmatpush1.msra.mxu0 0.0
    %1244 = vmatprep.subr.mxu0 0.0
    %1245 = vmatpush1.msra.mxu0 0.0
    %1246 = vmatprep.subr.mxu0 0.0
    %1247 = vmatpush1.msra.mxu0 0.0
    %1248 = vmatprep.subr.mxu0 0.0
    %1249 = vmatpush1.msra.mxu0 0.0
    %1250 = vmatprep.subr.mxu0 0.0
    %1251 = vmatpush1.msra.mxu0 0.0
    %1252 = vmatprep.subr.mxu0 0.0
    %1253 = vmatpush1.msra.mxu0 0.0
    %1254 = vmatprep.subr.mxu0 0.0
    %1255 = vmatpush1.msra.mxu0 0.0
    %1256 = vmatprep.subr.mxu0 0.0
    %1257 = vmatpush1.msra.mxu0 0.0
    %1258 = vmatprep.subr.mxu0 0.0
    %1259 = vmatpush1.msra.mxu0 0.0
    %1260 = vmatprep.subr.mxu0 0.0
    %1261 = vmatpush1.msra.mxu0 0.0
    %1262 = vmatprep.subr.mxu0 0.0
    %1263 = vmatpush1.msra.mxu0 0.0
    %1264 = vmatprep.subr.mxu0 0.0
    %1265 = vmatpush1.msra.mxu0 0.0
    %1266 = vmatprep.mubr.f32.mxu0 0.0
    %1267 = vmatmul.mubr.f32.gmra.mrb[0].mxu0 %v1200
    %v1268 = vpop.f32.mrb[0].mxu0
    %v1269 = vadd.f32 0.0, %v1268
    %v1270 = vpop.f32.mrb[0].mxu0
    %1271 = vdwg.mxu0
    %1272 = vrot.lane.b32.xlu0 %v267, 48
    %v1273 = vpop.permute.xlu0 %1272
    %v1276 = vsel %vm273, %v1195, 0
    %1278 = vmatprep.subr.mxu0 0.0
    %1279 = vmatpush1.msra.mxu0 %v1273
    %1280 = vmatprep.subr.mxu0 0.0
    %1281 = vmatpush1.msra.mxu0 0.0
    %1282 = vmatprep.subr.mxu0 0.0
    %1283 = vmatpush1.msra.mxu0 0.0
    %1284 = vmatprep.subr.mxu0 0.0
    %1285 = vmatpush1.msra.mxu0 0.0
    %1286 = vmatprep.subr.mxu0 0.0
    %1287 = vmatpush1.msra.mxu0 0.0
    %1288 = vmatprep.subr.mxu0 0.0
    %1289 = vmatpush1.msra.mxu0 0.0
    %1290 = vmatprep.subr.mxu0 0.0
    %1291 = vmatpush1.msra.mxu0 0.0
    %1292 = vmatprep.subr.mxu0 0.0
    %1293 = vmatpush1.msra.mxu0 0.0
    %1294 = vmatprep.subr.mxu0 0.0
    %1295 = vmatpush1.msra.mxu0 0.0
    %1296 = vmatprep.subr.mxu0 0.0
    %1297 = vmatpush1.msra.mxu0 0.0
    %1298 = vmatprep.subr.mxu0 0.0
    %1299 = vmatpush1.msra.mxu0 0.0
    %1300 = vmatprep.subr.mxu0 0.0
    %1301 = vmatpush1.msra.mxu0 0.0
    %1302 = vmatprep.subr.mxu0 0.0
    %1303 = vmatpush1.msra.mxu0 0.0
    %1304 = vmatprep.subr.mxu0 0.0
    %1305 = vmatpush1.msra.mxu0 0.0
    %1306 = vmatprep.subr.mxu0 0.0
    %1307 = vmatpush1.msra.mxu0 0.0
    %1308 = vmatprep.subr.mxu0 0.0
    %1309 = vmatpush1.msra.mxu0 0.0
    %1310 = vmatprep.subr.mxu0 0.0
    %1311 = vmatpush1.msra.mxu0 0.0
    %1312 = vmatprep.subr.mxu0 0.0
    %1313 = vmatpush1.msra.mxu0 0.0
    %1314 = vmatprep.subr.mxu0 0.0
    %1315 = vmatpush1.msra.mxu0 0.0
    %1316 = vmatprep.subr.mxu0 0.0
    %1317 = vmatpush1.msra.mxu0 0.0
    %1318 = vmatprep.subr.mxu0 0.0
    %1319 = vmatpush1.msra.mxu0 0.0
    %1320 = vmatprep.subr.mxu0 0.0
    %1321 = vmatpush1.msra.mxu0 0.0
    %1322 = vmatprep.subr.mxu0 0.0
    %1323 = vmatpush1.msra.mxu0 0.0
    %1324 = vmatprep.subr.mxu0 0.0
    %1325 = vmatpush1.msra.mxu0 0.0
    %1326 = vmatprep.subr.mxu0 0.0
    %1327 = vmatpush1.msra.mxu0 0.0
    %1328 = vmatprep.subr.mxu0 0.0
    %1329 = vmatpush1.msra.mxu0 0.0
    %1330 = vmatprep.subr.mxu0 0.0
    %1331 = vmatpush1.msra.mxu0 0.0
    %1332 = vmatprep.subr.mxu0 0.0
    %1333 = vmatpush1.msra.mxu0 0.0
    %1334 = vmatprep.subr.mxu0 0.0
    %1335 = vmatpush1.msra.mxu0 0.0
    %1336 = vmatprep.subr.mxu0 0.0
    %1337 = vmatpush1.msra.mxu0 0.0
    %1338 = vmatprep.subr.mxu0 0.0
    %1339 = vmatpush1.msra.mxu0 0.0
    %1340 = vmatprep.subr.mxu0 0.0
    %1341 = vmatpush1.msra.mxu0 0.0
    %1342 = vmatprep.mubr.f32.mxu0 0.0
    %1343 = vmatmul.mubr.f32.gmra.mrb[0].mxu0 %v1276
    %v1344 = vpop.f32.mrb[0].mxu0
    %v1345 = vadd.f32 0.0, %v1344
    %v1346 = vpop.f32.mrb[0].mxu0
    %1347 = vdwg.mxu0
    %v1348 = vld [vmem:[#allocation2 + $0x80] sm:$0xff]
    %1349 = vrot.lane.b32.xlu0 %v262, 104
    %v1350 = vpop.permute.xlu0 %1349
    %1351 = vrot.lane.b32.xlu0 %v262, 72
    %v1352 = vpop.permute.xlu0 %1351
    %v1353 = vsel %vm273, %v1350, 0
    %v1355 = vsel %vm273, %v1352, 0
    %1357 = vmatprep.subr.mxu0 0.0
    %1358 = vmatpush1.xpose.msra.mxu0 %v1355
    %1359 = vmatprep.subr.mxu0 0.0
    %1360 = vmatpush1.xpose.msra.mxu0 0.0
    %1361 = vmatprep.subr.mxu0 0.0
    %1362 = vmatpush1.xpose.msra.mxu0 0.0
    %1363 = vmatprep.subr.mxu0 0.0
    %1364 = vmatpush1.xpose.msra.mxu0 0.0
    %1365 = vmatprep.subr.mxu0 0.0
    %1366 = vmatpush1.xpose.msra.mxu0 0.0
    %1367 = vmatprep.subr.mxu0 0.0
    %1368 = vmatpush1.xpose.msra.mxu0 0.0
    %1369 = vmatprep.subr.mxu0 0.0
    %1370 = vmatpush1.xpose.msra.mxu0 0.0
    %1371 = vmatprep.subr.mxu0 0.0
    %1372 = vmatpush1.xpose.msra.mxu0 0.0
    %1373 = vmatprep.subr.mxu0 0.0
    %1374 = vmatpush1.xpose.msra.mxu0 0.0
    %1375 = vmatprep.subr.mxu0 0.0
    %1376 = vmatpush1.xpose.msra.mxu0 0.0
    %1377 = vmatprep.subr.mxu0 0.0
    %1378 = vmatpush1.xpose.msra.mxu0 0.0
    %1379 = vmatprep.subr.mxu0 0.0
    %1380 = vmatpush1.xpose.msra.mxu0 0.0
    %1381 = vmatprep.subr.mxu0 0.0
    %1382 = vmatpush1.xpose.msra.mxu0 0.0
    %1383 = vmatprep.subr.mxu0 0.0
    %1384 = vmatpush1.xpose.msra.mxu0 0.0
    %1385 = vmatprep.subr.mxu0 0.0
    %1386 = vmatpush1.xpose.msra.mxu0 0.0
    %1387 = vmatprep.subr.mxu0 0.0
    %1388 = vmatpush1.xpose.msra.mxu0 0.0
    %1389 = vmatprep.subr.mxu0 0.0
    %1390 = vmatpush1.xpose.msra.mxu0 0.0
    %1391 = vmatprep.subr.mxu0 0.0
    %1392 = vmatpush1.xpose.msra.mxu0 0.0
    %1393 = vmatprep.subr.mxu0 0.0
    %1394 = vmatpush1.xpose.msra.mxu0 0.0
    %1395 = vmatprep.subr.mxu0 0.0
    %1396 = vmatpush1.xpose.msra.mxu0 0.0
    %1397 = vmatprep.subr.mxu0 0.0
    %1398 = vmatpush1.xpose.msra.mxu0 0.0
    %1399 = vmatprep.subr.mxu0 0.0
    %1400 = vmatpush1.xpose.msra.mxu0 0.0
    %1401 = vmatprep.subr.mxu0 0.0
    %1402 = vmatpush1.xpose.msra.mxu0 0.0
    %1403 = vmatprep.subr.mxu0 0.0
    %1404 = vmatpush1.xpose.msra.mxu0 0.0
    %1405 = vmatprep.subr.mxu0 0.0
    %1406 = vmatpush1.xpose.msra.mxu0 0.0
    %1407 = vmatprep.subr.mxu0 0.0
    %1408 = vmatpush1.xpose.msra.mxu0 0.0
    %1409 = vmatprep.subr.mxu0 0.0
    %1410 = vmatpush1.xpose.msra.mxu0 0.0
    %1411 = vmatprep.subr.mxu0 0.0
    %1412 = vmatpush1.xpose.msra.mxu0 0.0
    %1413 = vmatprep.subr.mxu0 0.0
    %1414 = vmatpush1.xpose.msra.mxu0 0.0
    %1415 = vmatprep.subr.mxu0 0.0
    %1416 = vmatpush1.xpose.msra.mxu0 0.0
    %1417 = vmatprep.subr.mxu0 0.0
    %1418 = vmatpush1.xpose.msra.mxu0 0.0
    %1419 = vmatprep.subr.mxu0 0.0
    %1420 = vmatpush1.xpose.msra.mxu0 0.0
    %1421 = vmatprep.mubr.f32.mxu0 0.0
    %1422 = vmatmul.mubr.f32.gmra.mrb[0].mxu0 %v1353
    %v1423 = vpop.f32.mrb[0].mxu0
    %v1424 = vadd.f32 0.0, %v1423
    %v1425 = vpop.f32.mrb[0].mxu0
    %1426 = vdwg.mxu0
    %1427 = vrot.lane.b32.xlu0 %v267, 104
    %v1428 = vpop.permute.xlu0 %1427
    %1429 = vrot.lane.b32.xlu0 %v267, 72
    %v1430 = vpop.permute.xlu0 %1429
    %v1431 = vsel %vm273, %v1428, 0
    %v1433 = vsel %vm273, %v1430, 0
    %1435 = vmatprep.subr.mxu0 0.0
    %1436 = vmatpush1.xpose.msra.mxu0 %v1433
    %1437 = vmatprep.subr.mxu0 0.0
    %1438 = vmatpush1.xpose.msra.mxu0 0.0
    %1439 = vmatprep.subr.mxu0 0.0
    %1440 = vmatpush1.xpose.msra.mxu0 0.0
    %1441 = vmatprep.subr.mxu0 0.0
    %1442 = vmatpush1.xpose.msra.mxu0 0.0
    %1443 = vmatprep.subr.mxu0 0.0
    %1444 = vmatpush1.xpose.msra.mxu0 0.0
    %1445 = vmatprep.subr.mxu0 0.0
    %1446 = vmatpush1.xpose.msra.mxu0 0.0
    %1447 = vmatprep.subr.mxu0 0.0
    %1448 = vmatpush1.xpose.msra.mxu0 0.0
    %1449 = vmatprep.subr.mxu0 0.0
    %1450 = vmatpush1.xpose.msra.mxu0 0.0
    %1451 = vmatprep.subr.mxu0 0.0
    %1452 = vmatpush1.xpose.msra.mxu0 0.0
    %1453 = vmatprep.subr.mxu0 0.0
    %1454 = vmatpush1.xpose.msra.mxu0 0.0
    %1455 = vmatprep.subr.mxu0 0.0
    %1456 = vmatpush1.xpose.msra.mxu0 0.0
    %1457 = vmatprep.subr.mxu0 0.0
    %1458 = vmatpush1.xpose.msra.mxu0 0.0
    %1459 = vmatprep.subr.mxu0 0.0
    %1460 = vmatpush1.xpose.msra.mxu0 0.0
    %1461 = vmatprep.subr.mxu0 0.0
    %1462 = vmatpush1.xpose.msra.mxu0 0.0
    %1463 = vmatprep.subr.mxu0 0.0
    %1464 = vmatpush1.xpose.msra.mxu0 0.0
    %1465 = vmatprep.subr.mxu0 0.0
    %1466 = vmatpush1.xpose.msra.mxu0 0.0
    %1467 = vmatprep.subr.mxu0 0.0
    %1468 = vmatpush1.xpose.msra.mxu0 0.0
    %1469 = vmatprep.subr.mxu0 0.0
    %1470 = vmatpush1.xpose.msra.mxu0 0.0
    %1471 = vmatprep.subr.mxu0 0.0
    %1472 = vmatpush1.xpose.msra.mxu0 0.0
    %1473 = vmatprep.subr.mxu0 0.0
    %1474 = vmatpush1.xpose.msra.mxu0 0.0
    %1475 = vmatprep.subr.mxu0 0.0
    %1476 = vmatpush1.xpose.msra.mxu0 0.0
    %1477 = vmatprep.subr.mxu0 0.0
    %1478 = vmatpush1.xpose.msra.mxu0 0.0
    %1479 = vmatprep.subr.mxu0 0.0
    %1480 = vmatpush1.xpose.msra.mxu0 0.0
    %1481 = vmatprep.subr.mxu0 0.0
    %1482 = vmatpush1.xpose.msra.mxu0 0.0
    %1483 = vmatprep.subr.mxu0 0.0
    %1484 = vmatpush1.xpose.msra.mxu0 0.0
    %1485 = vmatprep.subr.mxu0 0.0
    %1486 = vmatpush1.xpose.msra.mxu0 0.0
    %1487 = vmatprep.subr.mxu0 0.0
    %1488 = vmatpush1.xpose.msra.mxu0 0.0
    %1489 = vmatprep.subr.mxu0 0.0
    %1490 = vmatpush1.xpose.msra.mxu0 0.0
    %1491 = vmatprep.subr.mxu0 0.0
    %1492 = vmatpush1.xpose.msra.mxu0 0.0
    %1493 = vmatprep.subr.mxu0 0.0
    %1494 = vmatpush1.xpose.msra.mxu0 0.0
    %1495 = vmatprep.subr.mxu0 0.0
    %1496 = vmatpush1.xpose.msra.mxu0 0.0
    %1497 = vmatprep.subr.mxu0 0.0
    %1498 = vmatpush1.xpose.msra.mxu0 0.0
    %1499 = vmatprep.mubr.f32.mxu0 0.0
    %1500 = vmatmul.mubr.f32.gmra.mrb[0].mxu0 %v1431
    %v1501 = vpop.f32.mrb[0].mxu0
    %v1502 = vadd.f32 0.0, %v1501
    %v1503 = vpop.f32.mrb[0].mxu0
    %1504 = vdwg.mxu0
    %v1505 = vmul.f32 %v1424, 0.35355338
    %v1506 = vmul.f32 %v1502, 0.35355338
    %v1507 = vsel %vm273, %v1505, -inf
    %1508 = vmax.xlane.f32.xlu0 %v1507
    %v1509 = vpop.xlane.xlu0 %1508
    %v1510 = vsel %vm273, %v1506, -inf
    %1511 = vmax.xlane.f32.xlu0 %v1510
    %v1512 = vpop.xlane.xlu0 %1511
    %v1513 = vsub.f32 %v1505, %v1509
    %v1514 = vsub.f32 %v1506, %v1512
    %v1515 = vmul.f32 %v1513, 1.442695
    %v1516 = vpow.pop %v1515
    %v1517 = vmul.f32 %v1514, 1.442695
    %v1518 = vpow.pop %v1517
    %v1519 = vsel %vm273, %v1516, 0.0
    %1520 = vadd.xlane.f32.xlu0 %v1519
    %v1521 = vpop.xlane.xlu0 %1520
    %v1522 = vsel %vm273, %v1518, 0.0
    %1523 = vadd.xlane.f32.xlu0 %v1522
    %v1524 = vpop.xlane.xlu0 %1523
    %v1525 = vrcp.pop %v1521
    %v1526 = vrcp.pop %v1524
    %v1527 = vmul.f32 %v1516, %v1525
    %v1528 = vmul.f32 %v1518, %v1526
    %1529 = vrot.lane.b32.xlu0 %v262, 40
    %v1530 = vpop.permute.xlu0 %1529
    %v1533 = vsel %vm273, %v1527, 0
    %1535 = vmatprep.subr.mxu0 0.0
    %1536 = vmatpush1.msra.mxu0 %v1530
    %1537 = vmatprep.subr.mxu0 0.0
    %1538 = vmatpush1.msra.mxu0 0.0
    %1539 = vmatprep.subr.mxu0 0.0
    %1540 = vmatpush1.msra.mxu0 0.0
    %1541 = vmatprep.subr.mxu0 0.0
    %1542 = vmatpush1.msra.mxu0 0.0
    %1543 = vmatprep.subr.mxu0 0.0
    %1544 = vmatpush1.msra.mxu0 0.0
    %1545 = vmatprep.subr.mxu0 0.0
    %1546 = vmatpush1.msra.mxu0 0.0
    %1547 = vmatprep.subr.mxu0 0.0
    %1548 = vmatpush1.msra.mxu0 0.0
    %1549 = vmatprep.subr.mxu0 0.0
    %1550 = vmatpush1.msra.mxu0 0.0
    %1551 = vmatprep.subr.mxu0 0.0
    %1552 = vmatpush1.msra.mxu0 0.0
    %1553 = vmatprep.subr.mxu0 0.0
    %1554 = vmatpush1.msra.mxu0 0.0
    %1555 = vmatprep.subr.mxu0 0.0
    %1556 = vmatpush1.msra.mxu0 0.0
    %1557 = vmatprep.subr.mxu0 0.0
    %1558 = vmatpush1.msra.mxu0 0.0
    %1559 = vmatprep.subr.mxu0 0.0
    %1560 = vmatpush1.msra.mxu0 0.0
    %1561 = vmatprep.subr.mxu0 0.0
    %1562 = vmatpush1.msra.mxu0 0.0
    %1563 = vmatprep.subr.mxu0 0.0
    %1564 = vmatpush1.msra.mxu0 0.0
    %1565 = vmatprep.subr.mxu0 0.0
    %1566 = vmatpush1.msra.mxu0 0.0
    %1567 = vmatprep.subr.mxu0 0.0
    %1568 = vmatpush1.msra.mxu0 0.0
    %1569 = vmatprep.subr.mxu0 0.0
    %1570 = vmatpush1.msra.mxu0 0.0
    %1571 = vmatprep.subr.mxu0 0.0
    %1572 = vmatpush1.msra.mxu0 0.0
    %1573 = vmatprep.subr.mxu0 0.0
    %1574 = vmatpush1.msra.mxu0 0.0
    %1575 = vmatprep.subr.mxu0 0.0
    %1576 = vmatpush1.msra.mxu0 0.0
    %1577 = vmatprep.subr.mxu0 0.0
    %1578 = vmatpush1.msra.mxu0 0.0
    %1579 = vmatprep.subr.mxu0 0.0
    %1580 = vmatpush1.msra.mxu0 0.0
    %1581 = vmatprep.subr.mxu0 0.0
    %1582 = vmatpush1.msra.mxu0 0.0
    %1583 = vmatprep.subr.mxu0 0.0
    %1584 = vmatpush1.msra.mxu0 0.0
    %1585 = vmatprep.subr.mxu0 0.0
    %1586 = vmatpush1.msra.mxu0 0.0
    %1587 = vmatprep.subr.mxu0 0.0
    %1588 = vmatpush1.msra.mxu0 0.0
    %1589 = vmatprep.subr.mxu0 0.0
    %1590 = vmatpush1.msra.mxu0 0.0
    %1591 = vmatprep.subr.mxu0 0.0
    %1592 = vmatpush1.msra.mxu0 0.0
    %1593 = vmatprep.subr.mxu0 0.0
    %1594 = vmatpush1.msra.mxu0 0.0
    %1595 = vmatprep.subr.mxu0 0.0
    %1596 = vmatpush1.msra.mxu0 0.0
    %1597 = vmatprep.subr.mxu0 0.0
    %1598 = vmatpush1.msra.mxu0 0.0
    %1599 = vmatprep.mubr.f32.mxu0 0.0
    %1600 = vmatmul.mubr.f32.gmra.mrb[0].mxu0 %v1533
    %v1601 = vpop.f32.mrb[0].mxu0
    %v1602 = vadd.f32 0.0, %v1601
    %v1603 = vpop.f32.mrb[0].mxu0
    %1604 = vdwg.mxu0
    %1605 = vrot.lane.b32.xlu0 %v267, 40
    %v1606 = vpop.permute.xlu0 %1605
    %v1609 = vsel %vm273, %v1528, 0
    %1611 = vmatprep.subr.mxu0 0.0
    %1612 = vmatpush1.msra.mxu0 %v1606
    %1613 = vmatprep.subr.mxu0 0.0
    %1614 = vmatpush1.msra.mxu0 0.0
    %1615 = vmatprep.subr.mxu0 0.0
    %1616 = vmatpush1.msra.mxu0 0.0
    %1617 = vmatprep.subr.mxu0 0.0
    %1618 = vmatpush1.msra.mxu0 0.0
    %1619 = vmatprep.subr.mxu0 0.0
    %1620 = vmatpush1.msra.mxu0 0.0
    %1621 = vmatprep.subr.mxu0 0.0
    %1622 = vmatpush1.msra.mxu0 0.0
    %1623 = vmatprep.subr.mxu0 0.0
    %1624 = vmatpush1.msra.mxu0 0.0
    %1625 = vmatprep.subr.mxu0 0.0
    %1626 = vmatpush1.msra.mxu0 0.0
    %1627 = vmatprep.subr.mxu0 0.0
    %1628 = vmatpush1.msra.mxu0 0.0
    %1629 = vmatprep.subr.mxu0 0.0
    %1630 = vmatpush1.msra.mxu0 0.0
    %1631 = vmatprep.subr.mxu0 0.0
    %1632 = vmatpush1.msra.mxu0 0.0
    %1633 = vmatprep.subr.mxu0 0.0
    %1634 = vmatpush1.msra.mxu0 0.0
    %1635 = vmatprep.subr.mxu0 0.0
    %1636 = vmatpush1.msra.mxu0 0.0
    %1637 = vmatprep.subr.mxu0 0.0
    %1638 = vmatpush1.msra.mxu0 0.0
    %1639 = vmatprep.subr.mxu0 0.0
    %1640 = vmatpush1.msra.mxu0 0.0
    %1641 = vmatprep.subr.mxu0 0.0
    %1642 = vmatpush1.msra.mxu0 0.0
    %1643 = vmatprep.subr.mxu0 0.0
    %1644 = vmatpush1.msra.mxu0 0.0
    %1645 = vmatprep.subr.mxu0 0.0
    %1646 = vmatpush1.msra.mxu0 0.0
    %1647 = vmatprep.subr.mxu0 0.0
    %1648 = vmatpush1.msra.mxu0 0.0
    %1649 = vmatprep.subr.mxu0 0.0
    %1650 = vmatpush1.msra.mxu0 0.0
    %1651 = vmatprep.subr.mxu0 0.0
    %1652 = vmatpush1.msra.mxu0 0.0
    %1653 = vmatprep.subr.mxu0 0.0
    %1654 = vmatpush1.msra.mxu0 0.0
    %1655 = vmatprep.subr.mxu0 0.0
    %1656 = vmatpush1.msra.mxu0 0.0
    %1657 = vmatprep.subr.mxu0 0.0
    %1658 = vmatpush1.msra.mxu0 0.0
    %1659 = vmatprep.subr.mxu0 0.0
    %1660 = vmatpush1.msra.mxu0 0.0
    %1661 = vmatprep.subr.mxu0 0.0
    %1662 = vmatpush1.msra.mxu0 0.0
    %1663 = vmatprep.subr.mxu0 0.0
    %1664 = vmatpush1.msra.mxu0 0.0
    %1665 = vmatprep.subr.mxu0 0.0
    %1666 = vmatpush1.msra.mxu0 0.0
    %1667 = vmatprep.subr.mxu0 0.0
    %1668 = vmatpush1.msra.mxu0 0.0
    %1669 = vmatprep.subr.mxu0 0.0
    %1670 = vmatpush1.msra.mxu0 0.0
    %1671 = vmatprep.subr.mxu0 0.0
    %1672 = vmatpush1.msra.mxu0 0.0
    %1673 = vmatprep.subr.mxu0 0.0
    %1674 = vmatpush1.msra.mxu0 0.0
    %1675 = vmatprep.mubr.f32.mxu0 0.0
    %1676 = vmatmul.mubr.f32.gmra.mrb[0].mxu0 %v1609
    %v1677 = vpop.f32.mrb[0].mxu0
    %v1678 = vadd.f32 0.0, %v1677
    %v1679 = vpop.f32.mrb[0].mxu0
    %1680 = vdwg.mxu0
    %v1681 = vld [vmem:[#allocation2 + $0x88] sm:$0xff]
    %v1683 = vsel %vm273, %v1602, 0
    %v1686 = vsel %vm273, %v1678, 0
    %1688 = vmatprep.subr.mxu0 0.0
    %1689 = vmatpush1.msra.mxu0 %v1681
    %1690 = vmatprep.subr.mxu0 0.0
    %1691 = vmatpush1.msra.mxu0 0.0
    %1692 = vmatprep.subr.mxu0 0.0
    %1693 = vmatpush1.msra.mxu0 0.0
    %1694 = vmatprep.subr.mxu0 0.0
    %1695 = vmatpush1.msra.mxu0 0.0
    %1696 = vmatprep.subr.mxu0 0.0
    %1697 = vmatpush1.msra.mxu0 0.0
    %1698 = vmatprep.subr.mxu0 0.0
    %1699 = vmatpush1.msra.mxu0 0.0
    %1700 = vmatprep.subr.mxu0 0.0
    %1701 = vmatpush1.msra.mxu0 0.0
    %1702 = vmatprep.subr.mxu0 0.0
    %1703 = vmatpush1.msra.mxu0 0.0
    %1704 = vmatprep.subr.mxu0 0.0
    %1705 = vmatpush1.msra.mxu0 0.0
    %1706 = vmatprep.subr.mxu0 0.0
    %1707 = vmatpush1.msra.mxu0 0.0
    %1708 = vmatprep.subr.mxu0 0.0
    %1709 = vmatpush1.msra.mxu0 0.0
    %1710 = vmatprep.subr.mxu0 0.0
    %1711 = vmatpush1.msra.mxu0 0.0
    %1712 = vmatprep.subr.mxu0 0.0
    %1713 = vmatpush1.msra.mxu0 0.0
    %1714 = vmatprep.subr.mxu0 0.0
    %1715 = vmatpush1.msra.mxu0 0.0
    %1716 = vmatprep.subr.mxu0 0.0
    %1717 = vmatpush1.msra.mxu0 0.0
    %1718 = vmatprep.subr.mxu0 0.0
    %1719 = vmatpush1.msra.mxu0 0.0
    %1720 = vmatprep.subr.mxu0 0.0
    %1721 = vmatpush1.msra.mxu0 0.0
    %1722 = vmatprep.subr.mxu0 0.0
    %1723 = vmatpush1.msra.mxu0 0.0
    %1724 = vmatprep.subr.mxu0 0.0
    %1725 = vmatpush1.msra.mxu0 0.0
    %1726 = vmatprep.subr.mxu0 0.0
    %1727 = vmatpush1.msra.mxu0 0.0
    %1728 = vmatprep.subr.mxu0 0.0
    %1729 = vmatpush1.msra.mxu0 0.0
    %1730 = vmatprep.subr.mxu0 0.0
    %1731 = vmatpush1.msra.mxu0 0.0
    %1732 = vmatprep.subr.mxu0 0.0
    %1733 = vmatpush1.msra.mxu0 0.0
    %1734 = vmatprep.subr.mxu0 0.0
    %1735 = vmatpush1.msra.mxu0 0.0
    %1736 = vmatprep.subr.mxu0 0.0
    %1737 = vmatpush1.msra.mxu0 0.0
    %1738 = vmatprep.subr.mxu0 0.0
    %1739 = vmatpush1.msra.mxu0 0.0
    %1740 = vmatprep.subr.mxu0 0.0
    %1741 = vmatpush1.msra.mxu0 0.0
    %1742 = vmatprep.subr.mxu0 0.0
    %1743 = vmatpush1.msra.mxu0 0.0
    %1744 = vmatprep.subr.mxu0 0.0
    %1745 = vmatpush1.msra.mxu0 0.0
    %1746 = vmatprep.subr.mxu0 0.0
    %1747 = vmatpush1.msra.mxu0 0.0
    %1748 = vmatprep.subr.mxu0 0.0
    %1749 = vmatpush1.msra.mxu0 0.0
    %1750 = vmatprep.subr.mxu0 0.0
    %1751 = vmatpush1.msra.mxu0 0.0
    %1752 = vmatprep.mubr.f32.mxu0 0.0
    %1753 = vmatmul.mubr.f32.gmra.mrb[0].mxu0 %v1683
    %v1754 = vpop.f32.mrb[0].mxu0
    %v1755 = vadd.f32 0.0, %v1754
    %v1756 = vpop.f32.mrb[0].mxu0
    %1757 = vmatprep.mubr.f32.mxu0 0.0
    %1758 = vmatmul.mubr.f32.gmra.mrb[0].mxu0 %v1686
    %v1759 = vpop.f32.mrb[0].mxu0
    %v1760 = vadd.f32 0.0, %v1759
    %v1761 = vpop.f32.mrb[0].mxu0
    %1762 = vdwg.mxu0
    %v1764 = vsel %vm273, %v522, 0
    %v1767 = vsel %vm273, %v598, 0
    %1769 = vmatprep.subr.mxu0 0.0
    %1770 = vmatpush1.msra.mxu0 %v601
    %1771 = vmatprep.subr.mxu0 0.0
    %1772 = vmatpush1.msra.mxu0 0.0
    %1773 = vmatprep.subr.mxu0 0.0
    %1774 = vmatpush1.msra.mxu0 0.0
    %1775 = vmatprep.subr.mxu0 0.0
    %1776 = vmatpush1.msra.mxu0 0.0
    %1777 = vmatprep.subr.mxu0 0.0
    %1778 = vmatpush1.msra.mxu0 0.0
    %1779 = vmatprep.subr.mxu0 0.0
    %1780 = vmatpush1.msra.mxu0 0.0
    %1781 = vmatprep.subr.mxu0 0.0
    %1782 = vmatpush1.msra.mxu0 0.0
    %1783 = vmatprep.subr.mxu0 0.0
    %1784 = vmatpush1.msra.mxu0 0.0
    %1785 = vmatprep.subr.mxu0 0.0
    %1786 = vmatpush1.msra.mxu0 0.0
    %1787 = vmatprep.subr.mxu0 0.0
    %1788 = vmatpush1.msra.mxu0 0.0
    %1789 = vmatprep.subr.mxu0 0.0
    %1790 = vmatpush1.msra.mxu0 0.0
    %1791 = vmatprep.subr.mxu0 0.0
    %1792 = vmatpush1.msra.mxu0 0.0
    %1793 = vmatprep.subr.mxu0 0.0
    %1794 = vmatpush1.msra.mxu0 0.0
    %1795 = vmatprep.subr.mxu0 0.0
    %1796 = vmatpush1.msra.mxu0 0.0
    %1797 = vmatprep.subr.mxu0 0.0
    %1798 = vmatpush1.msra.mxu0 0.0
    %1799 = vmatprep.subr.mxu0 0.0
    %1800 = vmatpush1.msra.mxu0 0.0
    %1801 = vmatprep.subr.mxu0 0.0
    %1802 = vmatpush1.msra.mxu0 0.0
    %1803 = vmatprep.subr.mxu0 0.0
    %1804 = vmatpush1.msra.mxu0 0.0
    %1805 = vmatprep.subr.mxu0 0.0
    %1806 = vmatpush1.msra.mxu0 0.0
    %1807 = vmatprep.subr.mxu0 0.0
    %1808 = vmatpush1.msra.mxu0 0.0
    %1809 = vmatprep.subr.mxu0 0.0
    %1810 = vmatpush1.msra.mxu0 0.0
    %1811 = vmatprep.subr.mxu0 0.0
    %1812 = vmatpush1.msra.mxu0 0.0
    %1813 = vmatprep.subr.mxu0 0.0
    %1814 = vmatpush1.msra.mxu0 0.0
    %1815 = vmatprep.subr.mxu0 0.0
    %1816 = vmatpush1.msra.mxu0 0.0
    %1817 = vmatprep.subr.mxu0 0.0
    %1818 = vmatpush1.msra.mxu0 0.0
    %1819 = vmatprep.subr.mxu0 0.0
    %1820 = vmatpush1.msra.mxu0 0.0
    %1821 = vmatprep.subr.mxu0 0.0
    %1822 = vmatpush1.msra.mxu0 0.0
    %1823 = vmatprep.subr.mxu0 0.0
    %1824 = vmatpush1.msra.mxu0 0.0
    %1825 = vmatprep.subr.mxu0 0.0
    %1826 = vmatpush1.msra.mxu0 0.0
    %1827 = vmatprep.subr.mxu0 0.0
    %1828 = vmatpush1.msra.mxu0 0.0
    %1829 = vmatprep.subr.mxu0 0.0
    %1830 = vmatpush1.msra.mxu0 0.0
    %1831 = vmatprep.subr.mxu0 0.0
    %1832 = vmatpush1.msra.mxu0 0.0
    %1833 = vmatprep.mubr.f32.mxu0 0.0
    %1834 = vmatmul.mubr.f32.gmra.mrb[0].mxu0 %v1764
    %v1835 = vpop.f32.mrb[0].mxu0
    %v1836 = vadd.f32 %v1008, %v1835
    %v1837 = vpop.f32.mrb[0].mxu0
    %1838 = vmatprep.mubr.f32.mxu0 0.0
    %1839 = vmatmul.mubr.f32.gmra.mrb[0].mxu0 %v1767
    %v1840 = vpop.f32.mrb[0].mxu0
    %v1841 = vadd.f32 %v1013, %v1840
    %v1842 = vpop.f32.mrb[0].mxu0
    %1843 = vdwg.mxu0
    %v1845 = vsel %vm273, %v1269, 0
    %v1848 = vsel %vm273, %v1345, 0
    %1850 = vmatprep.subr.mxu0 0.0
    %1851 = vmatpush1.msra.mxu0 %v1348
    %1852 = vmatprep.subr.mxu0 0.0
    %1853 = vmatpush1.msra.mxu0 0.0
    %1854 = vmatprep.subr.mxu0 0.0
    %1855 = vmatpush1.msra.mxu0 0.0
    %1856 = vmatprep.subr.mxu0 0.0
    %1857 = vmatpush1.msra.mxu0 0.0
    %1858 = vmatprep.subr.mxu0 0.0
    %1859 = vmatpush1.msra.mxu0 0.0
    %1860 = vmatprep.subr.mxu0 0.0
    %1861 = vmatpush1.msra.mxu0 0.0
    %1862 = vmatprep.subr.mxu0 0.0
    %1863 = vmatpush1.msra.mxu0 0.0
    %1864 = vmatprep.subr.mxu0 0.0
    %1865 = vmatpush1.msra.mxu0 0.0
    %1866 = vmatprep.subr.mxu0 0.0
    %1867 = vmatpush1.msra.mxu0 0.0
    %1868 = vmatprep.subr.mxu0 0.0
    %1869 = vmatpush1.msra.mxu0 0.0
    %1870 = vmatprep.subr.mxu0 0.0
    %1871 = vmatpush1.msra.mxu0 0.0
    %1872 = vmatprep.subr.mxu0 0.0
    %1873 = vmatpush1.msra.mxu0 0.0
    %1874 = vmatprep.subr.mxu0 0.0
    %1875 = vmatpush1.msra.mxu0 0.0
    %1876 = vmatprep.subr.mxu0 0.0
    %1877 = vmatpush1.msra.mxu0 0.0
    %1878 = vmatprep.subr.mxu0 0.0
    %1879 = vmatpush1.msra.mxu0 0.0
    %1880 = vmatprep.subr.mxu0 0.0
    %1881 = vmatpush1.msra.mxu0 0.0
    %1882 = vmatprep.subr.mxu0 0.0
    %1883 = vmatpush1.msra.mxu0 0.0
    %1884 = vmatprep.subr.mxu0 0.0
    %1885 = vmatpush1.msra.mxu0 0.0
    %1886 = vmatprep.subr.mxu0 0.0
    %1887 = vmatpush1.msra.mxu0 0.0
    %1888 = vmatprep.subr.mxu0 0.0
    %1889 = vmatpush1.msra.mxu0 0.0
    %1890 = vmatprep.subr.mxu0 0.0
    %1891 = vmatpush1.msra.mxu0 0.0
    %1892 = vmatprep.subr.mxu0 0.0
    %1893 = vmatpush1.msra.mxu0 0.0
    %1894 = vmatprep.subr.mxu0 0.0
    %1895 = vmatpush1.msra.mxu0 0.0
    %1896 = vmatprep.subr.mxu0 0.0
    %1897 = vmatpush1.msra.mxu0 0.0
    %1898 = vmatprep.subr.mxu0 0.0
    %1899 = vmatpush1.msra.mxu0 0.0
    %1900 = vmatprep.subr.mxu0 0.0
    %1901 = vmatpush1.msra.mxu0 0.0
    %1902 = vmatprep.subr.mxu0 0.0
    %1903 = vmatpush1.msra.mxu0 0.0
    %1904 = vmatprep.subr.mxu0 0.0
    %1905 = vmatpush1.msra.mxu0 0.0
    %1906 = vmatprep.subr.mxu0 0.0
    %1907 = vmatpush1.msra.mxu0 0.0
    %1908 = vmatprep.subr.mxu0 0.0
    %1909 = vmatpush1.msra.mxu0 0.0
    %1910 = vmatprep.subr.mxu0 0.0
    %1911 = vmatpush1.msra.mxu0 0.0
    %1912 = vmatprep.subr.mxu0 0.0
    %1913 = vmatpush1.msra.mxu0 0.0
    %1914 = vmatprep.mubr.f32.mxu0 0.0
    %1915 = vmatmul.mubr.f32.gmra.mrb[0].mxu0 %v1845
    %v1916 = vpop.f32.mrb[0].mxu0
    %v1917 = vadd.f32 %v1755, %v1916
    %v1918 = vpop.f32.mrb[0].mxu0
    %1919 = vmatprep.mubr.f32.mxu0 0.0
    %1920 = vmatmul.mubr.f32.gmra.mrb[0].mxu0 %v1848
    %v1921 = vpop.f32.mrb[0].mxu0
    %v1922 = vadd.f32 %v1760, %v1921
    %v1923 = vpop.f32.mrb[0].mxu0
    %1924 = vdwg.mxu0
    %v1925 = vadd.f32 %v1836, %v1917
    %v1926 = vadd.f32 %v1841, %v1922
    %v1927 = vadd.f32 %v133, %v1925
    %v1928 = vadd.f32 %v134, %v1926
    %v1929 = vld [vmem:[#allocation2 + $0x133] sm:$0x1]
    %v1930 = vlaneseq
    %v1931 = vshrl.u32 %v1930, 7
    %v1932 = vsub.s32 0, %v1931
    %v1933 = vrot.slane %v1929, %v1932
    %v1934 = vadd.f32 %v1927, %v1933
    %v1935 = vadd.f32 %v1928, %v1933
    %v1936 = vld [vmem:[#allocation2 + $0x134] sm:$0x1]
    %v1937 = vld [vmem:[#allocation2 + $0x135] sm:$0x1]
    %v1938 = vsel %vm137, %v1934, 0.0
    %1939 = vadd.xlane.f32.xlu0 %v1938
    %v1940 = vpop.xlane.xlu0 %1939
    %v1941 = vsel %vm137, %v1935, 0.0
    %1942 = vadd.xlane.f32.xlu0 %v1941
    %v1943 = vpop.xlane.xlu0 %1942
    %v1944 = vmul.f32 %v1940, 0.03125
    %v1945 = vmul.f32 %v1943, 0.03125
    %v1946 = vmul.f32 %v1934, %v1934
    %v1947 = vmul.f32 %v1935, %v1935
    %v1948 = vsel %vm137, %v1946, 0.0
    %1949 = vadd.xlane.f32.xlu0 %v1948
    %v1950 = vpop.xlane.xlu0 %1949
    %v1951 = vsel %vm137, %v1947, 0.0
    %1952 = vadd.xlane.f32.xlu0 %v1951
    %v1953 = vpop.xlane.xlu0 %1952
    %v1954 = vmul.f32 %v1950, 0.03125
    %v1955 = vmul.f32 %v1953, 0.03125
    %v1956 = vmul.f32 %v1944, %v1944
    %v1957 = vmul.f32 %v1945, %v1945
    %v1958 = vsub.f32 %v1954, %v1956
    %v1959 = vsub.f32 %v1955, %v1957
    %v1960 = vsub.f32 %v1934, %v1944
    %v1961 = vsub.f32 %v1935, %v1945
    %v1962 = vadd.f32 %v1958, 1e-05
    %v1963 = vadd.f32 %v1959, 1e-05
    %v1964 = vrsqrt.pop %v1962
    %v1965 = vrsqrt.pop %v1963
    %v1966 = vmul.f32 %v1960, %v1964
    %v1967 = vmul.f32 %v1961, %v1965
    %v1968 = vlaneseq
    %v1969 = vshrl.u32 %v1968, 7
    %v1970 = vsub.s32 0, %v1969
    %v1971 = vrot.slane %v1936, %v1970
    %v1972 = vmul.f32 %v1966, %v1971
    %v1973 = vmul.f32 %v1967, %v1971
    %v1974 = vlaneseq
    %v1975 = vshrl.u32 %v1974, 7
    %v1976 = vsub.s32 0, %v1975
    %v1977 = vrot.slane %v1937, %v1976
    %v1978 = vadd.f32 %v1972, %v1977
    %v1979 = vadd.f32 %v1973, %v1977
    %v1980 = vld [vmem:[#allocation2 + $0x90] sm:$0xff]
    %v1981 = vld [vmem:[#allocation2 + $0x98] sm:$0xff]
    %v1982 = vld [vmem:[#allocation2 + $0xa0] sm:$0xff]
    %v1983 = vld [vmem:[#allocation2 + $0xa8] sm:$0xff]
    %v1984 = vld [vmem:[#allocation2 + $0x136] sm:$0x1]
    %v1985 = vlaneseq
    %v1986 = vshrl.u32 %v1985, 7
    %v1987 = vsub.s32 0, %v1986
    %v1988 = vrot.slane %v1984, %v1987
    %v1990 = vsel %vm137, %v1978, 0
    %v1993 = vsel %vm137, %v1979, 0
    %1995 = vmatprep.subr.mxu0 0.0
    %1996 = vmatpush1.msra.mxu0 %v1980
    %1997 = vmatprep.subr.mxu0 0.0
    %1998 = vmatpush1.msra.mxu0 %v1981
    %1999 = vmatprep.subr.mxu0 0.0
    %2000 = vmatpush1.msra.mxu0 %v1982
    %2001 = vmatprep.subr.mxu0 0.0
    %2002 = vmatpush1.msra.mxu0 %v1983
    %2003 = vmatprep.subr.mxu0 0.0
    %2004 = vmatpush1.msra.mxu0 0.0
    %2005 = vmatprep.subr.mxu0 0.0
    %2006 = vmatpush1.msra.mxu0 0.0
    %2007 = vmatprep.subr.mxu0 0.0
    %2008 = vmatpush1.msra.mxu0 0.0
    %2009 = vmatprep.subr.mxu0 0.0
    %2010 = vmatpush1.msra.mxu0 0.0
    %2011 = vmatprep.subr.mxu0 0.0
    %2012 = vmatpush1.msra.mxu0 0.0
    %2013 = vmatprep.subr.mxu0 0.0
    %2014 = vmatpush1.msra.mxu0 0.0
    %2015 = vmatprep.subr.mxu0 0.0
    %2016 = vmatpush1.msra.mxu0 0.0
    %2017 = vmatprep.subr.mxu0 0.0
    %2018 = vmatpush1.msra.mxu0 0.0
    %2019 = vmatprep.subr.mxu0 0.0
    %2020 = vmatpush1.msra.mxu0 0.0
    %2021 = vmatprep.subr.mxu0 0.0
    %2022 = vmatpush1.msra.mxu0 0.0
    %2023 = vmatprep.subr.mxu0 0.0
    %2024 = vmatpush1.msra.mxu0 0.0
    %2025 = vmatprep.subr.mxu0 0.0
    %2026 = vmatpush1.msra.mxu0 0.0
    %2027 = vmatprep.subr.mxu0 0.0
    %2028 = vmatpush1.msra.mxu0 0.0
    %2029 = vmatprep.subr.mxu0 0.0
    %2030 = vmatpush1.msra.mxu0 0.0
    %2031 = vmatprep.subr.mxu0 0.0
    %2032 = vmatpush1.msra.mxu0 0.0
    %2033 = vmatprep.subr.mxu0 0.0
    %2034 = vmatpush1.msra.mxu0 0.0
    %2035 = vmatprep.subr.mxu0 0.0
    %2036 = vmatpush1.msra.mxu0 0.0
    %2037 = vmatprep.subr.mxu0 0.0
    %2038 = vmatpush1.msra.mxu0 0.0
    %2039 = vmatprep.subr.mxu0 0.0
    %2040 = vmatpush1.msra.mxu0 0.0
    %2041 = vmatprep.subr.mxu0 0.0
    %2042 = vmatpush1.msra.mxu0 0.0
    %2043 = vmatprep.subr.mxu0 0.0
    %2044 = vmatpush1.msra.mxu0 0.0
    %2045 = vmatprep.subr.mxu0 0.0
    %2046 = vmatpush1.msra.mxu0 0.0
    %2047 = vmatprep.subr.mxu0 0.0
    %2048 = vmatpush1.msra.mxu0 0.0
    %2049 = vmatprep.subr.mxu0 0.0
    %2050 = vmatpush1.msra.mxu0 0.0
    %2051 = vmatprep.subr.mxu0 0.0
    %2052 = vmatpush1.msra.mxu0 0.0
    %2053 = vmatprep.subr.mxu0 0.0
    %2054 = vmatpush1.msra.mxu0 0.0
    %2055 = vmatprep.subr.mxu0 0.0
    %2056 = vmatpush1.msra.mxu0 0.0
    %2057 = vmatprep.subr.mxu0 0.0
    %2058 = vmatpush1.msra.mxu0 0.0
    %2059 = vmatprep.mubr.f32.mxu0 0.0
    %2060 = vmatmul.mubr.f32.gmra.mrb[0].mxu0 %v1990
    %v2061 = vpop.f32.mrb[0].mxu0
    %v2062 = vadd.f32 %v1988, %v2061
    %v2063 = vpop.f32.mrb[0].mxu0
    %2064 = vmatprep.mubr.f32.mxu0 0.0
    %2065 = vmatmul.mubr.f32.gmra.mrb[0].mxu0 %v1993
    %v2066 = vpop.f32.mrb[0].mxu0
    %v2067 = vadd.f32 %v1988, %v2066
    %v2068 = vpop.f32.mrb[0].mxu0
    %2069 = vdwg.mxu0
    %v2070 = vmul.f32 %v2062, 0.5
    %v2071 = vmul.f32 %v2067, 0.5
    %v2072 = vmul.f32 %v2062, %v2062
    %v2073 = vmul.f32 %v2067, %v2067
    %v2074 = vmul.f32 %v2072, %v2062
    %v2075 = vmul.f32 %v2073, %v2067
    %v2076 = vmul.f32 %v2074, 0.044715
    %v2077 = vmul.f32 %v2075, 0.044715
    %v2078 = vadd.f32 %v2062, %v2076
    %v2079 = vadd.f32 %v2067, %v2077
    %v2080 = vmul.f32 %v2078, 0.7978846
    %v2081 = vmul.f32 %v2079, 0.7978846
    %v2082 = vtanh.pop %v2080
    %v2083 = vtanh.pop %v2081
    %v2084 = vadd.f32 %v2082, 1.0
    %v2085 = vadd.f32 %v2083, 1.0
    %v2086 = vmul.f32 %v2070, %v2084
    %v2087 = vmul.f32 %v2071, %v2085
    %v2088 = vld [vmem:[#allocation2 + $0xb0] sm:$0xff]
    %v2089 = vld [vmem:[#allocation2 + $0xb8] sm:$0xff]
    %v2090 = vld [vmem:[#allocation2 + $0xc0] sm:$0xff]
    %v2091 = vld [vmem:[#allocation2 + $0xc8] sm:$0xff]
    %v2092 = vld [vmem:[#allocation2 + $0xd0] sm:$0xff]
    %v2093 = vld [vmem:[#allocation2 + $0xd8] sm:$0xff]
    %v2094 = vld [vmem:[#allocation2 + $0xe0] sm:$0xff]
    %v2095 = vld [vmem:[#allocation2 + $0xe8] sm:$0xff]
    %v2096 = vld [vmem:[#allocation2 + $0xf0] sm:$0xff]
    %v2097 = vld [vmem:[#allocation2 + $0xf8] sm:$0xff]
    %v2098 = vld [vmem:[#allocation2 + $0x100] sm:$0xff]
    %v2099 = vld [vmem:[#allocation2 + $0x108] sm:$0xff]
    %v2100 = vld [vmem:[#allocation2 + $0x110] sm:$0xff]
    %v2101 = vld [vmem:[#allocation2 + $0x118] sm:$0xff]
    %v2102 = vld [vmem:[#allocation2 + $0x120] sm:$0xff]
    %v2103 = vld [vmem:[#allocation2 + $0x128] sm:$0xff]
    %v2104 = vld [vmem:[#allocation2 + $0x137] sm:$0x1]
    %v2105 = vlaneseq
    %v2106 = vshrl.u32 %v2105, 7
    %v2107 = vsub.s32 0, %v2106
    %v2108 = vrot.slane %v2104, %v2107
    %2109 = vmatprep.subr.mxu0 0.0
    %2110 = vmatpush1.msra.mxu0 %v2088
    %2111 = vmatprep.subr.mxu0 0.0
    %2112 = vmatpush1.msra.mxu0 %v2089
    %2113 = vmatprep.subr.mxu0 0.0
    %2114 = vmatpush1.msra.mxu0 %v2090
    %2115 = vmatprep.subr.mxu0 0.0
    %2116 = vmatpush1.msra.mxu0 %v2091
    %2117 = vmatprep.subr.mxu0 0.0
    %2118 = vmatpush1.msra.mxu0 %v2092
    %2119 = vmatprep.subr.mxu0 0.0
    %2120 = vmatpush1.msra.mxu0 %v2093
    %2121 = vmatprep.subr.mxu0 0.0
    %2122 = vmatpush1.msra.mxu0 %v2094
    %2123 = vmatprep.subr.mxu0 0.0
    %2124 = vmatpush1.msra.mxu0 %v2095
    %2125 = vmatprep.subr.mxu0 0.0
    %2126 = vmatpush1.msra.mxu0 %v2096
    %2127 = vmatprep.subr.mxu0 0.0
    %2128 = vmatpush1.msra.mxu0 %v2097
    %2129 = vmatprep.subr.mxu0 0.0
    %2130 = vmatpush1.msra.mxu0 %v2098
    %2131 = vmatprep.subr.mxu0 0.0
    %2132 = vmatpush1.msra.mxu0 %v2099
    %2133 = vmatprep.subr.mxu0 0.0
    %2134 = vmatpush1.msra.mxu0 %v2100
    %2135 = vmatprep.subr.mxu0 0.0
    %2136 = vmatpush1.msra.mxu0 %v2101
    %2137 = vmatprep.subr.mxu0 0.0
    %2138 = vmatpush1.msra.mxu0 %v2102
    %2139 = vmatprep.subr.mxu0 0.0
    %2140 = vmatpush1.msra.mxu0 %v2103
    %2141 = vmatprep.subr.mxu0 0.0
    %2142 = vmatpush1.msra.mxu0 0.0
    %2143 = vmatprep.subr.mxu0 0.0
    %2144 = vmatpush1.msra.mxu0 0.0
    %2145 = vmatprep.subr.mxu0 0.0
    %2146 = vmatpush1.msra.mxu0 0.0
    %2147 = vmatprep.subr.mxu0 0.0
    %2148 = vmatpush1.msra.mxu0 0.0
    %2149 = vmatprep.subr.mxu0 0.0
    %2150 = vmatpush1.msra.mxu0 0.0
    %2151 = vmatprep.subr.mxu0 0.0
    %2152 = vmatpush1.msra.mxu0 0.0
    %2153 = vmatprep.subr.mxu0 0.0
    %2154 = vmatpush1.msra.mxu0 0.0
    %2155 = vmatprep.subr.mxu0 0.0
    %2156 = vmatpush1.msra.mxu0 0.0
    %2157 = vmatprep.subr.mxu0 0.0
    %2158 = vmatpush1.msra.mxu0 0.0
    %2159 = vmatprep.subr.mxu0 0.0
    %2160 = vmatpush1.msra.mxu0 0.0
    %2161 = vmatprep.subr.mxu0 0.0
    %2162 = vmatpush1.msra.mxu0 0.0
    %2163 = vmatprep.subr.mxu0 0.0
    %2164 = vmatpush1.msra.mxu0 0.0
    %2165 = vmatprep.subr.mxu0 0.0
    %2166 = vmatpush1.msra.mxu0 0.0
    %2167 = vmatprep.subr.mxu0 0.0
    %2168 = vmatpush1.msra.mxu0 0.0
    %2169 = vmatprep.subr.mxu0 0.0
    %2170 = vmatpush1.msra.mxu0 0.0
    %2171 = vmatprep.subr.mxu0 0.0
    %2172 = vmatpush1.msra.mxu0 0.0
    %2173 = vmatprep.mubr.f32.mxu0 0.0
    %2174 = vmatmul.mubr.f32.gmra.mrb[0].mxu0 %v2086
    %v2175 = vpop.f32.mrb[0].mxu0
    %v2176 = vadd.f32 %v2108, %v2175
    %v2177 = vpop.f32.mrb[0].mxu0
    %2178 = vmatprep.mubr.f32.mxu0 0.0
    %2179 = vmatmul.mubr.f32.gmra.mrb[0].mxu0 %v2087
    %v2180 = vpop.f32.mrb[0].mxu0
    %v2181 = vadd.f32 %v2108, %v2180
    %v2182 = vpop.f32.mrb[0].mxu0
    %2183 = vdwg.mxu0
    %v2184 = vadd.f32 %v1934, %v2176
    %v2185 = vadd.f32 %v1935, %v2181
    %v2186 = vld [vmem:[#allocation2 + $0x218] sm:$0x1]
    %v2187 = vld [vmem:[#allocation2 + $0x219] sm:$0x1]
    %v2188 = vsel %vm137, %v2184, 0.0
    %2189 = vadd.xlane.f32.xlu0 %v2188
    %v2190 = vpop.xlane.xlu0 %2189
    %v2191 = vsel %vm137, %v2185, 0.0
    %2192 = vadd.xlane.f32.xlu0 %v2191
    %v2193 = vpop.xlane.xlu0 %2192
    %v2194 = vmul.f32 %v2190, 0.03125
    %v2195 = vmul.f32 %v2193, 0.03125
    %v2196 = vmul.f32 %v2184, %v2184
    %v2197 = vmul.f32 %v2185, %v2185
    %v2198 = vsel %vm137, %v2196, 0.0
    %2199 = vadd.xlane.f32.xlu0 %v2198
    %v2200 = vpop.xlane.xlu0 %2199
    %v2201 = vsel %vm137, %v2197, 0.0
    %2202 = vadd.xlane.f32.xlu0 %v2201
    %v2203 = vpop.xlane.xlu0 %2202
    %v2204 = vmul.f32 %v2200, 0.03125
    %v2205 = vmul.f32 %v2203, 0.03125
    %v2206 = vmul.f32 %v2194, %v2194
    %v2207 = vmul.f32 %v2195, %v2195
    %v2208 = vsub.f32 %v2204, %v2206
    %v2209 = vsub.f32 %v2205, %v2207
    %v2210 = vsub.f32 %v2184, %v2194
    %v2211 = vsub.f32 %v2185, %v2195
    %v2212 = vadd.f32 %v2208, 1e-05
    %v2213 = vadd.f32 %v2209, 1e-05
    %v2214 = vrsqrt.pop %v2212
    %v2215 = vrsqrt.pop %v2213
    %v2216 = vmul.f32 %v2210, %v2214
    %v2217 = vmul.f32 %v2211, %v2215
    %v2218 = vlaneseq
    %v2219 = vshrl.u32 %v2218, 7
    %v2220 = vsub.s32 0, %v2219
    %v2221 = vrot.slane %v2186, %v2220
    %v2222 = vmul.f32 %v2216, %v2221
    %v2223 = vmul.f32 %v2217, %v2221
    %v2224 = vlaneseq
    %v2225 = vshrl.u32 %v2224, 7
    %v2226 = vsub.s32 0, %v2225
    %v2227 = vrot.slane %v2187, %v2226
    %v2228 = vadd.f32 %v2222, %v2227
    %v2229 = vadd.f32 %v2223, %v2227
    %v2230 = vld [vmem:[#allocation2 + $0x138] sm:$0xff]
    %v2231 = vld [vmem:[#allocation2 + $0x140] sm:$0xff]
    %v2232 = vld [vmem:[#allocation2 + $0x148] sm:$0xff]
    %v2233 = vld [vmem:[#allocation2 + $0x150] sm:$0xff]
    %v2234 = vld [vmem:[#allocation2 + $0x21a] sm:$0x1]
    %v2235 = vlaneseq
    %v2236 = vshrl.u32 %v2235, 7
    %v2237 = vsub.s32 0, %v2236
    %v2238 = vrot.slane %v2234, %v2237
    %v2240 = vsel %vm137, %v2228, 0
    %v2243 = vsel %vm137, %v2229, 0
    %2245 = vmatprep.subr.mxu0 0.0
    %2246 = vmatpush1.msra.mxu0 %v2230
    %2247 = vmatprep.subr.mxu0 0.0
    %2248 = vmatpush1.msra.mxu0 %v2231
    %2249 = vmatprep.subr.mxu0 0.0
    %2250 = vmatpush1.msra.mxu0 %v2232
    %2251 = vmatprep.subr.mxu0 0.0
    %2252 = vmatpush1.msra.mxu0 %v2233
    %2253 = vmatprep.subr.mxu0 0.0
    %2254 = vmatpush1.msra.mxu0 0.0
    %2255 = vmatprep.subr.mxu0 0.0
    %2256 = vmatpush1.msra.mxu0 0.0
    %2257 = vmatprep.subr.mxu0 0.0
    %2258 = vmatpush1.msra.mxu0 0.0
    %2259 = vmatprep.subr.mxu0 0.0
    %2260 = vmatpush1.msra.mxu0 0.0
    %2261 = vmatprep.subr.mxu0 0.0
    %2262 = vmatpush1.msra.mxu0 0.0
    %2263 = vmatprep.subr.mxu0 0.0
    %2264 = vmatpush1.msra.mxu0 0.0
    %2265 = vmatprep.subr.mxu0 0.0
    %2266 = vmatpush1.msra.mxu0 0.0
    %2267 = vmatprep.subr.mxu0 0.0
    %2268 = vmatpush1.msra.mxu0 0.0
    %2269 = vmatprep.subr.mxu0 0.0
    %2270 = vmatpush1.msra.mxu0 0.0
    %2271 = vmatprep.subr.mxu0 0.0
    %2272 = vmatpush1.msra.mxu0 0.0
    %2273 = vmatprep.subr.mxu0 0.0
    %2274 = vmatpush1.msra.mxu0 0.0
    %2275 = vmatprep.subr.mxu0 0.0
    %2276 = vmatpush1.msra.mxu0 0.0
    %2277 = vmatprep.subr.mxu0 0.0
    %2278 = vmatpush1.msra.mxu0 0.0
    %2279 = vmatprep.subr.mxu0 0.0
    %2280 = vmatpush1.msra.mxu0 0.0
    %2281 = vmatprep.subr.mxu0 0.0
    %2282 = vmatpush1.msra.mxu0 0.0
    %2283 = vmatprep.subr.mxu0 0.0
    %2284 = vmatpush1.msra.mxu0 0.0
    %2285 = vmatprep.subr.mxu0 0.0
    %2286 = vmatpush1.msra.mxu0 0.0
    %2287 = vmatprep.subr.mxu0 0.0
    %2288 = vmatpush1.msra.mxu0 0.0
    %2289 = vmatprep.subr.mxu0 0.0
    %2290 = vmatpush1.msra.mxu0 0.0
    %2291 = vmatprep.subr.mxu0 0.0
    %2292 = vmatpush1.msra.mxu0 0.0
    %2293 = vmatprep.subr.mxu0 0.0
    %2294 = vmatpush1.msra.mxu0 0.0
    %2295 = vmatprep.subr.mxu0 0.0
    %2296 = vmatpush1.msra.mxu0 0.0
    %2297 = vmatprep.subr.mxu0 0.0
    %2298 = vmatpush1.msra.mxu0 0.0
    %2299 = vmatprep.subr.mxu0 0.0
    %2300 = vmatpush1.msra.mxu0 0.0
    %2301 = vmatprep.subr.mxu0 0.0
    %2302 = vmatpush1.msra.mxu0 0.0
    %2303 = vmatprep.subr.mxu0 0.0
    %2304 = vmatpush1.msra.mxu0 0.0
    %2305 = vmatprep.subr.mxu0 0.0
    %2306 = vmatpush1.msra.mxu0 0.0
    %2307 = vmatprep.subr.mxu0 0.0
    %2308 = vmatpush1.msra.mxu0 0.0
    %2309 = vmatprep.mubr.f32.mxu0 0.0
    %2310 = vmatmul.mubr.f32.gmra.mrb[0].mxu0 %v2240
    %v2311 = vpop.f32.mrb[0].mxu0
    %v2312 = vadd.f32 %v2238, %v2311
    %v2313 = vpop.f32.mrb[0].mxu0
    %2314 = vmatprep.mubr.f32.mxu0 0.0
    %2315 = vmatmul.mubr.f32.gmra.mrb[0].mxu0 %v2243
    %v2316 = vpop.f32.mrb[0].mxu0
    %v2317 = vadd.f32 %v2238, %v2316
    %v2318 = vpop.f32.mrb[0].mxu0
    %2319 = vdwg.mxu0
    %2321 = vrot.lane.b32.xlu0 %v2312, 96
    %v2322 = vpop.permute.xlu0 %2321
    %v2323 = vsel %vm273, %v2312, 0
    %v2325 = vsel %vm273, %v2322, 0
    %2327 = vmatprep.subr.mxu0 0.0
    %2328 = vmatpush1.xpose.msra.mxu0 %v2325
    %2329 = vmatprep.subr.mxu0 0.0
    %2330 = vmatpush1.xpose.msra.mxu0 0.0
    %2331 = vmatprep.subr.mxu0 0.0
    %2332 = vmatpush1.xpose.msra.mxu0 0.0
    %2333 = vmatprep.subr.mxu0 0.0
    %2334 = vmatpush1.xpose.msra.mxu0 0.0
    %2335 = vmatprep.subr.mxu0 0.0
    %2336 = vmatpush1.xpose.msra.mxu0 0.0
    %2337 = vmatprep.subr.mxu0 0.0
    %2338 = vmatpush1.xpose.msra.mxu0 0.0
    %2339 = vmatprep.subr.mxu0 0.0
    %2340 = vmatpush1.xpose.msra.mxu0 0.0
    %2341 = vmatprep.subr.mxu0 0.0
    %2342 = vmatpush1.xpose.msra.mxu0 0.0
    %2343 = vmatprep.subr.mxu0 0.0
    %2344 = vmatpush1.xpose.msra.mxu0 0.0
    %2345 = vmatprep.subr.mxu0 0.0
    %2346 = vmatpush1.xpose.msra.mxu0 0.0
    %2347 = vmatprep.subr.mxu0 0.0
    %2348 = vmatpush1.xpose.msra.mxu0 0.0
    %2349 = vmatprep.subr.mxu0 0.0
    %2350 = vmatpush1.xpose.msra.mxu0 0.0
    %2351 = vmatprep.subr.mxu0 0.0
    %2352 = vmatpush1.xpose.msra.mxu0 0.0
    %2353 = vmatprep.subr.mxu0 0.0
    %2354 = vmatpush1.xpose.msra.mxu0 0.0
    %2355 = vmatprep.subr.mxu0 0.0
    %2356 = vmatpush1.xpose.msra.mxu0 0.0
    %2357 = vmatprep.subr.mxu0 0.0
    %2358 = vmatpush1.xpose.msra.mxu0 0.0
    %2359 = vmatprep.subr.mxu0 0.0
    %2360 = vmatpush1.xpose.msra.mxu0 0.0
    %2361 = vmatprep.subr.mxu0 0.0
    %2362 = vmatpush1.xpose.msra.mxu0 0.0
    %2363 = vmatprep.subr.mxu0 0.0
    %2364 = vmatpush1.xpose.msra.mxu0 0.0
    %2365 = vmatprep.subr.mxu0 0.0
    %2366 = vmatpush1.xpose.msra.mxu0 0.0
    %2367 = vmatprep.subr.mxu0 0.0
    %2368 = vmatpush1.xpose.msra.mxu0 0.0
    %2369 = vmatprep.subr.mxu0 0.0
    %2370 = vmatpush1.xpose.msra.mxu0 0.0
    %2371 = vmatprep.subr.mxu0 0.0
    %2372 = vmatpush1.xpose.msra.mxu0 0.0
    %2373 = vmatprep.subr.mxu0 0.0
    %2374 = vmatpush1.xpose.msra.mxu0 0.0
    %2375 = vmatprep.subr.mxu0 0.0
    %2376 = vmatpush1.xpose.msra.mxu0 0.0
    %2377 = vmatprep.subr.mxu0 0.0
    %2378 = vmatpush1.xpose.msra.mxu0 0.0
    %2379 = vmatprep.subr.mxu0 0.0
    %2380 = vmatpush1.xpose.msra.mxu0 0.0
    %2381 = vmatprep.subr.mxu0 0.0
    %2382 = vmatpush1.xpose.msra.mxu0 0.0
    %2383 = vmatprep.subr.mxu0 0.0
    %2384 = vmatpush1.xpose.msra.mxu0 0.0
    %2385 = vmatprep.subr.mxu0 0.0
    %2386 = vmatpush1.xpose.msra.mxu0 0.0
    %2387 = vmatprep.subr.mxu0 0.0
    %2388 = vmatpush1.xpose.msra.mxu0 0.0
    %2389 = vmatprep.subr.mxu0 0.0
    %2390 = vmatpush1.xpose.msra.mxu0 0.0
    %2391 = vmatprep.mubr.f32.mxu0 0.0
    %2392 = vmatmul.mubr.f32.gmra.mrb[0].mxu0 %v2323
    %v2393 = vpop.f32.mrb[0].mxu0
    %v2394 = vadd.f32 0.0, %v2393
    %v2395 = vpop.f32.mrb[0].mxu0
    %2396 = vdwg.mxu0
    %2398 = vrot.lane.b32.xlu0 %v2317, 96
    %v2399 = vpop.permute.xlu0 %2398
    %v2400 = vsel %vm273, %v2317, 0
    %v2402 = vsel %vm273, %v2399, 0
    %2404 = vmatprep.subr.mxu0 0.0
    %2405 = vmatpush1.xpose.msra.mxu0 %v2402
    %2406 = vmatprep.subr.mxu0 0.0
    %2407 = vmatpush1.xpose.msra.mxu0 0.0
    %2408 = vmatprep.subr.mxu0 0.0
    %2409 = vmatpush1.xpose.msra.mxu0 0.0
    %2410 = vmatprep.subr.mxu0 0.0
    %2411 = vmatpush1.xpose.msra.mxu0 0.0
    %2412 = vmatprep.subr.mxu0 0.0
    %2413 = vmatpush1.xpose.msra.mxu0 0.0
    %2414 = vmatprep.subr.mxu0 0.0
    %2415 = vmatpush1.xpose.msra.mxu0 0.0
    %2416 = vmatprep.subr.mxu0 0.0
    %2417 = vmatpush1.xpose.msra.mxu0 0.0
    %2418 = vmatprep.subr.mxu0 0.0
    %2419 = vmatpush1.xpose.msra.mxu0 0.0
    %2420 = vmatprep.subr.mxu0 0.0
    %2421 = vmatpush1.xpose.msra.mxu0 0.0
    %2422 = vmatprep.subr.mxu0 0.0
    %2423 = vmatpush1.xpose.msra.mxu0 0.0
    %2424 = vmatprep.subr.mxu0 0.0
    %2425 = vmatpush1.xpose.msra.mxu0 0.0
    %2426 = vmatprep.subr.mxu0 0.0
    %2427 = vmatpush1.xpose.msra.mxu0 0.0
    %2428 = vmatprep.subr.mxu0 0.0
    %2429 = vmatpush1.xpose.msra.mxu0 0.0
    %2430 = vmatprep.subr.mxu0 0.0
    %2431 = vmatpush1.xpose.msra.mxu0 0.0
    %2432 = vmatprep.subr.mxu0 0.0
    %2433 = vmatpush1.xpose.msra.mxu0 0.0
    %2434 = vmatprep.subr.mxu0 0.0
    %2435 = vmatpush1.xpose.msra.mxu0 0.0
    %2436 = vmatprep.subr.mxu0 0.0
    %2437 = vmatpush1.xpose.msra.mxu0 0.0
    %2438 = vmatprep.subr.mxu0 0.0
    %2439 = vmatpush1.xpose.msra.mxu0 0.0
    %2440 = vmatprep.subr.mxu0 0.0
    %2441 = vmatpush1.xpose.msra.mxu0 0.0
    %2442 = vmatprep.subr.mxu0 0.0
    %2443 = vmatpush1.xpose.msra.mxu0 0.0
    %2444 = vmatprep.subr.mxu0 0.0
    %2445 = vmatpush1.xpose.msra.mxu0 0.0
    %2446 = vmatprep.subr.mxu0 0.0
    %2447 = vmatpush1.xpose.msra.mxu0 0.0
    %2448 = vmatprep.subr.mxu0 0.0
    %2449 = vmatpush1.xpose.msra.mxu0 0.0
    %2450 = vmatprep.subr.mxu0 0.0
    %2451 = vmatpush1.xpose.msra.mxu0 0.0
    %2452 = vmatprep.subr.mxu0 0.0
    %2453 = vmatpush1.xpose.msra.mxu0 0.0
    %2454 = vmatprep.subr.mxu0 0.0
    %2455 = vmatpush1.xpose.msra.mxu0 0.0
    %2456 = vmatprep.subr.mxu0 0.0
    %2457 = vmatpush1.xpose.msra.mxu0 0.0
    %2458 = vmatprep.subr.mxu0 0.0
    %2459 = vmatpush1.xpose.msra.mxu0 0.0
    %2460 = vmatprep.subr.mxu0 0.0
    %2461 = vmatpush1.xpose.msra.mxu0 0.0
    %2462 = vmatprep.subr.mxu0 0.0
    %2463 = vmatpush1.xpose.msra.mxu0 0.0
    %2464 = vmatprep.subr.mxu0 0.0
    %2465 = vmatpush1.xpose.msra.mxu0 0.0
    %2466 = vmatprep.subr.mxu0 0.0
    %2467 = vmatpush1.xpose.msra.mxu0 0.0
    %2468 = vmatprep.mubr.f32.mxu0 0.0
    %2469 = vmatmul.mubr.f32.gmra.mrb[0].mxu0 %v2400
    %v2470 = vpop.f32.mrb[0].mxu0
    %v2471 = vadd.f32 0.0, %v2470
    %v2472 = vpop.f32.mrb[0].mxu0
    %2473 = vdwg.mxu0
    %v2474 = vmul.f32 %v2394, 0.35355338
    %v2475 = vmul.f32 %v2471, 0.35355338
    %v2476 = vsel %vm273, %v2474, -inf
    %2477 = vmax.xlane.f32.xlu0 %v2476
    %v2478 = vpop.xlane.xlu0 %2477
    %v2479 = vsel %vm273, %v2475, -inf
    %2480 = vmax.xlane.f32.xlu0 %v2479
    %v2481 = vpop.xlane.xlu0 %2480
    %v2482 = vsub.f32 %v2474, %v2478
    %v2483 = vsub.f32 %v2475, %v2481
    %v2484 = vmul.f32 %v2482, 1.442695
    %v2485 = vpow.pop %v2484
    %v2486 = vmul.f32 %v2483, 1.442695
    %v2487 = vpow.pop %v2486
    %v2488 = vsel %vm273, %v2485, 0.0
    %2489 = vadd.xlane.f32.xlu0 %v2488
    %v2490 = vpop.xlane.xlu0 %2489
    %v2491 = vsel %vm273, %v2487, 0.0
    %2492 = vadd.xlane.f32.xlu0 %v2491
    %v2493 = vpop.xlane.xlu0 %2492
    %v2494 = vrcp.pop %v2490
    %v2495 = vrcp.pop %v2493
    %v2496 = vmul.f32 %v2485, %v2494
    %v2497 = vmul.f32 %v2487, %v2495
    %2498 = vrot.lane.b32.xlu0 %v2312, 64
    %v2499 = vpop.permute.xlu0 %2498
    %v2502 = vsel %vm273, %v2496, 0
    %2504 = vmatprep.subr.mxu0 0.0
    %2505 = vmatpush1.msra.mxu0 %v2499
    %2506 = vmatprep.subr.mxu0 0.0
    %2507 = vmatpush1.msra.mxu0 0.0
    %2508 = vmatprep.subr.mxu0 0.0
    %2509 = vmatpush1.msra.mxu0 0.0
    %2510 = vmatprep.subr.mxu0 0.0
    %2511 = vmatpush1.msra.mxu0 0.0
    %2512 = vmatprep.subr.mxu0 0.0
    %2513 = vmatpush1.msra.mxu0 0.0
    %2514 = vmatprep.subr.mxu0 0.0
    %2515 = vmatpush1.msra.mxu0 0.0
    %2516 = vmatprep.subr.mxu0 0.0
    %2517 = vmatpush1.msra.mxu0 0.0
    %2518 = vmatprep.subr.mxu0 0.0
    %2519 = vmatpush1.msra.mxu0 0.0
    %2520 = vmatprep.subr.mxu0 0.0
    %2521 = vmatpush1.msra.mxu0 0.0
    %2522 = vmatprep.subr.mxu0 0.0
    %2523 = vmatpush1.msra.mxu0 0.0
    %2524 = vmatprep.subr.mxu0 0.0
    %2525 = vmatpush1.msra.mxu0 0.0
    %2526 = vmatprep.subr.mxu0 0.0
    %2527 = vmatpush1.msra.mxu0 0.0
    %2528 = vmatprep.subr.mxu0 0.0
    %2529 = vmatpush1.msra.mxu0 0.0
    %2530 = vmatprep.subr.mxu0 0.0
    %2531 = vmatpush1.msra.mxu0 0.0
    %2532 = vmatprep.subr.mxu0 0.0
    %2533 = vmatpush1.msra.mxu0 0.0
    %2534 = vmatprep.subr.mxu0 0.0
    %2535 = vmatpush1.msra.mxu0 0.0
    %2536 = vmatprep.subr.mxu0 0.0
    %2537 = vmatpush1.msra.mxu0 0.0
    %2538 = vmatprep.subr.mxu0 0.0
    %2539 = vmatpush1.msra.mxu0 0.0
    %2540 = vmatprep.subr.mxu0 0.0
    %2541 = vmatpush1.msra.mxu0 0.0
    %2542 = vmatprep.subr.mxu0 0.0
    %2543 = vmatpush1.msra.mxu0 0.0
    %2544 = vmatprep.subr.mxu0 0.0
    %2545 = vmatpush1.msra.mxu0 0.0
    %2546 = vmatprep.subr.mxu0 0.0
    %2547 = vmatpush1.msra.mxu0 0.0
    %2548 = vmatprep.subr.mxu0 0.0
    %2549 = vmatpush1.msra.mxu0 0.0
    %2550 = vmatprep.subr.mxu0 0.0
    %2551 = vmatpush1.msra.mxu0 0.0
    %2552 = vmatprep.subr.mxu0 0.0
    %2553 = vmatpush1.msra.mxu0 0.0
    %2554 = vmatprep.subr.mxu0 0.0
    %2555 = vmatpush1.msra.mxu0 0.0
    %2556 = vmatprep.subr.mxu0 0.0
    %2557 = vmatpush1.msra.mxu0 0.0
    %2558 = vmatprep.subr.mxu0 0.0
    %2559 = vmatpush1.msra.mxu0 0.0
    %2560 = vmatprep.subr.mxu0 0.0
    %2561 = vmatpush1.msra.mxu0 0.0
    %2562 = vmatprep.subr.mxu0 0.0
    %2563 = vmatpush1.msra.mxu0 0.0
    %2564 = vmatprep.subr.mxu0 0.0
    %2565 = vmatpush1.msra.mxu0 0.0
    %2566 = vmatprep.subr.mxu0 0.0
    %2567 = vmatpush1.msra.mxu0 0.0
    %2568 = vmatprep.mubr.f32.mxu0 0.0
    %2569 = vmatmul.mubr.f32.gmra.mrb[0].mxu0 %v2502
    %v2570 = vpop.f32.mrb[0].mxu0
    %v2571 = vadd.f32 0.0, %v2570
    %v2572 = vpop.f32.mrb[0].mxu0
    %2573 = vdwg.mxu0
    %2574 = vrot.lane.b32.xlu0 %v2317, 64
    %v2575 = vpop.permute.xlu0 %2574
    %v2578 = vsel %vm273, %v2497, 0
    %2580 = vmatprep.subr.mxu0 0.0
    %2581 = vmatpush1.msra.mxu0 %v2575
    %2582 = vmatprep.subr.mxu0 0.0
    %2583 = vmatpush1.msra.mxu0 0.0
    %2584 = vmatprep.subr.mxu0 0.0
    %2585 = vmatpush1.msra.mxu0 0.0
    %2586 = vmatprep.subr.mxu0 0.0
    %2587 = vmatpush1.msra.mxu0 0.0
    %2588 = vmatprep.subr.mxu0 0.0
    %2589 = vmatpush1.msra.mxu0 0.0
    %2590 = vmatprep.subr.mxu0 0.0
    %2591 = vmatpush1.msra.mxu0 0.0
    %2592 = vmatprep.subr.mxu0 0.0
    %2593 = vmatpush1.msra.mxu0 0.0
    %2594 = vmatprep.subr.mxu0 0.0
    %2595 = vmatpush1.msra.mxu0 0.0
    %2596 = vmatprep.subr.mxu0 0.0
    %2597 = vmatpush1.msra.mxu0 0.0
    %2598 = vmatprep.subr.mxu0 0.0
    %2599 = vmatpush1.msra.mxu0 0.0
    %2600 = vmatprep.subr.mxu0 0.0
    %2601 = vmatpush1.msra.mxu0 0.0
    %2602 = vmatprep.subr.mxu0 0.0
    %2603 = vmatpush1.msra.mxu0 0.0
    %2604 = vmatprep.subr.mxu0 0.0
    %2605 = vmatpush1.msra.mxu0 0.0
    %2606 = vmatprep.subr.mxu0 0.0
    %2607 = vmatpush1.msra.mxu0 0.0
    %2608 = vmatprep.subr.mxu0 0.0
    %2609 = vmatpush1.msra.mxu0 0.0
    %2610 = vmatprep.subr.mxu0 0.0
    %2611 = vmatpush1.msra.mxu0 0.0
    %2612 = vmatprep.subr.mxu0 0.0
    %2613 = vmatpush1.msra.mxu0 0.0
    %2614 = vmatprep.subr.mxu0 0.0
    %2615 = vmatpush1.msra.mxu0 0.0
    %2616 = vmatprep.subr.mxu0 0.0
    %2617 = vmatpush1.msra.mxu0 0.0
    %2618 = vmatprep.subr.mxu0 0.0
    %2619 = vmatpush1.msra.mxu0 0.0
    %2620 = vmatprep.subr.mxu0 0.0
    %2621 = vmatpush1.msra.mxu0 0.0
    %2622 = vmatprep.subr.mxu0 0.0
    %2623 = vmatpush1.msra.mxu0 0.0
    %2624 = vmatprep.subr.mxu0 0.0
    %2625 = vmatpush1.msra.mxu0 0.0
    %2626 = vmatprep.subr.mxu0 0.0
    %2627 = vmatpush1.msra.mxu0 0.0
    %2628 = vmatprep.subr.mxu0 0.0
    %2629 = vmatpush1.msra.mxu0 0.0
    %2630 = vmatprep.subr.mxu0 0.0
    %2631 = vmatpush1.msra.mxu0 0.0
    %2632 = vmatprep.subr.mxu0 0.0
    %2633 = vmatpush1.msra.mxu0 0.0
    %2634 = vmatprep.subr.mxu0 0.0
    %2635 = vmatpush1.msra.mxu0 0.0
    %2636 = vmatprep.subr.mxu0 0.0
    %2637 = vmatpush1.msra.mxu0 0.0
    %2638 = vmatprep.subr.mxu0 0.0
    %2639 = vmatpush1.msra.mxu0 0.0
    %2640 = vmatprep.subr.mxu0 0.0
    %2641 = vmatpush1.msra.mxu0 0.0
    %2642 = vmatprep.subr.mxu0 0.0
    %2643 = vmatpush1.msra.mxu0 0.0
    %2644 = vmatprep.mubr.f32.mxu0 0.0
    %2645 = vmatmul.mubr.f32.gmra.mrb[0].mxu0 %v2578
    %v2646 = vpop.f32.mrb[0].mxu0
    %v2647 = vadd.f32 0.0, %v2646
    %v2648 = vpop.f32.mrb[0].mxu0
    %2649 = vdwg.mxu0
    %v2650 = vld [vmem:[#allocation2 + $0x158] sm:$0xff]
    %2651 = vrot.lane.b32.xlu0 %v2312, 120
    %v2652 = vpop.permute.xlu0 %2651
    %2653 = vrot.lane.b32.xlu0 %v2312, 88
    %v2654 = vpop.permute.xlu0 %2653
    %v2655 = vsel %vm273, %v2652, 0
    %v2657 = vsel %vm273, %v2654, 0
    %2659 = vmatprep.subr.mxu0 0.0
    %2660 = vmatpush1.xpose.msra.mxu0 %v2657
    %2661 = vmatprep.subr.mxu0 0.0
    %2662 = vmatpush1.xpose.msra.mxu0 0.0
    %2663 = vmatprep.subr.mxu0 0.0
    %2664 = vmatpush1.xpose.msra.mxu0 0.0
    %2665 = vmatprep.subr.mxu0 0.0
    %2666 = vmatpush1.xpose.msra.mxu0 0.0
    %2667 = vmatprep.subr.mxu0 0.0
    %2668 = vmatpush1.xpose.msra.mxu0 0.0
    %2669 = vmatprep.subr.mxu0 0.0
    %2670 = vmatpush1.xpose.msra.mxu0 0.0
    %2671 = vmatprep.subr.mxu0 0.0
    %2672 = vmatpush1.xpose.msra.mxu0 0.0
    %2673 = vmatprep.subr.mxu0 0.0
    %2674 = vmatpush1.xpose.msra.mxu0 0.0
    %2675 = vmatprep.subr.mxu0 0.0
    %2676 = vmatpush1.xpose.msra.mxu0 0.0
    %2677 = vmatprep.subr.mxu0 0.0
    %2678 = vmatpush1.xpose.msra.mxu0 0.0
    %2679 = vmatprep.subr.mxu0 0.0
    %2680 = vmatpush1.xpose.msra.mxu0 0.0
    %2681 = vmatprep.subr.mxu0 0.0
    %2682 = vmatpush1.xpose.msra.mxu0 0.0
    %2683 = vmatprep.subr.mxu0 0.0
    %2684 = vmatpush1.xpose.msra.mxu0 0.0
    %2685 = vmatprep.subr.mxu0 0.0
    %2686 = vmatpush1.xpose.msra.mxu0 0.0
    %2687 = vmatprep.subr.mxu0 0.0
    %2688 = vmatpush1.xpose.msra.mxu0 0.0
    %2689 = vmatprep.subr.mxu0 0.0
    %2690 = vmatpush1.xpose.msra.mxu0 0.0
    %2691 = vmatprep.subr.mxu0 0.0
    %2692 = vmatpush1.xpose.msra.mxu0 0.0
    %2693 = vmatprep.subr.mxu0 0.0
    %2694 = vmatpush1.xpose.msra.mxu0 0.0
    %2695 = vmatprep.subr.mxu0 0.0
    %2696 = vmatpush1.xpose.msra.mxu0 0.0
    %2697 = vmatprep.subr.mxu0 0.0
    %2698 = vmatpush1.xpose.msra.mxu0 0.0
    %2699 = vmatprep.subr.mxu0 0.0
    %2700 = vmatpush1.xpose.msra.mxu0 0.0
    %2701 = vmatprep.subr.mxu0 0.0
    %2702 = vmatpush1.xpose.msra.mxu0 0.0
    %2703 = vmatprep.subr.mxu0 0.0
    %2704 = vmatpush1.xpose.msra.mxu0 0.0
    %2705 = vmatprep.subr.mxu0 0.0
    %2706 = vmatpush1.xpose.msra.mxu0 0.0
    %2707 = vmatprep.subr.mxu0 0.0
    %2708 = vmatpush1.xpose.msra.mxu0 0.0
    %2709 = vmatprep.subr.mxu0 0.0
    %2710 = vmatpush1.xpose.msra.mxu0 0.0
    %2711 = vmatprep.subr.mxu0 0.0
    %2712 = vmatpush1.xpose.msra.mxu0 0.0
    %2713 = vmatprep.subr.mxu0 0.0
    %2714 = vmatpush1.xpose.msra.mxu0 0.0
    %2715 = vmatprep.subr.mxu0 0.0
    %2716 = vmatpush1.xpose.msra.mxu0 0.0
    %2717 = vmatprep.subr.mxu0 0.0
    %2718 = vmatpush1.xpose.msra.mxu0 0.0
    %2719 = vmatprep.subr.mxu0 0.0
    %2720 = vmatpush1.xpose.msra.mxu0 0.0
    %2721 = vmatprep.subr.mxu0 0.0
    %2722 = vmatpush1.xpose.msra.mxu0 0.0
    %2723 = vmatprep.mubr.f32.mxu0 0.0
    %2724 = vmatmul.mubr.f32.gmra.mrb[0].mxu0 %v2655
    %v2725 = vpop.f32.mrb[0].mxu0
    %v2726 = vadd.f32 0.0, %v2725
    %v2727 = vpop.f32.mrb[0].mxu0
    %2728 = vdwg.mxu0
    %2729 = vrot.lane.b32.xlu0 %v2317, 120
    %v2730 = vpop.permute.xlu0 %2729
    %2731 = vrot.lane.b32.xlu0 %v2317, 88
    %v2732 = vpop.permute.xlu0 %2731
    %v2733 = vsel %vm273, %v2730, 0
    %v2735 = vsel %vm273, %v2732, 0
    %2737 = vmatprep.subr.mxu0 0.0
    %2738 = vmatpush1.xpose.msra.mxu0 %v2735
    %2739 = vmatprep.subr.mxu0 0.0
    %2740 = vmatpush1.xpose.msra.mxu0 0.0
    %2741 = vmatprep.subr.mxu0 0.0
    %2742 = vmatpush1.xpose.msra.mxu0 0.0
    %2743 = vmatprep.subr.mxu0 0.0
    %2744 = vmatpush1.xpose.msra.mxu0 0.0
    %2745 = vmatprep.subr.mxu0 0.0
    %2746 = vmatpush1.xpose.msra.mxu0 0.0
    %2747 = vmatprep.subr.mxu0 0.0
    %2748 = vmatpush1.xpose.msra.mxu0 0.0
    %2749 = vmatprep.subr.mxu0 0.0
    %2750 = vmatpush1.xpose.msra.mxu0 0.0
    %2751 = vmatprep.subr.mxu0 0.0
    %2752 = vmatpush1.xpose.msra.mxu0 0.0
    %2753 = vmatprep.subr.mxu0 0.0
    %2754 = vmatpush1.xpose.msra.mxu0 0.0
    %2755 = vmatprep.subr.mxu0 0.0
    %2756 = vmatpush1.xpose.msra.mxu0 0.0
    %2757 = vmatprep.subr.mxu0 0.0
    %2758 = vmatpush1.xpose.msra.mxu0 0.0
    %2759 = vmatprep.subr.mxu0 0.0
    %2760 = vmatpush1.xpose.msra.mxu0 0.0
    %2761 = vmatprep.subr.mxu0 0.0
    %2762 = vmatpush1.xpose.msra.mxu0 0.0
    %2763 = vmatprep.subr.mxu0 0.0
    %2764 = vmatpush1.xpose.msra.mxu0 0.0
    %2765 = vmatprep.subr.mxu0 0.0
    %2766 = vmatpush1.xpose.msra.mxu0 0.0
    %2767 = vmatprep.subr.mxu0 0.0
    %2768 = vmatpush1.xpose.msra.mxu0 0.0
    %2769 = vmatprep.subr.mxu0 0.0
    %2770 = vmatpush1.xpose.msra.mxu0 0.0
    %2771 = vmatprep.subr.mxu0 0.0
    %2772 = vmatpush1.xpose.msra.mxu0 0.0
    %2773 = vmatprep.subr.mxu0 0.0
    %2774 = vmatpush1.xpose.msra.mxu0 0.0
    %2775 = vmatprep.subr.mxu0 0.0
    %2776 = vmatpush1.xpose.msra.mxu0 0.0
    %2777 = vmatprep.subr.mxu0 0.0
    %2778 = vmatpush1.xpose.msra.mxu0 0.0
    %2779 = vmatprep.subr.mxu0 0.0
    %2780 = vmatpush1.xpose.msra.mxu0 0.0
    %2781 = vmatprep.subr.mxu0 0.0
    %2782 = vmatpush1.xpose.msra.mxu0 0.0
    %2783 = vmatprep.subr.mxu0 0.0
    %2784 = vmatpush1.xpose.msra.mxu0 0.0
    %2785 = vmatprep.subr.mxu0 0.0
    %2786 = vmatpush1.xpose.msra.mxu0 0.0
    %2787 = vmatprep.subr.mxu0 0.0
    %2788 = vmatpush1.xpose.msra.mxu0 0.0
    %2789 = vmatprep.subr.mxu0 0.0
    %2790 = vmatpush1.xpose.msra.mxu0 0.0
    %2791 = vmatprep.subr.mxu0 0.0
    %2792 = vmatpush1.xpose.msra.mxu0 0.0
    %2793 = vmatprep.subr.mxu0 0.0
    %2794 = vmatpush1.xpose.msra.mxu0 0.0
    %2795 = vmatprep.subr.mxu0 0.0
    %2796 = vmatpush1.xpose.msra.mxu0 0.0
    %2797 = vmatprep.subr.mxu0 0.0
    %2798 = vmatpush1.xpose.msra.mxu0 0.0
    %2799 = vmatprep.subr.mxu0 0.0
    %2800 = vmatpush1.xpose.msra.mxu0 0.0
    %2801 = vmatprep.mubr.f32.mxu0 0.0
    %2802 = vmatmul.mubr.f32.gmra.mrb[0].mxu0 %v2733
    %v2803 = vpop.f32.mrb[0].mxu0
    %v2804 = vadd.f32 0.0, %v2803
    %v2805 = vpop.f32.mrb[0].mxu0
    %2806 = vdwg.mxu0
    %v2807 = vmul.f32 %v2726, 0.35355338
    %v2808 = vmul.f32 %v2804, 0.35355338
    %v2809 = vsel %vm273, %v2807, -inf
    %2810 = vmax.xlane.f32.xlu0 %v2809
    %v2811 = vpop.xlane.xlu0 %2810
    %v2812 = vsel %vm273, %v2808, -inf
    %2813 = vmax.xlane.f32.xlu0 %v2812
    %v2814 = vpop.xlane.xlu0 %2813
    %v2815 = vsub.f32 %v2807, %v2811
    %v2816 = vsub.f32 %v2808, %v2814
    %v2817 = vmul.f32 %v2815, 1.442695
    %v2818 = vpow.pop %v2817
    %v2819 = vmul.f32 %v2816, 1.442695
    %v2820 = vpow.pop %v2819
    %v2821 = vsel %vm273, %v2818, 0.0
    %2822 = vadd.xlane.f32.xlu0 %v2821
    %v2823 = vpop.xlane.xlu0 %2822
    %v2824 = vsel %vm273, %v2820, 0.0
    %2825 = vadd.xlane.f32.xlu0 %v2824
    %v2826 = vpop.xlane.xlu0 %2825
    %v2827 = vrcp.pop %v2823
    %v2828 = vrcp.pop %v2826
    %v2829 = vmul.f32 %v2818, %v2827
    %v2830 = vmul.f32 %v2820, %v2828
    %2831 = vrot.lane.b32.xlu0 %v2312, 56
    %v2832 = vpop.permute.xlu0 %2831
    %v2835 = vsel %vm273, %v2829, 0
    %2837 = vmatprep.subr.mxu0 0.0
    %2838 = vmatpush1.msra.mxu0 %v2832
    %2839 = vmatprep.subr.mxu0 0.0
    %2840 = vmatpush1.msra.mxu0 0.0
    %2841 = vmatprep.subr.mxu0 0.0
    %2842 = vmatpush1.msra.mxu0 0.0
    %2843 = vmatprep.subr.mxu0 0.0
    %2844 = vmatpush1.msra.mxu0 0.0
    %2845 = vmatprep.subr.mxu0 0.0
    %2846 = vmatpush1.msra.mxu0 0.0
    %2847 = vmatprep.subr.mxu0 0.0
    %2848 = vmatpush1.msra.mxu0 0.0
    %2849 = vmatprep.subr.mxu0 0.0
    %2850 = vmatpush1.msra.mxu0 0.0
    %2851 = vmatprep.subr.mxu0 0.0
    %2852 = vmatpush1.msra.mxu0 0.0
    %2853 = vmatprep.subr.mxu0 0.0
    %2854 = vmatpush1.msra.mxu0 0.0
    %2855 = vmatprep.subr.mxu0 0.0
    %2856 = vmatpush1.msra.mxu0 0.0
    %2857 = vmatprep.subr.mxu0 0.0
    %2858 = vmatpush1.msra.mxu0 0.0
    %2859 = vmatprep.subr.mxu0 0.0
    %2860 = vmatpush1.msra.mxu0 0.0
    %2861 = vmatprep.subr.mxu0 0.0
    %2862 = vmatpush1.msra.mxu0 0.0
    %2863 = vmatprep.subr.mxu0 0.0
    %2864 = vmatpush1.msra.mxu0 0.0
    %2865 = vmatprep.subr.mxu0 0.0
    %2866 = vmatpush1.msra.mxu0 0.0
    %2867 = vmatprep.subr.mxu0 0.0
    %2868 = vmatpush1.msra.mxu0 0.0
    %2869 = vmatprep.subr.mxu0 0.0
    %2870 = vmatpush1.msra.mxu0 0.0
    %2871 = vmatprep.subr.mxu0 0.0
    %2872 = vmatpush1.msra.mxu0 0.0
    %2873 = vmatprep.subr.mxu0 0.0
    %2874 = vmatpush1.msra.mxu0 0.0
    %2875 = vmatprep.subr.mxu0 0.0
    %2876 = vmatpush1.msra.mxu0 0.0
    %2877 = vmatprep.subr.mxu0 0.0
    %2878 = vmatpush1.msra.mxu0 0.0
    %2879 = vmatprep.subr.mxu0 0.0
    %2880 = vmatpush1.msra.mxu0 0.0
    %2881 = vmatprep.subr.mxu0 0.0
    %2882 = vmatpush1.msra.mxu0 0.0
    %2883 = vmatprep.subr.mxu0 0.0
    %2884 = vmatpush1.msra.mxu0 0.0
    %2885 = vmatprep.subr.mxu0 0.0
    %2886 = vmatpush1.msra.mxu0 0.0
    %2887 = vmatprep.subr.mxu0 0.0
    %2888 = vmatpush1.msra.mxu0 0.0
    %2889 = vmatprep.subr.mxu0 0.0
    %2890 = vmatpush1.msra.mxu0 0.0
    %2891 = vmatprep.subr.mxu0 0.0
    %2892 = vmatpush1.msra.mxu0 0.0
    %2893 = vmatprep.subr.mxu0 0.0
    %2894 = vmatpush1.msra.mxu0 0.0
    %2895 = vmatprep.subr.mxu0 0.0
    %2896 = vmatpush1.msra.mxu0 0.0
    %2897 = vmatprep.subr.mxu0 0.0
    %2898 = vmatpush1.msra.mxu0 0.0
    %2899 = vmatprep.subr.mxu0 0.0
    %2900 = vmatpush1.msra.mxu0 0.0
    %2901 = vmatprep.mubr.f32.mxu0 0.0
    %2902 = vmatmul.mubr.f32.gmra.mrb[0].mxu0 %v2835
    %v2903 = vpop.f32.mrb[0].mxu0
    %v2904 = vadd.f32 0.0, %v2903
    %v2905 = vpop.f32.mrb[0].mxu0
    %2906 = vdwg.mxu0
    %2907 = vrot.lane.b32.xlu0 %v2317, 56
    %v2908 = vpop.permute.xlu0 %2907
    %v2911 = vsel %vm273, %v2830, 0
    %2913 = vmatprep.subr.mxu0 0.0
    %2914 = vmatpush1.msra.mxu0 %v2908
    %2915 = vmatprep.subr.mxu0 0.0
    %2916 = vmatpush1.msra.mxu0 0.0
    %2917 = vmatprep.subr.mxu0 0.0
    %2918 = vmatpush1.msra.mxu0 0.0
    %2919 = vmatprep.subr.mxu0 0.0
    %2920 = vmatpush1.msra.mxu0 0.0
    %2921 = vmatprep.subr.mxu0 0.0
    %2922 = vmatpush1.msra.mxu0 0.0
    %2923 = vmatprep.subr.mxu0 0.0
    %2924 = vmatpush1.msra.mxu0 0.0
    %2925 = vmatprep.subr.mxu0 0.0
    %2926 = vmatpush1.msra.mxu0 0.0
    %2927 = vmatprep.subr.mxu0 0.0
    %2928 = vmatpush1.msra.mxu0 0.0
    %2929 = vmatprep.subr.mxu0 0.0
    %2930 = vmatpush1.msra.mxu0 0.0
    %2931 = vmatprep.subr.mxu0 0.0
    %2932 = vmatpush1.msra.mxu0 0.0
    %2933 = vmatprep.subr.mxu0 0.0
    %2934 = vmatpush1.msra.mxu0 0.0
    %2935 = vmatprep.subr.mxu0 0.0
    %2936 = vmatpush1.msra.mxu0 0.0
    %2937 = vmatprep.subr.mxu0 0.0
    %2938 = vmatpush1.msra.mxu0 0.0
    %2939 = vmatprep.subr.mxu0 0.0
    %2940 = vmatpush1.msra.mxu0 0.0
    %2941 = vmatprep.subr.mxu0 0.0
    %2942 = vmatpush1.msra.mxu0 0.0
    %2943 = vmatprep.subr.mxu0 0.0
    %2944 = vmatpush1.msra.mxu0 0.0
    %2945 = vmatprep.subr.mxu0 0.0
    %2946 = vmatpush1.msra.mxu0 0.0
    %2947 = vmatprep.subr.mxu0 0.0
    %2948 = vmatpush1.msra.mxu0 0.0
    %2949 = vmatprep.subr.mxu0 0.0
    %2950 = vmatpush1.msra.mxu0 0.0
    %2951 = vmatprep.subr.mxu0 0.0
    %2952 = vmatpush1.msra.mxu0 0.0
    %2953 = vmatprep.subr.mxu0 0.0
    %2954 = vmatpush1.msra.mxu0 0.0
    %2955 = vmatprep.subr.mxu0 0.0
    %2956 = vmatpush1.msra.mxu0 0.0
    %2957 = vmatprep.subr.mxu0 0.0
    %2958 = vmatpush1.msra.mxu0 0.0
    %2959 = vmatprep.subr.mxu0 0.0
    %2960 = vmatpush1.msra.mxu0 0.0
    %2961 = vmatprep.subr.mxu0 0.0
    %2962 = vmatpush1.msra.mxu0 0.0
    %2963 = vmatprep.subr.mxu0 0.0
    %2964 = vmatpush1.msra.mxu0 0.0
    %2965 = vmatprep.subr.mxu0 0.0
    %2966 = vmatpush1.msra.mxu0 0.0
    %2967 = vmatprep.subr.mxu0 0.0
    %2968 = vmatpush1.msra.mxu0 0.0
    %2969 = vmatprep.subr.mxu0 0.0
    %2970 = vmatpush1.msra.mxu0 0.0
    %2971 = vmatprep.subr.mxu0 0.0
    %2972 = vmatpush1.msra.mxu0 0.0
    %2973 = vmatprep.subr.mxu0 0.0
    %2974 = vmatpush1.msra.mxu0 0.0
    %2975 = vmatprep.subr.mxu0 0.0
    %2976 = vmatpush1.msra.mxu0 0.0
    %2977 = vmatprep.mubr.f32.mxu0 0.0
    %2978 = vmatmul.mubr.f32.gmra.mrb[0].mxu0 %v2911
    %v2979 = vpop.f32.mrb[0].mxu0
    %v2980 = vadd.f32 0.0, %v2979
    %v2981 = vpop.f32.mrb[0].mxu0
    %2982 = vdwg.mxu0
    %v2983 = vld [vmem:[#allocation2 + $0x160] sm:$0xff]
    %v2985 = vsel %vm273, %v2904, 0
    %v2988 = vsel %vm273, %v2980, 0
    %2990 = vmatprep.subr.mxu0 0.0
    %2991 = vmatpush1.msra.mxu0 %v2983
    %2992 = vmatprep.subr.mxu0 0.0
    %2993 = vmatpush1.msra.mxu0 0.0
    %2994 = vmatprep.subr.mxu0 0.0
    %2995 = vmatpush1.msra.mxu0 0.0
    %2996 = vmatprep.subr.mxu0 0.0
    %2997 = vmatpush1.msra.mxu0 0.0
    %2998 = vmatprep.subr.mxu0 0.0
    %2999 = vmatpush1.msra.mxu0 0.0
    %3000 = vmatprep.subr.mxu0 0.0
    %3001 = vmatpush1.msra.mxu0 0.0
    %3002 = vmatprep.subr.mxu0 0.0
    %3003 = vmatpush1.msra.mxu0 0.0
    %3004 = vmatprep.subr.mxu0 0.0
    %3005 = vmatpush1.msra.mxu0 0.0
    %3006 = vmatprep.subr.mxu0 0.0
    %3007 = vmatpush1.msra.mxu0 0.0
    %3008 = vmatprep.subr.mxu0 0.0
    %3009 = vmatpush1.msra.mxu0 0.0
    %3010 = vmatprep.subr.mxu0 0.0
    %3011 = vmatpush1.msra.mxu0 0.0
    %3012 = vmatprep.subr.mxu0 0.0
    %3013 = vmatpush1.msra.mxu0 0.0
    %3014 = vmatprep.subr.mxu0 0.0
    %3015 = vmatpush1.msra.mxu0 0.0
    %3016 = vmatprep.subr.mxu0 0.0
    %3017 = vmatpush1.msra.mxu0 0.0
    %3018 = vmatprep.subr.mxu0 0.0
    %3019 = vmatpush1.msra.mxu0 0.0
    %3020 = vmatprep.subr.mxu0 0.0
    %3021 = vmatpush1.msra.mxu0 0.0
    %3022 = vmatprep.subr.mxu0 0.0
    %3023 = vmatpush1.msra.mxu0 0.0
    %3024 = vmatprep.subr.mxu0 0.0
    %3025 = vmatpush1.msra.mxu0 0.0
    %3026 = vmatprep.subr.mxu0 0.0
    %3027 = vmatpush1.msra.mxu0 0.0
    %3028 = vmatprep.subr.mxu0 0.0
    %3029 = vmatpush1.msra.mxu0 0.0
    %3030 = vmatprep.subr.mxu0 0.0
    %3031 = vmatpush1.msra.mxu0 0.0
    %3032 = vmatprep.subr.mxu0 0.0
    %3033 = vmatpush1.msra.mxu0 0.0
    %3034 = vmatprep.subr.mxu0 0.0
    %3035 = vmatpush1.msra.mxu0 0.0
    %3036 = vmatprep.subr.mxu0 0.0
    %3037 = vmatpush1.msra.mxu0 0.0
    %3038 = vmatprep.subr.mxu0 0.0
    %3039 = vmatpush1.msra.mxu0 0.0
    %3040 = vmatprep.subr.mxu0 0.0
    %3041 = vmatpush1.msra.mxu0 0.0
    %3042 = vmatprep.subr.mxu0 0.0
    %3043 = vmatpush1.msra.mxu0 0.0
    %3044 = vmatprep.subr.mxu0 0.0
    %3045 = vmatpush1.msra.mxu0 0.0
    %3046 = vmatprep.subr.mxu0 0.0
    %3047 = vmatpush1.msra.mxu0 0.0
    %3048 = vmatprep.subr.mxu0 0.0
    %3049 = vmatpush1.msra.mxu0 0.0
    %3050 = vmatprep.subr.mxu0 0.0
    %3051 = vmatpush1.msra.mxu0 0.0
    %3052 = vmatprep.subr.mxu0 0.0
    %3053 = vmatpush1.msra.mxu0 0.0
    %3054 = vmatprep.mubr.f32.mxu0 0.0
    %3055 = vmatmul.mubr.f32.gmra.mrb[0].mxu0 %v2985
    %v3056 = vpop.f32.mrb[0].mxu0
    %v3057 = vadd.f32 0.0, %v3056
    %v3058 = vpop.f32.mrb[0].mxu0
    %3059 = vmatprep.mubr.f32.mxu0 0.0
    %3060 = vmatmul.mubr.f32.gmra.mrb[0].mxu0 %v2988
    %v3061 = vpop.f32.mrb[0].mxu0
    %v3062 = vadd.f32 0.0, %v3061
    %v3063 = vpop.f32.mrb[0].mxu0
    %3064 = vdwg.mxu0
    %3065 = vrot.lane.b32.xlu0 %v2312, 112
    %v3066 = vpop.permute.xlu0 %3065
    %3067 = vrot.lane.b32.xlu0 %v2312, 80
    %v3068 = vpop.permute.xlu0 %3067
    %v3069 = vsel %vm273, %v3066, 0
    %v3071 = vsel %vm273, %v3068, 0
    %3073 = vmatprep.subr.mxu0 0.0
    %3074 = vmatpush1.xpose.msra.mxu0 %v3071
    %3075 = vmatprep.subr.mxu0 0.0
    %3076 = vmatpush1.xpose.msra.mxu0 0.0
    %3077 = vmatprep.subr.mxu0 0.0
    %3078 = vmatpush1.xpose.msra.mxu0 0.0
    %3079 = vmatprep.subr.mxu0 0.0
    %3080 = vmatpush1.xpose.msra.mxu0 0.0
    %3081 = vmatprep.subr.mxu0 0.0
    %3082 = vmatpush1.xpose.msra.mxu0 0.0
    %3083 = vmatprep.subr.mxu0 0.0
    %3084 = vmatpush1.xpose.msra.mxu0 0.0
    %3085 = vmatprep.subr.mxu0 0.0
    %3086 = vmatpush1.xpose.msra.mxu0 0.0
    %3087 = vmatprep.subr.mxu0 0.0
    %3088 = vmatpush1.xpose.msra.mxu0 0.0
    %3089 = vmatprep.subr.mxu0 0.0
    %3090 = vmatpush1.xpose.msra.mxu0 0.0
    %3091 = vmatprep.subr.mxu0 0.0
    %3092 = vmatpush1.xpose.msra.mxu0 0.0
    %3093 = vmatprep.subr.mxu0 0.0
    %3094 = vmatpush1.xpose.msra.mxu0 0.0
    %3095 = vmatprep.subr.mxu0 0.0
    %3096 = vmatpush1.xpose.msra.mxu0 0.0
    %3097 = vmatprep.subr.mxu0 0.0
    %3098 = vmatpush1.xpose.msra.mxu0 0.0
    %3099 = vmatprep.subr.mxu0 0.0
    %3100 = vmatpush1.xpose.msra.mxu0 0.0
    %3101 = vmatprep.subr.mxu0 0.0
    %3102 = vmatpush1.xpose.msra.mxu0 0.0
    %3103 = vmatprep.subr.mxu0 0.0
    %3104 = vmatpush1.xpose.msra.mxu0 0.0
    %3105 = vmatprep.subr.mxu0 0.0
    %3106 = vmatpush1.xpose.msra.mxu0 0.0
    %3107 = vmatprep.subr.mxu0 0.0
    %3108 = vmatpush1.xpose.msra.mxu0 0.0
    %3109 = vmatprep.subr.mxu0 0.0
    %3110 = vmatpush1.xpose.msra.mxu0 0.0
    %3111 = vmatprep.subr.mxu0 0.0
    %3112 = vmatpush1.xpose.msra.mxu0 0.0
    %3113 = vmatprep.subr.mxu0 0.0
    %3114 = vmatpush1.xpose.msra.mxu0 0.0
    %3115 = vmatprep.subr.mxu0 0.0
    %3116 = vmatpush1.xpose.msra.mxu0 0.0
    %3117 = vmatprep.subr.mxu0 0.0
    %3118 = vmatpush1.xpose.msra.mxu0 0.0
    %3119 = vmatprep.subr.mxu0 0.0
    %3120 = vmatpush1.xpose.msra.mxu0 0.0
    %3121 = vmatprep.subr.mxu0 0.0
    %3122 = vmatpush1.xpose.msra.mxu0 0.0
    %3123 = vmatprep.subr.mxu0 0.0
    %3124 = vmatpush1.xpose.msra.mxu0 0.0
    %3125 = vmatprep.subr.mxu0 0.0
    %3126 = vmatpush1.xpose.msra.mxu0 0.0
    %3127 = vmatprep.subr.mxu0 0.0
    %3128 = vmatpush1.xpose.msra.mxu0 0.0
    %3129 = vmatprep.subr.mxu0 0.0
    %3130 = vmatpush1.xpose.msra.mxu0 0.0
    %3131 = vmatprep.subr.mxu0 0.0
    %3132 = vmatpush1.xpose.msra.mxu0 0.0
    %3133 = vmatprep.subr.mxu0 0.0
    %3134 = vmatpush1.xpose.msra.mxu0 0.0
    %3135 = vmatprep.subr.mxu0 0.0
    %3136 = vmatpush1.xpose.msra.mxu0 0.0
    %3137 = vmatprep.mubr.f32.mxu0 0.0
    %3138 = vmatmul.mubr.f32.gmra.mrb[0].mxu0 %v3069
    %v3139 = vpop.f32.mrb[0].mxu0
    %v3140 = vadd.f32 0.0, %v3139
    %v3141 = vpop.f32.mrb[0].mxu0
    %3142 = vdwg.mxu0
    %3143 = vrot.lane.b32.xlu0 %v2317, 112
    %v3144 = vpop.permute.xlu0 %3143
    %3145 = vrot.lane.b32.xlu0 %v2317, 80
    %v3146 = vpop.permute.xlu0 %3145
    %v3147 = vsel %vm273, %v3144, 0
    %v3149 = vsel %vm273, %v3146, 0
    %3151 = vmatprep.subr.mxu0 0.0
    %3152 = vmatpush1.xpose.msra.mxu0 %v3149
    %3153 = vmatprep.subr.mxu0 0.0
    %3154 = vmatpush1.xpose.msra.mxu0 0.0
    %3155 = vmatprep.subr.mxu0 0.0
    %3156 = vmatpush1.xpose.msra.mxu0 0.0
    %3157 = vmatprep.subr.mxu0 0.0
    %3158 = vmatpush1.xpose.msra.mxu0 0.0
    %3159 = vmatprep.subr.mxu0 0.0
    %3160 = vmatpush1.xpose.msra.mxu0 0.0
    %3161 = vmatprep.subr.mxu0 0.0
    %3162 = vmatpush1.xpose.msra.mxu0 0.0
    %3163 = vmatprep.subr.mxu0 0.0
    %3164 = vmatpush1.xpose.msra.mxu0 0.0
    %3165 = vmatprep.subr.mxu0 0.0
    %3166 = vmatpush1.xpose.msra.mxu0 0.0
    %3167 = vmatprep.subr.mxu0 0.0
    %3168 = vmatpush1.xpose.msra.mxu0 0.0
    %3169 = vmatprep.subr.mxu0 0.0
    %3170 = vmatpush1.xpose.msra.mxu0 0.0
    %3171 = vmatprep.subr.mxu0 0.0
    %3172 = vmatpush1.xpose.msra.mxu0 0.0
    %3173 = vmatprep.subr.mxu0 0.0
    %3174 = vmatpush1.xpose.msra.mxu0 0.0
    %3175 = vmatprep.subr.mxu0 0.0
    %3176 = vmatpush1.xpose.msra.mxu0 0.0
    %3177 = vmatprep.subr.mxu0 0.0
    %3178 = vmatpush1.xpose.msra.mxu0 0.0
    %3179 = vmatprep.subr.mxu0 0.0
    %3180 = vmatpush1.xpose.msra.mxu0 0.0
    %3181 = vmatprep.subr.mxu0 0.0
    %3182 = vmatpush1.xpose.msra.mxu0 0.0
    %3183 = vmatprep.subr.mxu0 0.0
    %3184 = vmatpush1.xpose.msra.mxu0 0.0
    %3185 = vmatprep.subr.mxu0 0.0
    %3186 = vmatpush1.xpose.msra.mxu0 0.0
    %3187 = vmatprep.subr.mxu0 0.0
    %3188 = vmatpush1.xpose.msra.mxu0 0.0
    %3189 = vmatprep.subr.mxu0 0.0
    %3190 = vmatpush1.xpose.msra.mxu0 0.0
    %3191 = vmatprep.subr.mxu0 0.0
    %3192 = vmatpush1.xpose.msra.mxu0 0.0
    %3193 = vmatprep.subr.mxu0 0.0
    %3194 = vmatpush1.xpose.msra.mxu0 0.0
    %3195 = vmatprep.subr.mxu0 0.0
    %3196 = vmatpush1.xpose.msra.mxu0 0.0
    %3197 = vmatprep.subr.mxu0 0.0
    %3198 = vmatpush1.xpose.msra.mxu0 0.0
    %3199 = vmatprep.subr.mxu0 0.0
    %3200 = vmatpush1.xpose.msra.mxu0 0.0
    %3201 = vmatprep.subr.mxu0 0.0
    %3202 = vmatpush1.xpose.msra.mxu0 0.0
    %3203 = vmatprep.subr.mxu0 0.0
    %3204 = vmatpush1.xpose.msra.mxu0 0.0
    %3205 = vmatprep.subr.mxu0 0.0
    %3206 = vmatpush1.xpose.msra.mxu0 0.0
    %3207 = vmatprep.subr.mxu0 0.0
    %3208 = vmatpush1.xpose.msra.mxu0 0.0
    %3209 = vmatprep.subr.mxu0 0.0
    %3210 = vmatpush1.xpose.msra.mxu0 0.0
    %3211 = vmatprep.subr.mxu0 0.0
    %3212 = vmatpush1.xpose.msra.mxu0 0.0
    %3213 = vmatprep.subr.mxu0 0.0
    %3214 = vmatpush1.xpose.msra.mxu0 0.0
    %3215 = vmatprep.mubr.f32.mxu0 0.0
    %3216 = vmatmul.mubr.f32.gmra.mrb[0].mxu0 %v3147
    %v3217 = vpop.f32.mrb[0].mxu0
    %v3218 = vadd.f32 0.0, %v3217
    %v3219 = vpop.f32.mrb[0].mxu0
    %3220 = vdwg.mxu0
    %v3221 = vmul.f32 %v3140, 0.35355338
    %v3222 = vmul.f32 %v3218, 0.35355338
    %v3223 = vsel %vm273, %v3221, -inf
    %3224 = vmax.xlane.f32.xlu0 %v3223
    %v3225 = vpop.xlane.xlu0 %3224
    %v3226 = vsel %vm273, %v3222, -inf
    %3227 = vmax.xlane.f32.xlu0 %v3226
    %v3228 = vpop.xlane.xlu0 %3227
    %v3229 = vsub.f32 %v3221, %v3225
    %v3230 = vsub.f32 %v3222, %v3228
    %v3231 = vmul.f32 %v3229, 1.442695
    %v3232 = vpow.pop %v3231
    %v3233 = vmul.f32 %v3230, 1.442695
    %v3234 = vpow.pop %v3233
    %v3235 = vsel %vm273, %v3232, 0.0
    %3236 = vadd.xlane.f32.xlu0 %v3235
    %v3237 = vpop.xlane.xlu0 %3236
    %v3238 = vsel %vm273, %v3234, 0.0
    %3239 = vadd.xlane.f32.xlu0 %v3238
    %v3240 = vpop.xlane.xlu0 %3239
    %v3241 = vrcp.pop %v3237
    %v3242 = vrcp.pop %v3240
    %v3243 = vmul.f32 %v3232, %v3241
    %v3244 = vmul.f32 %v3234, %v3242
    %3245 = vrot.lane.b32.xlu0 %v2312, 48
    %v3246 = vpop.permute.xlu0 %3245
    %v3249 = vsel %vm273, %v3243, 0
    %3251 = vmatprep.subr.mxu0 0.0
    %3252 = vmatpush1.msra.mxu0 %v3246
    %3253 = vmatprep.subr.mxu0 0.0
    %3254 = vmatpush1.msra.mxu0 0.0
    %3255 = vmatprep.subr.mxu0 0.0
    %3256 = vmatpush1.msra.mxu0 0.0
    %3257 = vmatprep.subr.mxu0 0.0
    %3258 = vmatpush1.msra.mxu0 0.0
    %3259 = vmatprep.subr.mxu0 0.0
    %3260 = vmatpush1.msra.mxu0 0.0
    %3261 = vmatprep.subr.mxu0 0.0
    %3262 = vmatpush1.msra.mxu0 0.0
    %3263 = vmatprep.subr.mxu0 0.0
    %3264 = vmatpush1.msra.mxu0 0.0
    %3265 = vmatprep.subr.mxu0 0.0
    %3266 = vmatpush1.msra.mxu0 0.0
    %3267 = vmatprep.subr.mxu0 0.0
    %3268 = vmatpush1.msra.mxu0 0.0
    %3269 = vmatprep.subr.mxu0 0.0
    %3270 = vmatpush1.msra.mxu0 0.0
    %3271 = vmatprep.subr.mxu0 0.0
    %3272 = vmatpush1.msra.mxu0 0.0
    %3273 = vmatprep.subr.mxu0 0.0
    %3274 = vmatpush1.msra.mxu0 0.0
    %3275 = vmatprep.subr.mxu0 0.0
    %3276 = vmatpush1.msra.mxu0 0.0
    %3277 = vmatprep.subr.mxu0 0.0
    %3278 = vmatpush1.msra.mxu0 0.0
    %3279 = vmatprep.subr.mxu0 0.0
    %3280 = vmatpush1.msra.mxu0 0.0
    %3281 = vmatprep.subr.mxu0 0.0
    %3282 = vmatpush1.msra.mxu0 0.0
    %3283 = vmatprep.subr.mxu0 0.0
    %3284 = vmatpush1.msra.mxu0 0.0
    %3285 = vmatprep.subr.mxu0 0.0
    %3286 = vmatpush1.msra.mxu0 0.0
    %3287 = vmatprep.subr.mxu0 0.0
    %3288 = vmatpush1.msra.mxu0 0.0
    %3289 = vmatprep.subr.mxu0 0.0
    %3290 = vmatpush1.msra.mxu0 0.0
    %3291 = vmatprep.subr.mxu0 0.0
    %3292 = vmatpush1.msra.mxu0 0.0
    %3293 = vmatprep.subr.mxu0 0.0
    %3294 = vmatpush1.msra.mxu0 0.0
    %3295 = vmatprep.subr.mxu0 0.0
    %3296 = vmatpush1.msra.mxu0 0.0
    %3297 = vmatprep.subr.mxu0 0.0
    %3298 = vmatpush1.msra.mxu0 0.0
    %3299 = vmatprep.subr.mxu0 0.0
    %3300 = vmatpush1.msra.mxu0 0.0
    %3301 = vmatprep.subr.mxu0 0.0
    %3302 = vmatpush1.msra.mxu0 0.0
    %3303 = vmatprep.subr.mxu0 0.0
    %3304 = vmatpush1.msra.mxu0 0.0
    %3305 = vmatprep.subr.mxu0 0.0
    %3306 = vmatpush1.msra.mxu0 0.0
    %3307 = vmatprep.subr.mxu0 0.0
    %3308 = vmatpush1.msra.mxu0 0.0
    %3309 = vmatprep.subr.mxu0 0.0
    %3310 = vmatpush1.msra.mxu0 0.0
    %3311 = vmatprep.subr.mxu0 0.0
    %3312 = vmatpush1.msra.mxu0 0.0
    %3313 = vmatprep.subr.mxu0 0.0
    %3314 = vmatpush1.msra.mxu0 0.0
    %3315 = vmatprep.mubr.f32.mxu0 0.0
    %3316 = vmatmul.mubr.f32.gmra.mrb[0].mxu0 %v3249
    %v3317 = vpop.f32.mrb[0].mxu0
    %v3318 = vadd.f32 0.0, %v3317
    %v3319 = vpop.f32.mrb[0].mxu0
    %3320 = vdwg.mxu0
    %3321 = vrot.lane.b32.xlu0 %v2317, 48
    %v3322 = vpop.permute.xlu0 %3321
    %v3325 = vsel %vm273, %v3244, 0
    %3327 = vmatprep.subr.mxu0 0.0
    %3328 = vmatpush1.msra.mxu0 %v3322
    %3329 = vmatprep.subr.mxu0 0.0
    %3330 = vmatpush1.msra.mxu0 0.0
    %3331 = vmatprep.subr.mxu0 0.0
    %3332 = vmatpush1.msra.mxu0 0.0
    %3333 = vmatprep.subr.mxu0 0.0
    %3334 = vmatpush1.msra.mxu0 0.0
    %3335 = vmatprep.subr.mxu0 0.0
    %3336 = vmatpush1.msra.mxu0 0.0
    %3337 = vmatprep.subr.mxu0 0.0
    %3338 = vmatpush1.msra.mxu0 0.0
    %3339 = vmatprep.subr.mxu0 0.0
    %3340 = vmatpush1.msra.mxu0 0.0
    %3341 = vmatprep.subr.mxu0 0.0
    %3342 = vmatpush1.msra.mxu0 0.0
    %3343 = vmatprep.subr.mxu0 0.0
    %3344 = vmatpush1.msra.mxu0 0.0
    %3345 = vmatprep.subr.mxu0 0.0
    %3346 = vmatpush1.msra.mxu0 0.0
    %3347 = vmatprep.subr.mxu0 0.0
    %3348 = vmatpush1.msra.mxu0 0.0
    %3349 = vmatprep.subr.mxu0 0.0
    %3350 = vmatpush1.msra.mxu0 0.0
    %3351 = vmatprep.subr.mxu0 0.0
    %3352 = vmatpush1.msra.mxu0 0.0
    %3353 = vmatprep.subr.mxu0 0.0
    %3354 = vmatpush1.msra.mxu0 0.0
    %3355 = vmatprep.subr.mxu0 0.0
    %3356 = vmatpush1.msra.mxu0 0.0
    %3357 = vmatprep.subr.mxu0 0.0
    %3358 = vmatpush1.msra.mxu0 0.0
    %3359 = vmatprep.subr.mxu0 0.0
    %3360 = vmatpush1.msra.mxu0 0.0
    %3361 = vmatprep.subr.mxu0 0.0
    %3362 = vmatpush1.msra.mxu0 0.0
    %3363 = vmatprep.subr.mxu0 0.0
    %3364 = vmatpush1.msra.mxu0 0.0
    %3365 = vmatprep.subr.mxu0 0.0
    %3366 = vmatpush1.msra.mxu0 0.0
    %3367 = vmatprep.subr.mxu0 0.0
    %3368 = vmatpush1.msra.mxu0 0.0
    %3369 = vmatprep.subr.mxu0 0.0
    %3370 = vmatpush1.msra.mxu0 0.0
    %3371 = vmatprep.subr.mxu0 0.0
    %3372 = vmatpush1.msra.mxu0 0.0
    %3373 = vmatprep.subr.mxu0 0.0
    %3374 = vmatpush1.msra.mxu0 0.0
    %3375 = vmatprep.subr.mxu0 0.0
    %3376 = vmatpush1.msra.mxu0 0.0
    %3377 = vmatprep.subr.mxu0 0.0
    %3378 = vmatpush1.msra.mxu0 0.0
    %3379 = vmatprep.subr.mxu0 0.0
    %3380 = vmatpush1.msra.mxu0 0.0
    %3381 = vmatprep.subr.mxu0 0.0
    %3382 = vmatpush1.msra.mxu0 0.0
    %3383 = vmatprep.subr.mxu0 0.0
    %3384 = vmatpush1.msra.mxu0 0.0
    %3385 = vmatprep.subr.mxu0 0.0
    %3386 = vmatpush1.msra.mxu0 0.0
    %3387 = vmatprep.subr.mxu0 0.0
    %3388 = vmatpush1.msra.mxu0 0.0
    %3389 = vmatprep.subr.mxu0 0.0
    %3390 = vmatpush1.msra.mxu0 0.0
    %3391 = vmatprep.mubr.f32.mxu0 0.0
    %3392 = vmatmul.mubr.f32.gmra.mrb[0].mxu0 %v3325
    %v3393 = vpop.f32.mrb[0].mxu0
    %v3394 = vadd.f32 0.0, %v3393
    %v3395 = vpop.f32.mrb[0].mxu0
    %3396 = vdwg.mxu0
    %v3397 = vld [vmem:[#allocation2 + $0x168] sm:$0xff]
    %3398 = vrot.lane.b32.xlu0 %v2312, 104
    %v3399 = vpop.permute.xlu0 %3398
    %3400 = vrot.lane.b32.xlu0 %v2312, 72
    %v3401 = vpop.permute.xlu0 %3400
    %v3402 = vsel %vm273, %v3399, 0
    %v3404 = vsel %vm273, %v3401, 0
    %3406 = vmatprep.subr.mxu0 0.0
    %3407 = vmatpush1.xpose.msra.mxu0 %v3404
    %3408 = vmatprep.subr.mxu0 0.0
    %3409 = vmatpush1.xpose.msra.mxu0 0.0
    %3410 = vmatprep.subr.mxu0 0.0
    %3411 = vmatpush1.xpose.msra.mxu0 0.0
    %3412 = vmatprep.subr.mxu0 0.0
    %3413 = vmatpush1.xpose.msra.mxu0 0.0
    %3414 = vmatprep.subr.mxu0 0.0
    %3415 = vmatpush1.xpose.msra.mxu0 0.0
    %3416 = vmatprep.subr.mxu0 0.0
    %3417 = vmatpush1.xpose.msra.mxu0 0.0
    %3418 = vmatprep.subr.mxu0 0.0
    %3419 = vmatpush1.xpose.msra.mxu0 0.0
    %3420 = vmatprep.subr.mxu0 0.0
    %3421 = vmatpush1.xpose.msra.mxu0 0.0
    %3422 = vmatprep.subr.mxu0 0.0
    %3423 = vmatpush1.xpose.msra.mxu0 0.0
    %3424 = vmatprep.subr.mxu0 0.0
    %3425 = vmatpush1.xpose.msra.mxu0 0.0
    %3426 = vmatprep.subr.mxu0 0.0
    %3427 = vmatpush1.xpose.msra.mxu0 0.0
    %3428 = vmatprep.subr.mxu0 0.0
    %3429 = vmatpush1.xpose.msra.mxu0 0.0
    %3430 = vmatprep.subr.mxu0 0.0
    %3431 = vmatpush1.xpose.msra.mxu0 0.0
    %3432 = vmatprep.subr.mxu0 0.0
    %3433 = vmatpush1.xpose.msra.mxu0 0.0
    %3434 = vmatprep.subr.mxu0 0.0
    %3435 = vmatpush1.xpose.msra.mxu0 0.0
    %3436 = vmatprep.subr.mxu0 0.0
    %3437 = vmatpush1.xpose.msra.mxu0 0.0
    %3438 = vmatprep.subr.mxu0 0.0
    %3439 = vmatpush1.xpose.msra.mxu0 0.0
    %3440 = vmatprep.subr.mxu0 0.0
    %3441 = vmatpush1.xpose.msra.mxu0 0.0
    %3442 = vmatprep.subr.mxu0 0.0
    %3443 = vmatpush1.xpose.msra.mxu0 0.0
    %3444 = vmatprep.subr.mxu0 0.0
    %3445 = vmatpush1.xpose.msra.mxu0 0.0
    %3446 = vmatprep.subr.mxu0 0.0
    %3447 = vmatpush1.xpose.msra.mxu0 0.0
    %3448 = vmatprep.subr.mxu0 0.0
    %3449 = vmatpush1.xpose.msra.mxu0 0.0
    %3450 = vmatprep.subr.mxu0 0.0
    %3451 = vmatpush1.xpose.msra.mxu0 0.0
    %3452 = vmatprep.subr.mxu0 0.0
    %3453 = vmatpush1.xpose.msra.mxu0 0.0
    %3454 = vmatprep.subr.mxu0 0.0
    %3455 = vmatpush1.xpose.msra.mxu0 0.0
    %3456 = vmatprep.subr.mxu0 0.0
    %3457 = vmatpush1.xpose.msra.mxu0 0.0
    %3458 = vmatprep.subr.mxu0 0.0
    %3459 = vmatpush1.xpose.msra.mxu0 0.0
    %3460 = vmatprep.subr.mxu0 0.0
    %3461 = vmatpush1.xpose.msra.mxu0 0.0
    %3462 = vmatprep.subr.mxu0 0.0
    %3463 = vmatpush1.xpose.msra.mxu0 0.0
    %3464 = vmatprep.subr.mxu0 0.0
    %3465 = vmatpush1.xpose.msra.mxu0 0.0
    %3466 = vmatprep.subr.mxu0 0.0
    %3467 = vmatpush1.xpose.msra.mxu0 0.0
    %3468 = vmatprep.subr.mxu0 0.0
    %3469 = vmatpush1.xpose.msra.mxu0 0.0
    %3470 = vmatprep.mubr.f32.mxu0 0.0
    %3471 = vmatmul.mubr.f32.gmra.mrb[0].mxu0 %v3402
    %v3472 = vpop.f32.mrb[0].mxu0
    %v3473 = vadd.f32 0.0, %v3472
    %v3474 = vpop.f32.mrb[0].mxu0
    %3475 = vdwg.mxu0
    %3476 = vrot.lane.b32.xlu0 %v2317, 104
    %v3477 = vpop.permute.xlu0 %3476
    %3478 = vrot.lane.b32.xlu0 %v2317, 72
    %v3479 = vpop.permute.xlu0 %3478
    %v3480 = vsel %vm273, %v3477, 0
    %v3482 = vsel %vm273, %v3479, 0
    %3484 = vmatprep.subr.mxu0 0.0
    %3485 = vmatpush1.xpose.msra.mxu0 %v3482
    %3486 = vmatprep.subr.mxu0 0.0
    %3487 = vmatpush1.xpose.msra.mxu0 0.0
    %3488 = vmatprep.subr.mxu0 0.0
    %3489 = vmatpush1.xpose.msra.mxu0 0.0
    %3490 = vmatprep.subr.mxu0 0.0
    %3491 = vmatpush1.xpose.msra.mxu0 0.0
    %3492 = vmatprep.subr.mxu0 0.0
    %3493 = vmatpush1.xpose.msra.mxu0 0.0
    %3494 = vmatprep.subr.mxu0 0.0
    %3495 = vmatpush1.xpose.msra.mxu0 0.0
    %3496 = vmatprep.subr.mxu0 0.0
    %3497 = vmatpush1.xpose.msra.mxu0 0.0
    %3498 = vmatprep.subr.mxu0 0.0
    %3499 = vmatpush1.xpose.msra.mxu0 0.0
    %3500 = vmatprep.subr.mxu0 0.0
    %3501 = vmatpush1.xpose.msra.mxu0 0.0
    %3502 = vmatprep.subr.mxu0 0.0
    %3503 = vmatpush1.xpose.msra.mxu0 0.0
    %3504 = vmatprep.subr.mxu0 0.0
    %3505 = vmatpush1.xpose.msra.mxu0 0.0
    %3506 = vmatprep.subr.mxu0 0.0
    %3507 = vmatpush1.xpose.msra.mxu0 0.0
    %3508 = vmatprep.subr.mxu0 0.0
    %3509 = vmatpush1.xpose.msra.mxu0 0.0
    %3510 = vmatprep.subr.mxu0 0.0
    %3511 = vmatpush1.xpose.msra.mxu0 0.0
    %3512 = vmatprep.subr.mxu0 0.0
    %3513 = vmatpush1.xpose.msra.mxu0 0.0
    %3514 = vmatprep.subr.mxu0 0.0
    %3515 = vmatpush1.xpose.msra.mxu0 0.0
    %3516 = vmatprep.subr.mxu0 0.0
    %3517 = vmatpush1.xpose.msra.mxu0 0.0
    %3518 = vmatprep.subr.mxu0 0.0
    %3519 = vmatpush1.xpose.msra.mxu0 0.0
    %3520 = vmatprep.subr.mxu0 0.0
    %3521 = vmatpush1.xpose.msra.mxu0 0.0
    %3522 = vmatprep.subr.mxu0 0.0
    %3523 = vmatpush1.xpose.msra.mxu0 0.0
    %3524 = vmatprep.subr.mxu0 0.0
    %3525 = vmatpush1.xpose.msra.mxu0 0.0
    %3526 = vmatprep.subr.mxu0 0.0
    %3527 = vmatpush1.xpose.msra.mxu0 0.0
    %3528 = vmatprep.subr.mxu0 0.0
    %3529 = vmatpush1.xpose.msra.mxu0 0.0
    %3530 = vmatprep.subr.mxu0 0.0
    %3531 = vmatpush1.xpose.msra.mxu0 0.0
    %3532 = vmatprep.subr.mxu0 0.0
    %3533 = vmatpush1.xpose.msra.mxu0 0.0
    %3534 = vmatprep.subr.mxu0 0.0
    %3535 = vmatpush1.xpose.msra.mxu0 0.0
    %3536 = vmatprep.subr.mxu0 0.0
    %3537 = vmatpush1.xpose.msra.mxu0 0.0
    %3538 = vmatprep.subr.mxu0 0.0
    %3539 = vmatpush1.xpose.msra.mxu0 0.0
    %3540 = vmatprep.subr.mxu0 0.0
    %3541 = vmatpush1.xpose.msra.mxu0 0.0
    %3542 = vmatprep.subr.mxu0 0.0
    %3543 = vmatpush1.xpose.msra.mxu0 0.0
    %3544 = vmatprep.subr.mxu0 0.0
    %3545 = vmatpush1.xpose.msra.mxu0 0.0
    %3546 = vmatprep.subr.mxu0 0.0
    %3547 = vmatpush1.xpose.msra.mxu0 0.0
    %3548 = vmatprep.mubr.f32.mxu0 0.0
    %3549 = vmatmul.mubr.f32.gmra.mrb[0].mxu0 %v3480
    %v3550 = vpop.f32.mrb[0].mxu0
    %v3551 = vadd.f32 0.0, %v3550
    %v3552 = vpop.f32.mrb[0].mxu0
    %3553 = vdwg.mxu0
    %v3554 = vmul.f32 %v3473, 0.35355338
    %v3555 = vmul.f32 %v3551, 0.35355338
    %v3556 = vsel %vm273, %v3554, -inf
    %3557 = vmax.xlane.f32.xlu0 %v3556
    %v3558 = vpop.xlane.xlu0 %3557
    %v3559 = vsel %vm273, %v3555, -inf
    %3560 = vmax.xlane.f32.xlu0 %v3559
    %v3561 = vpop.xlane.xlu0 %3560
    %v3562 = vsub.f32 %v3554, %v3558
    %v3563 = vsub.f32 %v3555, %v3561
    %v3564 = vmul.f32 %v3562, 1.442695
    %v3565 = vpow.pop %v3564
    %v3566 = vmul.f32 %v3563, 1.442695
    %v3567 = vpow.pop %v3566
    %v3568 = vsel %vm273, %v3565, 0.0
    %3569 = vadd.xlane.f32.xlu0 %v3568
    %v3570 = vpop.xlane.xlu0 %3569
    %v3571 = vsel %vm273, %v3567, 0.0
    %3572 = vadd.xlane.f32.xlu0 %v3571
    %v3573 = vpop.xlane.xlu0 %3572
    %v3574 = vrcp.pop %v3570
    %v3575 = vrcp.pop %v3573
    %v3576 = vmul.f32 %v3565, %v3574
    %v3577 = vmul.f32 %v3567, %v3575
    %3578 = vrot.lane.b32.xlu0 %v2312, 40
    %v3579 = vpop.permute.xlu0 %3578
    %v3582 = vsel %vm273, %v3576, 0
    %3584 = vmatprep.subr.mxu0 0.0
    %3585 = vmatpush1.msra.mxu0 %v3579
    %3586 = vmatprep.subr.mxu0 0.0
    %3587 = vmatpush1.msra.mxu0 0.0
    %3588 = vmatprep.subr.mxu0 0.0
    %3589 = vmatpush1.msra.mxu0 0.0
    %3590 = vmatprep.subr.mxu0 0.0
    %3591 = vmatpush1.msra.mxu0 0.0
    %3592 = vmatprep.subr.mxu0 0.0
    %3593 = vmatpush1.msra.mxu0 0.0
    %3594 = vmatprep.subr.mxu0 0.0
    %3595 = vmatpush1.msra.mxu0 0.0
    %3596 = vmatprep.subr.mxu0 0.0
    %3597 = vmatpush1.msra.mxu0 0.0
    %3598 = vmatprep.subr.mxu0 0.0
    %3599 = vmatpush1.msra.mxu0 0.0
    %3600 = vmatprep.subr.mxu0 0.0
    %3601 = vmatpush1.msra.mxu0 0.0
    %3602 = vmatprep.subr.mxu0 0.0
    %3603 = vmatpush1.msra.mxu0 0.0
    %3604 = vmatprep.subr.mxu0 0.0
    %3605 = vmatpush1.msra.mxu0 0.0
    %3606 = vmatprep.subr.mxu0 0.0
    %3607 = vmatpush1.msra.mxu0 0.0
    %3608 = vmatprep.subr.mxu0 0.0
    %3609 = vmatpush1.msra.mxu0 0.0
    %3610 = vmatprep.subr.mxu0 0.0
    %3611 = vmatpush1.msra.mxu0 0.0
    %3612 = vmatprep.subr.mxu0 0.0
    %3613 = vmatpush1.msra.mxu0 0.0
    %3614 = vmatprep.subr.mxu0 0.0
    %3615 = vmatpush1.msra.mxu0 0.0
    %3616 = vmatprep.subr.mxu0 0.0
    %3617 = vmatpush1.msra.mxu0 0.0
    %3618 = vmatprep.subr.mxu0 0.0
    %3619 = vmatpush1.msra.mxu0 0.0
    %3620 = vmatprep.subr.mxu0 0.0
    %3621 = vmatpush1.msra.mxu0 0.0
    %3622 = vmatprep.subr.mxu0 0.0
    %3623 = vmatpush1.msra.mxu0 0.0
    %3624 = vmatprep.subr.mxu0 0.0
    %3625 = vmatpush1.msra.mxu0 0.0
    %3626 = vmatprep.subr.mxu0 0.0
    %3627 = vmatpush1.msra.mxu0 0.0
    %3628 = vmatprep.subr.mxu0 0.0
    %3629 = vmatpush1.msra.mxu0 0.0
    %3630 = vmatprep.subr.mxu0 0.0
    %3631 = vmatpush1.msra.mxu0 0.0
    %3632 = vmatprep.subr.mxu0 0.0
    %3633 = vmatpush1.msra.mxu0 0.0
    %3634 = vmatprep.subr.mxu0 0.0
    %3635 = vmatpush1.msra.mxu0 0.0
    %3636 = vmatprep.subr.mxu0 0.0
    %3637 = vmatpush1.msra.mxu0 0.0
    %3638 = vmatprep.subr.mxu0 0.0
    %3639 = vmatpush1.msra.mxu0 0.0
    %3640 = vmatprep.subr.mxu0 0.0
    %3641 = vmatpush1.msra.mxu0 0.0
    %3642 = vmatprep.subr.mxu0 0.0
    %3643 = vmatpush1.msra.mxu0 0.0
    %3644 = vmatprep.subr.mxu0 0.0
    %3645 = vmatpush1.msra.mxu0 0.0
    %3646 = vmatprep.subr.mxu0 0.0
    %3647 = vmatpush1.msra.mxu0 0.0
    %3648 = vmatprep.mubr.f32.mxu0 0.0
    %3649 = vmatmul.mubr.f32.gmra.mrb[0].mxu0 %v3582
    %v3650 = vpop.f32.mrb[0].mxu0
    %v3651 = vadd.f32 0.0, %v3650
    %v3652 = vpop.f32.mrb[0].mxu0
    %3653 = vdwg.mxu0
    %3654 = vrot.lane.b32.xlu0 %v2317, 40
    %v3655 = vpop.permute.xlu0 %3654
    %v3658 = vsel %vm273, %v3577, 0
    %3660 = vmatprep.subr.mxu0 0.0
    %3661 = vmatpush1.msra.mxu0 %v3655
    %3662 = vmatprep.subr.mxu0 0.0
    %3663 = vmatpush1.msra.mxu0 0.0
    %3664 = vmatprep.subr.mxu0 0.0
    %3665 = vmatpush1.msra.mxu0 0.0
    %3666 = vmatprep.subr.mxu0 0.0
    %3667 = vmatpush1.msra.mxu0 0.0
    %3668 = vmatprep.subr.mxu0 0.0
    %3669 = vmatpush1.msra.mxu0 0.0
    %3670 = vmatprep.subr.mxu0 0.0
    %3671 = vmatpush1.msra.mxu0 0.0
    %3672 = vmatprep.subr.mxu0 0.0
    %3673 = vmatpush1.msra.mxu0 0.0
    %3674 = vmatprep.subr.mxu0 0.0
    %3675 = vmatpush1.msra.mxu0 0.0
    %3676 = vmatprep.subr.mxu0 0.0
    %3677 = vmatpush1.msra.mxu0 0.0
    %3678 = vmatprep.subr.mxu0 0.0
    %3679 = vmatpush1.msra.mxu0 0.0
    %3680 = vmatprep.subr.mxu0 0.0
    %3681 = vmatpush1.msra.mxu0 0.0
    %3682 = vmatprep.subr.mxu0 0.0
    %3683 = vmatpush1.msra.mxu0 0.0
    %3684 = vmatprep.subr.mxu0 0.0
    %3685 = vmatpush1.msra.mxu0 0.0
    %3686 = vmatprep.subr.mxu0 0.0
    %3687 = vmatpush1.msra.mxu0 0.0
    %3688 = vmatprep.subr.mxu0 0.0
    %3689 = vmatpush1.msra.mxu0 0.0
    %3690 = vmatprep.subr.mxu0 0.0
    %3691 = vmatpush1.msra.mxu0 0.0
    %3692 = vmatprep.subr.mxu0 0.0
    %3693 = vmatpush1.msra.mxu0 0.0
    %3694 = vmatprep.subr.mxu0 0.0
    %3695 = vmatpush1.msra.mxu0 0.0
    %3696 = vmatprep.subr.mxu0 0.0
    %3697 = vmatpush1.msra.mxu0 0.0
    %3698 = vmatprep.subr.mxu0 0.0
    %3699 = vmatpush1.msra.mxu0 0.0
    %3700 = vmatprep.subr.mxu0 0.0
    %3701 = vmatpush1.msra.mxu0 0.0
    %3702 = vmatprep.subr.mxu0 0.0
    %3703 = vmatpush1.msra.mxu0 0.0
    %3704 = vmatprep.subr.mxu0 0.0
    %3705 = vmatpush1.msra.mxu0 0.0
    %3706 = vmatprep.subr.mxu0 0.0
    %3707 = vmatpush1.msra.mxu0 0.0
    %3708 = vmatprep.subr.mxu0 0.0
    %3709 = vmatpush1.msra.mxu0 0.0
    %3710 = vmatprep.subr.mxu0 0.0
    %3711 = vmatpush1.msra.mxu0 0.0
    %3712 = vmatprep.subr.mxu0 0.0
    %3713 = vmatpush1.msra.mxu0 0.0
    %3714 = vmatprep.subr.mxu0 0.0
    %3715 = vmatpush1.msra.mxu0 0.0
    %3716 = vmatprep.subr.mxu0 0.0
    %3717 = vmatpush1.msra.mxu0 0.0
    %3718 = vmatprep.subr.mxu0 0.0
    %3719 = vmatpush1.msra.mxu0 0.0
    %3720 = vmatprep.subr.mxu0 0.0
    %3721 = vmatpush1.msra.mxu0 0.0
    %3722 = vmatprep.subr.mxu0 0.0
    %3723 = vmatpush1.msra.mxu0 0.0
    %3724 = vmatprep.mubr.f32.mxu0 0.0
    %3725 = vmatmul.mubr.f32.gmra.mrb[0].mxu0 %v3658
    %v3726 = vpop.f32.mrb[0].mxu0
    %v3727 = vadd.f32 0.0, %v3726
    %v3728 = vpop.f32.mrb[0].mxu0
    %3729 = vdwg.mxu0
    %v3730 = vld [vmem:[#allocation2 + $0x170] sm:$0xff]
    %v3732 = vsel %vm273, %v3651, 0
    %v3735 = vsel %vm273, %v3727, 0
    %3737 = vmatprep.subr.mxu0 0.0
    %3738 = vmatpush1.msra.mxu0 %v3730
    %3739 = vmatprep.subr.mxu0 0.0
    %3740 = vmatpush1.msra.mxu0 0.0
    %3741 = vmatprep.subr.mxu0 0.0
    %3742 = vmatpush1.msra.mxu0 0.0
    %3743 = vmatprep.subr.mxu0 0.0
    %3744 = vmatpush1.msra.mxu0 0.0
    %3745 = vmatprep.subr.mxu0 0.0
    %3746 = vmatpush1.msra.mxu0 0.0
    %3747 = vmatprep.subr.mxu0 0.0
    %3748 = vmatpush1.msra.mxu0 0.0
    %3749 = vmatprep.subr.mxu0 0.0
    %3750 = vmatpush1.msra.mxu0 0.0
    %3751 = vmatprep.subr.mxu0 0.0
    %3752 = vmatpush1.msra.mxu0 0.0
    %3753 = vmatprep.subr.mxu0 0.0
    %3754 = vmatpush1.msra.mxu0 0.0
    %3755 = vmatprep.subr.mxu0 0.0
    %3756 = vmatpush1.msra.mxu0 0.0
    %3757 = vmatprep.subr.mxu0 0.0
    %3758 = vmatpush1.msra.mxu0 0.0
    %3759 = vmatprep.subr.mxu0 0.0
    %3760 = vmatpush1.msra.mxu0 0.0
    %3761 = vmatprep.subr.mxu0 0.0
    %3762 = vmatpush1.msra.mxu0 0.0
    %3763 = vmatprep.subr.mxu0 0.0
    %3764 = vmatpush1.msra.mxu0 0.0
    %3765 = vmatprep.subr.mxu0 0.0
    %3766 = vmatpush1.msra.mxu0 0.0
    %3767 = vmatprep.subr.mxu0 0.0
    %3768 = vmatpush1.msra.mxu0 0.0
    %3769 = vmatprep.subr.mxu0 0.0
    %3770 = vmatpush1.msra.mxu0 0.0
    %3771 = vmatprep.subr.mxu0 0.0
    %3772 = vmatpush1.msra.mxu0 0.0
    %3773 = vmatprep.subr.mxu0 0.0
    %3774 = vmatpush1.msra.mxu0 0.0
    %3775 = vmatprep.subr.mxu0 0.0
    %3776 = vmatpush1.msra.mxu0 0.0
    %3777 = vmatprep.subr.mxu0 0.0
    %3778 = vmatpush1.msra.mxu0 0.0
    %3779 = vmatprep.subr.mxu0 0.0
    %3780 = vmatpush1.msra.mxu0 0.0
    %3781 = vmatprep.subr.mxu0 0.0
    %3782 = vmatpush1.msra.mxu0 0.0
    %3783 = vmatprep.subr.mxu0 0.0
    %3784 = vmatpush1.msra.mxu0 0.0
    %3785 = vmatprep.subr.mxu0 0.0
    %3786 = vmatpush1.msra.mxu0 0.0
    %3787 = vmatprep.subr.mxu0 0.0
    %3788 = vmatpush1.msra.mxu0 0.0
    %3789 = vmatprep.subr.mxu0 0.0
    %3790 = vmatpush1.msra.mxu0 0.0
    %3791 = vmatprep.subr.mxu0 0.0
    %3792 = vmatpush1.msra.mxu0 0.0
    %3793 = vmatprep.subr.mxu0 0.0
    %3794 = vmatpush1.msra.mxu0 0.0
    %3795 = vmatprep.subr.mxu0 0.0
    %3796 = vmatpush1.msra.mxu0 0.0
    %3797 = vmatprep.subr.mxu0 0.0
    %3798 = vmatpush1.msra.mxu0 0.0
    %3799 = vmatprep.subr.mxu0 0.0
    %3800 = vmatpush1.msra.mxu0 0.0
    %3801 = vmatprep.mubr.f32.mxu0 0.0
    %3802 = vmatmul.mubr.f32.gmra.mrb[0].mxu0 %v3732
    %v3803 = vpop.f32.mrb[0].mxu0
    %v3804 = vadd.f32 0.0, %v3803
    %v3805 = vpop.f32.mrb[0].mxu0
    %3806 = vmatprep.mubr.f32.mxu0 0.0
    %3807 = vmatmul.mubr.f32.gmra.mrb[0].mxu0 %v3735
    %v3808 = vpop.f32.mrb[0].mxu0
    %v3809 = vadd.f32 0.0, %v3808
    %v3810 = vpop.f32.mrb[0].mxu0
    %3811 = vdwg.mxu0
    %v3813 = vsel %vm273, %v2571, 0
    %v3816 = vsel %vm273, %v2647, 0
    %3818 = vmatprep.subr.mxu0 0.0
    %3819 = vmatpush1.msra.mxu0 %v2650
    %3820 = vmatprep.subr.mxu0 0.0
    %3821 = vmatpush1.msra.mxu0 0.0
    %3822 = vmatprep.subr.mxu0 0.0
    %3823 = vmatpush1.msra.mxu0 0.0
    %3824 = vmatprep.subr.mxu0 0.0
    %3825 = vmatpush1.msra.mxu0 0.0
    %3826 = vmatprep.subr.mxu0 0.0
    %3827 = vmatpush1.msra.mxu0 0.0
    %3828 = vmatprep.subr.mxu0 0.0
    %3829 = vmatpush1.msra.mxu0 0.0
    %3830 = vmatprep.subr.mxu0 0.0
    %3831 = vmatpush1.msra.mxu0 0.0
    %3832 = vmatprep.subr.mxu0 0.0
    %3833 = vmatpush1.msra.mxu0 0.0
    %3834 = vmatprep.subr.mxu0 0.0
    %3835 = vmatpush1.msra.mxu0 0.0
    %3836 = vmatprep.subr.mxu0 0.0
    %3837 = vmatpush1.msra.mxu0 0.0
    %3838 = vmatprep.subr.mxu0 0.0
    %3839 = vmatpush1.msra.mxu0 0.0
    %3840 = vmatprep.subr.mxu0 0.0
    %3841 = vmatpush1.msra.mxu0 0.0
    %3842 = vmatprep.subr.mxu0 0.0
    %3843 = vmatpush1.msra.mxu0 0.0
    %3844 = vmatprep.subr.mxu0 0.0
    %3845 = vmatpush1.msra.mxu0 0.0
    %3846 = vmatprep.subr.mxu0 0.0
    %3847 = vmatpush1.msra.mxu0 0.0
    %3848 = vmatprep.subr.mxu0 0.0
    %3849 = vmatpush1.msra.mxu0 0.0
    %3850 = vmatprep.subr.mxu0 0.0
    %3851 = vmatpush1.msra.mxu0 0.0
    %3852 = vmatprep.subr.mxu0 0.0
    %3853 = vmatpush1.msra.mxu0 0.0
    %3854 = vmatprep.subr.mxu0 0.0
    %3855 = vmatpush1.msra.mxu0 0.0
    %3856 = vmatprep.subr.mxu0 0.0
    %3857 = vmatpush1.msra.mxu0 0.0
    %3858 = vmatprep.subr.mxu0 0.0
    %3859 = vmatpush1.msra.mxu0 0.0
    %3860 = vmatprep.subr.mxu0 0.0
    %3861 = vmatpush1.msra.mxu0 0.0
    %3862 = vmatprep.subr.mxu0 0.0
    %3863 = vmatpush1.msra.mxu0 0.0
    %3864 = vmatprep.subr.mxu0 0.0
    %3865 = vmatpush1.msra.mxu0 0.0
    %3866 = vmatprep.subr.mxu0 0.0
    %3867 = vmatpush1.msra.mxu0 0.0
    %3868 = vmatprep.subr.mxu0 0.0
    %3869 = vmatpush1.msra.mxu0 0.0
    %3870 = vmatprep.subr.mxu0 0.0
    %3871 = vmatpush1.msra.mxu0 0.0
    %3872 = vmatprep.subr.mxu0 0.0
    %3873 = vmatpush1.msra.mxu0 0.0
    %3874 = vmatprep.subr.mxu0 0.0
    %3875 = vmatpush1.msra.mxu0 0.0
    %3876 = vmatprep.subr.mxu0 0.0
    %3877 = vmatpush1.msra.mxu0 0.0
    %3878 = vmatprep.subr.mxu0 0.0
    %3879 = vmatpush1.msra.mxu0 0.0
    %3880 = vmatprep.subr.mxu0 0.0
    %3881 = vmatpush1.msra.mxu0 0.0
    %3882 = vmatprep.mubr.f32.mxu0 0.0
    %3883 = vmatmul.mubr.f32.gmra.mrb[0].mxu0 %v3813
    %v3884 = vpop.f32.mrb[0].mxu0
    %v3885 = vadd.f32 %v3057, %v3884
    %v3886 = vpop.f32.mrb[0].mxu0
    %3887 = vmatprep.mubr.f32.mxu0 0.0
    %3888 = vmatmul.mubr.f32.gmra.mrb[0].mxu0 %v3816
    %v3889 = vpop.f32.mrb[0].mxu0
    %v3890 = vadd.f32 %v3062, %v3889
    %v3891 = vpop.f32.mrb[0].mxu0
    %3892 = vdwg.mxu0
    %v3894 = vsel %vm273, %v3318, 0
    %v3897 = vsel %vm273, %v3394, 0
    %3899 = vmatprep.subr.mxu0 0.0
    %3900 = vmatpush1.msra.mxu0 %v3397
    %3901 = vmatprep.subr.mxu0 0.0
    %3902 = vmatpush1.msra.mxu0 0.0
    %3903 = vmatprep.subr.mxu0 0.0
    %3904 = vmatpush1.msra.mxu0 0.0
    %3905 = vmatprep.subr.mxu0 0.0
    %3906 = vmatpush1.msra.mxu0 0.0
    %3907 = vmatprep.subr.mxu0 0.0
    %3908 = vmatpush1.msra.mxu0 0.0
    %3909 = vmatprep.subr.mxu0 0.0
    %3910 = vmatpush1.msra.mxu0 0.0
    %3911 = vmatprep.subr.mxu0 0.0
    %3912 = vmatpush1.msra.mxu0 0.0
    %3913 = vmatprep.subr.mxu0 0.0
    %3914 = vmatpush1.msra.mxu0 0.0
    %3915 = vmatprep.subr.mxu0 0.0
    %3916 = vmatpush1.msra.mxu0 0.0
    %3917 = vmatprep.subr.mxu0 0.0
    %3918 = vmatpush1.msra.mxu0 0.0
    %3919 = vmatprep.subr.mxu0 0.0
    %3920 = vmatpush1.msra.mxu0 0.0
    %3921 = vmatprep.subr.mxu0 0.0
    %3922 = vmatpush1.msra.mxu0 0.0
    %3923 = vmatprep.subr.mxu0 0.0
    %3924 = vmatpush1.msra.mxu0 0.0
    %3925 = vmatprep.subr.mxu0 0.0
    %3926 = vmatpush1.msra.mxu0 0.0
    %3927 = vmatprep.subr.mxu0 0.0
    %3928 = vmatpush1.msra.mxu0 0.0
    %3929 = vmatprep.subr.mxu0 0.0
    %3930 = vmatpush1.msra.mxu0 0.0
    %3931 = vmatprep.subr.mxu0 0.0
    %3932 = vmatpush1.msra.mxu0 0.0
    %3933 = vmatprep.subr.mxu0 0.0
    %3934 = vmatpush1.msra.mxu0 0.0
    %3935 = vmatprep.subr.mxu0 0.0
    %3936 = vmatpush1.msra.mxu0 0.0
    %3937 = vmatprep.subr.mxu0 0.0
    %3938 = vmatpush1.msra.mxu0 0.0
    %3939 = vmatprep.subr.mxu0 0.0
    %3940 = vmatpush1.msra.mxu0 0.0
    %3941 = vmatprep.subr.mxu0 0.0
    %3942 = vmatpush1.msra.mxu0 0.0
    %3943 = vmatprep.subr.mxu0 0.0
    %3944 = vmatpush1.msra.mxu0 0.0
    %3945 = vmatprep.subr.mxu0 0.0
    %3946 = vmatpush1.msra.mxu0 0.0
    %3947 = vmatprep.subr.mxu0 0.0
    %3948 = vmatpush1.msra.mxu0 0.0
    %3949 = vmatprep.subr.mxu0 0.0
    %3950 = vmatpush1.msra.mxu0 0.0
    %3951 = vmatprep.subr.mxu0 0.0
    %3952 = vmatpush1.msra.mxu0 0.0
    %3953 = vmatprep.subr.mxu0 0.0
    %3954 = vmatpush1.msra.mxu0 0.0
    %3955 = vmatprep.subr.mxu0 0.0
    %3956 = vmatpush1.msra.mxu0 0.0
    %3957 = vmatprep.subr.mxu0 0.0
    %3958 = vmatpush1.msra.mxu0 0.0
    %3959 = vmatprep.subr.mxu0 0.0
    %3960 = vmatpush1.msra.mxu0 0.0
    %3961 = vmatprep.subr.mxu0 0.0
    %3962 = vmatpush1.msra.mxu0 0.0
    %3963 = vmatprep.mubr.f32.mxu0 0.0
    %3964 = vmatmul.mubr.f32.gmra.mrb[0].mxu0 %v3894
    %v3965 = vpop.f32.mrb[0].mxu0
    %v3966 = vadd.f32 %v3804, %v3965
    %v3967 = vpop.f32.mrb[0].mxu0
    %3968 = vmatprep.mubr.f32.mxu0 0.0
    %3969 = vmatmul.mubr.f32.gmra.mrb[0].mxu0 %v3897
    %v3970 = vpop.f32.mrb[0].mxu0
    %v3971 = vadd.f32 %v3809, %v3970
    %v3972 = vpop.f32.mrb[0].mxu0
    %3973 = vdwg.mxu0
    %v3974 = vadd.f32 %v3885, %v3966
    %v3975 = vadd.f32 %v3890, %v3971
    %v3976 = vadd.f32 %v2184, %v3974
    %v3977 = vadd.f32 %v2185, %v3975
    %v3978 = vld [vmem:[#allocation2 + $0x21b] sm:$0x1]
    %v3979 = vlaneseq
    %v3980 = vshrl.u32 %v3979, 7
    %v3981 = vsub.s32 0, %v3980
    %v3982 = vrot.slane %v3978, %v3981
    %v3983 = vadd.f32 %v3976, %v3982
    %v3984 = vadd.f32 %v3977, %v3982
    %v3985 = vld [vmem:[#allocation2 + $0x21c] sm:$0x1]
    %v3986 = vld [vmem:[#allocation2 + $0x21d] sm:$0x1]
    %v3987 = vsel %vm137, %v3983, 0.0
    %3988 = vadd.xlane.f32.xlu0 %v3987
    %v3989 = vpop.xlane.xlu0 %3988
    %v3990 = vsel %vm137, %v3984, 0.0
    %3991 = vadd.xlane.f32.xlu0 %v3990
    %v3992 = vpop.xlane.xlu0 %3991
    %v3993 = vmul.f32 %v3989, 0.03125
    %v3994 = vmul.f32 %v3992, 0.03125
    %v3995 = vmul.f32 %v3983, %v3983
    %v3996 = vmul.f32 %v3984, %v3984
    %v3997 = vsel %vm137, %v3995, 0.0
    %3998 = vadd.xlane.f32.xlu0 %v3997
    %v3999 = vpop.xlane.xlu0 %3998
    %v4000 = vsel %vm137, %v3996, 0.0
    %4001 = vadd.xlane.f32.xlu0 %v4000
    %v4002 = vpop.xlane.xlu0 %4001
    %v4003 = vmul.f32 %v3999, 0.03125
    %v4004 = vmul.f32 %v4002, 0.03125
    %v4005 = vmul.f32 %v3993, %v3993
    %v4006 = vmul.f32 %v3994, %v3994
    %v4007 = vsub.f32 %v4003, %v4005
    %v4008 = vsub.f32 %v4004, %v4006
    %v4009 = vsub.f32 %v3983, %v3993
    %v4010 = vsub.f32 %v3984, %v3994
    %v4011 = vadd.f32 %v4007, 1e-05
    %v4012 = vadd.f32 %v4008, 1e-05
    %v4013 = vrsqrt.pop %v4011
    %v4014 = vrsqrt.pop %v4012
    %v4015 = vmul.f32 %v4009, %v4013
    %v4016 = vmul.f32 %v4010, %v4014
    %v4017 = vlaneseq
    %v4018 = vshrl.u32 %v4017, 7
    %v4019 = vsub.s32 0, %v4018
    %v4020 = vrot.slane %v3985, %v4019
    %v4021 = vmul.f32 %v4015, %v4020
    %v4022 = vmul.f32 %v4016, %v4020
    %v4023 = vlaneseq
    %v4024 = vshrl.u32 %v4023, 7
    %v4025 = vsub.s32 0, %v4024
    %v4026 = vrot.slane %v3986, %v4025
    %v4027 = vadd.f32 %v4021, %v4026
    %v4028 = vadd.f32 %v4022, %v4026
    %v4029 = vld [vmem:[#allocation2 + $0x178] sm:$0xff]
    %v4030 = vld [vmem:[#allocation2 + $0x180] sm:$0xff]
    %v4031 = vld [vmem:[#allocation2 + $0x188] sm:$0xff]
    %v4032 = vld [vmem:[#allocation2 + $0x190] sm:$0xff]
    %v4033 = vld [vmem:[#allocation2 + $0x21e] sm:$0x1]
    %v4034 = vlaneseq
    %v4035 = vshrl.u32 %v4034, 7
    %v4036 = vsub.s32 0, %v4035
    %v4037 = vrot.slane %v4033, %v4036
    %v4039 = vsel %vm137, %v4027, 0
    %v4042 = vsel %vm137, %v4028, 0
    %4044 = vmatprep.subr.mxu0 0.0
    %4045 = vmatpush1.msra.mxu0 %v4029
    %4046 = vmatprep.subr.mxu0 0.0
    %4047 = vmatpush1.msra.mxu0 %v4030
    %4048 = vmatprep.subr.mxu0 0.0
    %4049 = vmatpush1.msra.mxu0 %v4031
    %4050 = vmatprep.subr.mxu0 0.0
    %4051 = vmatpush1.msra.mxu0 %v4032
    %4052 = vmatprep.subr.mxu0 0.0
    %4053 = vmatpush1.msra.mxu0 0.0
    %4054 = vmatprep.subr.mxu0 0.0
    %4055 = vmatpush1.msra.mxu0 0.0
    %4056 = vmatprep.subr.mxu0 0.0
    %4057 = vmatpush1.msra.mxu0 0.0
    %4058 = vmatprep.subr.mxu0 0.0
    %4059 = vmatpush1.msra.mxu0 0.0
    %4060 = vmatprep.subr.mxu0 0.0
    %4061 = vmatpush1.msra.mxu0 0.0
    %4062 = vmatprep.subr.mxu0 0.0
    %4063 = vmatpush1.msra.mxu0 0.0
    %4064 = vmatprep.subr.mxu0 0.0
    %4065 = vmatpush1.msra.mxu0 0.0
    %4066 = vmatprep.subr.mxu0 0.0
    %4067 = vmatpush1.msra.mxu0 0.0
    %4068 = vmatprep.subr.mxu0 0.0
    %4069 = vmatpush1.msra.mxu0 0.0
    %4070 = vmatprep.subr.mxu0 0.0
    %4071 = vmatpush1.msra.mxu0 0.0
    %4072 = vmatprep.subr.mxu0 0.0
    %4073 = vmatpush1.msra.mxu0 0.0
    %4074 = vmatprep.subr.mxu0 0.0
    %4075 = vmatpush1.msra.mxu0 0.0
    %4076 = vmatprep.subr.mxu0 0.0
    %4077 = vmatpush1.msra.mxu0 0.0
    %4078 = vmatprep.subr.mxu0 0.0
    %4079 = vmatpush1.msra.mxu0 0.0
    %4080 = vmatprep.subr.mxu0 0.0
    %4081 = vmatpush1.msra.mxu0 0.0
    %4082 = vmatprep.subr.mxu0 0.0
    %4083 = vmatpush1.msra.mxu0 0.0
    %4084 = vmatprep.subr.mxu0 0.0
    %4085 = vmatpush1.msra.mxu0 0.0
    %4086 = vmatprep.subr.mxu0 0.0
    %4087 = vmatpush1.msra.mxu0 0.0
    %4088 = vmatprep.subr.mxu0 0.0
    %4089 = vmatpush1.msra.mxu0 0.0
    %4090 = vmatprep.subr.mxu0 0.0
    %4091 = vmatpush1.msra.mxu0 0.0
    %4092 = vmatprep.subr.mxu0 0.0
    %4093 = vmatpush1.msra.mxu0 0.0
    %4094 = vmatprep.subr.mxu0 0.0
    %4095 = vmatpush1.msra.mxu0 0.0
    %4096 = vmatprep.subr.mxu0 0.0
    %4097 = vmatpush1.msra.mxu0 0.0
    %4098 = vmatprep.subr.mxu0 0.0
    %4099 = vmatpush1.msra.mxu0 0.0
    %4100 = vmatprep.subr.mxu0 0.0
    %4101 = vmatpush1.msra.mxu0 0.0
    %4102 = vmatprep.subr.mxu0 0.0
    %4103 = vmatpush1.msra.mxu0 0.0
    %4104 = vmatprep.subr.mxu0 0.0
    %4105 = vmatpush1.msra.mxu0 0.0
    %4106 = vmatprep.subr.mxu0 0.0
    %4107 = vmatpush1.msra.mxu0 0.0
    %4108 = vmatprep.mubr.f32.mxu0 0.0
    %4109 = vmatmul.mubr.f32.gmra.mrb[0].mxu0 %v4039
    %v4110 = vpop.f32.mrb[0].mxu0
    %v4111 = vadd.f32 %v4037, %v4110
    %v4112 = vpop.f32.mrb[0].mxu0
    %4113 = vmatprep.mubr.f32.mxu0 0.0
    %4114 = vmatmul.mubr.f32.gmra.mrb[0].mxu0 %v4042
    %v4115 = vpop.f32.mrb[0].mxu0
    %v4116 = vadd.f32 %v4037, %v4115
    %v4117 = vpop.f32.mrb[0].mxu0
    %4118 = vdwg.mxu0
    %v4119 = vmul.f32 %v4111, 0.5
    %v4120 = vmul.f32 %v4116, 0.5
    %v4121 = vmul.f32 %v4111, %v4111
    %v4122 = vmul.f32 %v4116, %v4116
    %v4123 = vmul.f32 %v4121, %v4111
    %v4124 = vmul.f32 %v4122, %v4116
    %v4125 = vmul.f32 %v4123, 0.044715
    %v4126 = vmul.f32 %v4124, 0.044715
    %v4127 = vadd.f32 %v4111, %v4125
    %v4128 = vadd.f32 %v4116, %v4126
    %v4129 = vmul.f32 %v4127, 0.7978846
    %v4130 = vmul.f32 %v4128, 0.7978846
    %v4131 = vtanh.pop %v4129
    %v4132 = vtanh.pop %v4130
    %v4133 = vadd.f32 %v4131, 1.0
    %v4134 = vadd.f32 %v4132, 1.0
    %v4135 = vmul.f32 %v4119, %v4133
    %v4136 = vmul.f32 %v4120, %v4134
    %v4137 = vld [vmem:[#allocation2 + $0x198] sm:$0xff]
    %v4138 = vld [vmem:[#allocation2 + $0x1a0] sm:$0xff]
    %v4139 = vld [vmem:[#allocation2 + $0x1a8] sm:$0xff]
    %v4140 = vld [vmem:[#allocation2 + $0x1b0] sm:$0xff]
    %v4141 = vld [vmem:[#allocation2 + $0x1b8] sm:$0xff]
    %v4142 = vld [vmem:[#allocation2 + $0x1c0] sm:$0xff]
    %v4143 = vld [vmem:[#allocation2 + $0x1c8] sm:$0xff]
    %v4144 = vld [vmem:[#allocation2 + $0x1d0] sm:$0xff]
    %v4145 = vld [vmem:[#allocation2 + $0x1d8] sm:$0xff]
    %v4146 = vld [vmem:[#allocation2 + $0x1e0] sm:$0xff]
    %v4147 = vld [vmem:[#allocation2 + $0x1e8] sm:$0xff]
    %v4148 = vld [vmem:[#allocation2 + $0x1f0] sm:$0xff]
    %v4149 = vld [vmem:[#allocation2 + $0x1f8] sm:$0xff]
    %v4150 = vld [vmem:[#allocation2 + $0x200] sm:$0xff]
    %v4151 = vld [vmem:[#allocation2 + $0x208] sm:$0xff]
    %v4152 = vld [vmem:[#allocation2 + $0x210] sm:$0xff]
    %v4153 = vld [vmem:[#allocation2 + $0x21f] sm:$0x1]
    %v4154 = vlaneseq
    %v4155 = vshrl.u32 %v4154, 7
    %v4156 = vsub.s32 0, %v4155
    %v4157 = vrot.slane %v4153, %v4156
    %4158 = vmatprep.subr.mxu0 0.0
    %4159 = vmatpush1.msra.mxu0 %v4137
    %4160 = vmatprep.subr.mxu0 0.0
    %4161 = vmatpush1.msra.mxu0 %v4138
    %4162 = vmatprep.subr.mxu0 0.0
    %4163 = vmatpush1.msra.mxu0 %v4139
    %4164 = vmatprep.subr.mxu0 0.0
    %4165 = vmatpush1.msra.mxu0 %v4140
    %4166 = vmatprep.subr.mxu0 0.0
    %4167 = vmatpush1.msra.mxu0 %v4141
    %4168 = vmatprep.subr.mxu0 0.0
    %4169 = vmatpush1.msra.mxu0 %v4142
    %4170 = vmatprep.subr.mxu0 0.0
    %4171 = vmatpush1.msra.mxu0 %v4143
    %4172 = vmatprep.subr.mxu0 0.0
    %4173 = vmatpush1.msra.mxu0 %v4144
    %4174 = vmatprep.subr.mxu0 0.0
    %4175 = vmatpush1.msra.mxu0 %v4145
    %4176 = vmatprep.subr.mxu0 0.0
    %4177 = vmatpush1.msra.mxu0 %v4146
    %4178 = vmatprep.subr.mxu0 0.0
    %4179 = vmatpush1.msra.mxu0 %v4147
    %4180 = vmatprep.subr.mxu0 0.0
    %4181 = vmatpush1.msra.mxu0 %v4148
    %4182 = vmatprep.subr.mxu0 0.0
    %4183 = vmatpush1.msra.mxu0 %v4149
    %4184 = vmatprep.subr.mxu0 0.0
    %4185 = vmatpush1.msra.mxu0 %v4150
    %4186 = vmatprep.subr.mxu0 0.0
    %4187 = vmatpush1.msra.mxu0 %v4151
    %4188 = vmatprep.subr.mxu0 0.0
    %4189 = vmatpush1.msra.mxu0 %v4152
    %4190 = vmatprep.subr.mxu0 0.0
    %4191 = vmatpush1.msra.mxu0 0.0
    %4192 = vmatprep.subr.mxu0 0.0
    %4193 = vmatpush1.msra.mxu0 0.0
    %4194 = vmatprep.subr.mxu0 0.0
    %4195 = vmatpush1.msra.mxu0 0.0
    %4196 = vmatprep.subr.mxu0 0.0
    %4197 = vmatpush1.msra.mxu0 0.0
    %4198 = vmatprep.subr.mxu0 0.0
    %4199 = vmatpush1.msra.mxu0 0.0
    %4200 = vmatprep.subr.mxu0 0.0
    %4201 = vmatpush1.msra.mxu0 0.0
    %4202 = vmatprep.subr.mxu0 0.0
    %4203 = vmatpush1.msra.mxu0 0.0
    %4204 = vmatprep.subr.mxu0 0.0
    %4205 = vmatpush1.msra.mxu0 0.0
    %4206 = vmatprep.subr.mxu0 0.0
    %4207 = vmatpush1.msra.mxu0 0.0
    %4208 = vmatprep.subr.mxu0 0.0
    %4209 = vmatpush1.msra.mxu0 0.0
    %4210 = vmatprep.subr.mxu0 0.0
    %4211 = vmatpush1.msra.mxu0 0.0
    %4212 = vmatprep.subr.mxu0 0.0
    %4213 = vmatpush1.msra.mxu0 0.0
    %4214 = vmatprep.subr.mxu0 0.0
    %4215 = vmatpush1.msra.mxu0 0.0
    %4216 = vmatprep.subr.mxu0 0.0
    %4217 = vmatpush1.msra.mxu0 0.0
    %4218 = vmatprep.subr.mxu0 0.0
    %4219 = vmatpush1.msra.mxu0 0.0
    %4220 = vmatprep.subr.mxu0 0.0
    %4221 = vmatpush1.msra.mxu0 0.0
    %4222 = vmatprep.mubr.f32.mxu0 0.0
    %4223 = vmatmul.mubr.f32.gmra.mrb[0].mxu0 %v4135
    %v4224 = vpop.f32.mrb[0].mxu0
    %v4225 = vadd.f32 %v4157, %v4224
    %v4226 = vpop.f32.mrb[0].mxu0
    %4227 = vmatprep.mubr.f32.mxu0 0.0
    %4228 = vmatmul.mubr.f32.gmra.mrb[0].mxu0 %v4136
    %v4229 = vpop.f32.mrb[0].mxu0
    %v4230 = vadd.f32 %v4157, %v4229
    %v4231 = vpop.f32.mrb[0].mxu0
    %4232 = vdwg.mxu0
    %v4233 = vadd.f32 %v3983, %v4225
    %v4234 = vadd.f32 %v3984, %v4230
    %v4235 = vld [vmem:[#allocation2 + $0x220] sm:$0x1]
    %v4236 = vld [vmem:[#allocation2 + $0x221] sm:$0x1]
    %v4237 = vsel %vm137, %v4233, 0.0
    %4238 = vadd.xlane.f32.xlu0 %v4237
    %v4239 = vpop.xlane.xlu0 %4238
    %v4240 = vsel %vm137, %v4234, 0.0
    %4241 = vadd.xlane.f32.xlu0 %v4240
    %v4242 = vpop.xlane.xlu0 %4241
    %v4243 = vmul.f32 %v4239, 0.03125
    %v4244 = vmul.f32 %v4242, 0.03125
    %v4245 = vmul.f32 %v4233, %v4233
    %v4246 = vmul.f32 %v4234, %v4234
    %v4247 = vsel %vm137, %v4245, 0.0
    %4248 = vadd.xlane.f32.xlu0 %v4247
    %v4249 = vpop.xlane.xlu0 %4248
    %v4250 = vsel %vm137, %v4246, 0.0
    %4251 = vadd.xlane.f32.xlu0 %v4250
    %v4252 = vpop.xlane.xlu0 %4251
    %v4253 = vmul.f32 %v4249, 0.03125
    %v4254 = vmul.f32 %v4252, 0.03125
    %v4255 = vmul.f32 %v4243, %v4243
    %v4256 = vmul.f32 %v4244, %v4244
    %v4257 = vsub.f32 %v4253, %v4255
    %v4258 = vsub.f32 %v4254, %v4256
    %v4259 = vsub.f32 %v4233, %v4243
    %v4260 = vsub.f32 %v4234, %v4244
    %v4261 = vadd.f32 %v4257, 1e-05
    %v4262 = vadd.f32 %v4258, 1e-05
    %v4263 = vrsqrt.pop %v4261
    %v4264 = vrsqrt.pop %v4262
    %v4265 = vmul.f32 %v4259, %v4263
    %v4266 = vmul.f32 %v4260, %v4264
    %v4267 = vlaneseq
    %v4268 = vshrl.u32 %v4267, 7
    %v4269 = vsub.s32 0, %v4268
    %v4270 = vrot.slane %v4235, %v4269
    %v4271 = vmul.f32 %v4265, %v4270
    %v4272 = vmul.f32 %v4266, %v4270
    %v4273 = vlaneseq
    %v4274 = vshrl.u32 %v4273, 7
    %v4275 = vsub.s32 0, %v4274
    %v4276 = vrot.slane %v4236, %v4275
    %v4277 = vadd.f32 %v4271, %v4276
    %v4278 = vadd.f32 %v4272, %v4276
    %4279 = vst.msk [vmem:[#allocation5] sm:$0xff] %vm137, %v4277
    %4280 = vst.msk [vmem:[#allocation5 + $0x8] sm:$0xff] %vm137, %v4278
    // Predicated region
    $region14: #{transformer_forward.1} parent=1 // pred_check
      _
    $region15: #{transformer_forward.1} parent=1 // pred_check_branch
      %4282 = sbr.rel (0) target = $region17
    $region16: #{transformer_forward.1} parent=1 // pred_region
      %s4284 = ssub.s32 256, 256
      %4285 = vsyncadd [#allocation4], %s4284
      %s4286 = sshll.u32 [#allocation5], 4
      %s4287 = int_to_ptr.vmem [resolvable:$true] %s4286
      %4292 = dma.vmem_to_hbm [thread:$0]  %s4287, 256, %s2, [#allocation4], 128, 128, 8
    $region17: #{transformer_forward.1} parent=1 // pred_fallthru
      _
    // Predicated region
    $region18: #{transformer_forward.1} parent=1 // pred_check
      _
    $region19: #{transformer_forward.1} parent=1 // pred_check_branch
      %4294 = sbr.rel (0) target = $region21
    $region20: #{transformer_forward.1} parent=1 // pred_region
      %4295 = dma.done [#allocation4], 256
    $region21: #{transformer_forward.1} parent=1 // pred_fallthru
      _
    %4296 = vsyncpa [#allocation3], 1
    %4297 = vsyncpa [#allocation4], 1

</llo_original>
